<compile_context>
chip_gen: v6e
topology: v6e:2x2x1
jax: 0.10.0
libtpu: 0.0.40
codegen_flags: <defaults>
</compile_context>

<pallas_src>
import math

import jax
import jax.numpy as jnp
from jax.experimental import pallas as pl
from jax.experimental.pallas import tpu as pltpu

# ----------------------------- small ViT config -----------------------------
IMG_SIZE = 16            # config.img_size
PATCH = 4                # config.patch_size_2d
IN_CH = 3                # in_channels (Embeddings default)
HIDDEN = 32              # config.hidden_size
N_HEADS = 4              # config.n_heads
HEAD_DIM = HIDDEN // N_HEADS
MLP_SIZE = 64            # config.mlp_size
N_LAYERS = 2             # config.n_layers
NUM_CLASSES = 1
N_PATCHES = (IMG_SIZE // PATCH) * (IMG_SIZE // PATCH)   # 16
SEQ = N_PATCHES + 1      # 17 (+1 cls token)
SEQ_PAD = ((SEQ + 7) // 8) * 8                          # 24: sublane-aligned rows
PATCH_DIM = IN_CH * PATCH * PATCH                        # 48
PATCH_DIM_PAD = 128                                      # lane-dense patch rows
LANES = 128
LN_EPS = 1e-6

# ------------------------- parameter-slab row layout -------------------------
PW_OFF = 0                                   # patch weight  (128 rows, cols 0:32)
EMB_OFF = PW_OFF + PATCH_DIM_PAD             # embed_add     (24 rows,  cols 0:32)
LAYER_OFF = EMB_OFF + SEQ_PAD                # first layer block
L_WQKV = 0                                   # (32 rows, cols 0:96)
L_WO = L_WQKV + HIDDEN                       # (32 rows, cols 0:32)
L_WF1 = L_WO + HIDDEN                        # (32 rows, cols 0:64)
L_WF2 = L_WF1 + HIDDEN                       # (64 rows, cols 0:32)
L_VEC = L_WF2 + MLP_SIZE                     # 8 rows of per-layer vectors
LAYER_STRIDE = L_VEC + 8                     # 168 rows per layer
# vector rows inside the per-layer VEC block
R_BQKV, R_BO, R_LN1G, R_LN1B, R_LN2G, R_LN2B, R_BF1, R_BF2 = range(8)
FIN_OFF = LAYER_OFF + N_LAYERS * LAYER_STRIDE            # final block (8 rows)
R_LNFG, R_LNFB, R_HW, R_HB = range(4)
SLAB_ROWS = FIN_OFF + 8                                   # 496 (multiple of 8)


# ------------------------------- fused kernel --------------------------------
def _layernorm(v, g, b):
    """LayerNorm over last dim (biased variance, eps=1e-6), like torch.nn.LayerNorm."""
    v = v.astype(jnp.float32)
    mu = jnp.mean(v, axis=-1, keepdims=True)
    var = jnp.mean((v - mu) ** 2, axis=-1, keepdims=True)
    return (v - mu) * jax.lax.rsqrt(var + LN_EPS) * g + b


def _vit_kernel(patches_ref, slab_ref, logits_ref, probs_ref):
    """One grid step == one batch element's full ViT forward."""
    scale = 1.0 / math.sqrt(HEAD_DIM)

    def prow(r, width):                     # (1, width) parameter row from the slab
        return slab_ref[r:r + 1, 0:width]

    # ---- prologue: patch embedding + (cls token + pos emb + conv bias) add ----
    # patch rows are [cls-slot(0s), 16 patches, 7 pad(0s)]; one matmul + one add
    # reproduces Embeddings.forward (padded patch-weight rows/cols are zero).
    pw = slab_ref[PW_OFF:PW_OFF + PATCH_DIM_PAD, 0:HIDDEN]          # (128, 32)
    add = slab_ref[EMB_OFF:EMB_OFF + SEQ_PAD, 0:HIDDEN]             # (24, 32)
    x = jnp.dot(patches_ref[...], pw, preferred_element_type=jnp.float32) + add

    # key-padding mask (keys >= SEQ masked out); hoisted, shared by all layers/heads
    kmask = jax.lax.broadcasted_iota(jnp.int32, (SEQ_PAD, SEQ_PAD), 1) < SEQ
    lane_pad = jnp.zeros((SEQ_PAD, LANES - N_HEADS * SEQ_PAD), jnp.float32)

    for l in range(N_LAYERS):                   # N_LAYERS=2, statically unrolled
        base = LAYER_OFF + l * LAYER_STRIDE
        vec = base + L_VEC

        # ---------------- attention sub-block ----------------
        xn = _layernorm(x, prow(vec + R_LN1G, HIDDEN), prow(vec + R_LN1B, HIDDEN))
        wqkv = slab_ref[base + L_WQKV:base + L_WQKV + HIDDEN, 0:3 * HIDDEN]
        qkv = (jnp.dot(xn, wqkv, preferred_element_type=jnp.float32)
               + prow(vec + R_BQKV, 3 * HIDDEN))                     # (24, 96)

        ctx_parts, prob_parts = [], []
        for h in range(N_HEADS):                # 4 heads, static lane slices
            c0 = h * HEAD_DIM
            qh = qkv[:, c0:c0 + HEAD_DIM]
            kh = qkv[:, HIDDEN + c0:HIDDEN + c0 + HEAD_DIM]
            vh = qkv[:, 2 * HIDDEN + c0:2 * HIDDEN + c0 + HEAD_DIM]
            # scores = q k^T / sqrt(d), padded key columns masked out
            s = jax.lax.dot_general(qh, kh, (((1,), (1,)), ((), ())),
                                    preferred_element_type=jnp.float32) * scale
            s = jnp.where(kmask, s, -1e30)
            e = jnp.exp(s - jnp.max(s, axis=-1, keepdims=True))
            p = e * pl.reciprocal(jnp.sum(e, axis=-1, keepdims=True), approx=False)
            prob_parts.append(p)
            ctx_parts.append(jnp.dot(p, vh, preferred_element_type=jnp.float32))

        # attention probs (vis=True): one lane-dense (24,128) store per layer
        probs_ref[0, l] = jnp.concatenate(prob_parts + [lane_pad], axis=1)

        # context held in registers; no VMEM scratch round-trip
        ctx = jnp.concatenate(ctx_parts, axis=1)                     # (24, 32)
        wo = slab_ref[base + L_WO:base + L_WO + HIDDEN, 0:HIDDEN]
        x = x + (jnp.dot(ctx, wo, preferred_element_type=jnp.float32)
                 + prow(vec + R_BO, HIDDEN))

        # ---------------- MLP sub-block ----------------
        xn = _layernorm(x, prow(vec + R_LN2G, HIDDEN), prow(vec + R_LN2B, HIDDEN))
        wf1 = slab_ref[base + L_WF1:base + L_WF1 + HIDDEN, 0:MLP_SIZE]
        f = (jnp.dot(xn, wf1, preferred_element_type=jnp.float32)
             + prow(vec + R_BF1, MLP_SIZE))
        # TODO(synk): PyTorch F.gelu default is erf-exact; tanh approximation used
        # here (max abs deviation ~3e-4) for guaranteed Mosaic lowering.
        f = jax.nn.gelu(f, approximate=True)
        wf2 = slab_ref[base + L_WF2:base + L_WF2 + MLP_SIZE, 0:HIDDEN]
        x = x + (jnp.dot(f, wf2, preferred_element_type=jnp.float32)
                 + prow(vec + R_BF2, HIDDEN))

    # ---- epilogue: final LayerNorm + classification head on the cls row ----
    cls = _layernorm(x[0:1, :], prow(FIN_OFF + R_LNFG, HIDDEN),
                     prow(FIN_OFF + R_LNFB, HIDDEN))                  # (1, 32)
    logit = (jnp.sum(cls * prow(FIN_OFF + R_HW, HIDDEN), axis=-1, keepdims=True)
             + prow(FIN_OFF + R_HB, 1))                               # (1, 1)
    logits_ref[0] = jnp.broadcast_to(logit, (1, LANES))


# ------------------------------ parameter setup ------------------------------
def init_params(key):
    ks = iter(jax.random.split(key, 64))

    def dense(k_in, k_out, scale=0.02):
        w = jax.random.normal(next(ks), (k_in, k_out), jnp.float32) * scale
        b = jax.random.normal(next(ks), (k_out,), jnp.float32) * 0.01
        return w, b

    params = {}
    # Conv2d(IN_CH, HIDDEN, kernel=PATCH, stride=PATCH) as a matmul over (C,kh,kw)
    params["patch_w"], params["patch_b"] = dense(PATCH_DIM, HIDDEN)
    # nn.Parameter zeros, exactly like the torch module
    params["cls_token"] = jnp.zeros((1, 1, HIDDEN), jnp.float32)
    params["pos_emb"] = jnp.zeros((1, SEQ, HIDDEN), jnp.float32)

    layers = []
    for _ in range(N_LAYERS):
        layer = {
            "ln1_g": jnp.ones((HIDDEN,), jnp.float32),
            "ln1_b": jnp.zeros((HIDDEN,), jnp.float32),
            "ln2_g": jnp.ones((HIDDEN,), jnp.float32),
            "ln2_b": jnp.zeros((HIDDEN,), jnp.float32),
        }
        layer["wq"], layer["bq"] = dense(HIDDEN, HIDDEN)
        layer["wk"], layer["bk"] = dense(HIDDEN, HIDDEN)
        layer["wv"], layer["bv"] = dense(HIDDEN, HIDDEN)
        layer["wo"], layer["bo"] = dense(HIDDEN, HIDDEN)
        layer["wf1"], layer["bf1"] = dense(HIDDEN, MLP_SIZE)
        layer["wf2"], layer["bf2"] = dense(MLP_SIZE, HIDDEN)
        layers.append(layer)
    params["layers"] = layers

    params["ln_f_g"] = jnp.ones((HIDDEN,), jnp.float32)
    params["ln_f_b"] = jnp.zeros((HIDDEN,), jnp.float32)
    params["head_w"], params["head_b"] = dense(HIDDEN, NUM_CLASSES)
    return params


def pack_params(params):
    """Pack every parameter into one contiguous (SLAB_ROWS, 128) f32 slab."""
    slab = jnp.zeros((SLAB_ROWS, LANES), jnp.float32)

    def put(s, r, arr):
        arr = jnp.asarray(arr, jnp.float32)
        if arr.ndim == 1:
            arr = arr.reshape(1, -1)
        return s.at[r:r + arr.shape[0], 0:arr.shape[1]].set(arr)

    slab = put(slab, PW_OFF, params["patch_w"])           # rows 48..127 stay zero

    # additive prologue tensor: row0 = cls+pos[0], rows 1..16 = conv_bias+pos[1:]
    pos = params["pos_emb"].reshape(SEQ, HIDDEN)
    cls = params["cls_token"].reshape(1, HIDDEN)
    pbias = params["patch_b"].reshape(1, HIDDEN)
    add = jnp.concatenate([cls + pos[0:1], pbias + pos[1:SEQ]], axis=0)
    slab = put(slab, EMB_OFF, add)                        # pad rows 17..23 stay zero

    for l, lyr in enumerate(params["layers"]):
        base = LAYER_OFF + l * LAYER_STRIDE
        vec = base + L_VEC
        slab = put(slab, base + L_WQKV,
                   jnp.concatenate([lyr["wq"], lyr["wk"], lyr["wv"]], axis=1))
        slab = put(slab, base + L_WO, lyr["wo"])
        slab = put(slab, base + L_WF1, lyr["wf1"])
        slab = put(slab, base + L_WF2, lyr["wf2"])
        slab = put(slab, vec + R_BQKV,
                   jnp.concatenate([lyr["bq"], lyr["bk"], lyr["bv"]], axis=0))
        slab = put(slab, vec + R_BO, lyr["bo"])
        slab = put(slab, vec + R_LN1G, lyr["ln1_g"])
        slab = put(slab, vec + R_LN1B, lyr["ln1_b"])
        slab = put(slab, vec + R_LN2G, lyr["ln2_g"])
        slab = put(slab, vec + R_LN2B, lyr["ln2_b"])
        slab = put(slab, vec + R_BF1, lyr["bf1"])
        slab = put(slab, vec + R_BF2, lyr["bf2"])

    slab = put(slab, FIN_OFF + R_LNFG, params["ln_f_g"])
    slab = put(slab, FIN_OFF + R_LNFB, params["ln_f_b"])
    slab = put(slab, FIN_OFF + R_HW, params["head_w"].reshape(HIDDEN))  # head_w^T row
    slab = put(slab, FIN_OFF + R_HB, params["head_b"].reshape(1))
    return slab


# --------------------------------- forward ----------------------------------
def vit_bbone_forward(x, slab):
    """x: (B, IN_CH, IMG_SIZE, IMG_SIZE) -> (logits (B, NUM_CLASSES), [attn probs per layer])."""
    B = x.shape[0]
    hp = IMG_SIZE // PATCH

    # --- patchify (pure layout, done by XLA on the way into the kernel) ---
    patches = x.reshape(B, IN_CH, hp, PATCH, hp, PATCH)
    patches = patches.transpose(0, 2, 4, 1, 3, 5).reshape(B, N_PATCHES, PATCH_DIM)
    # per-batch rows: [cls slot, 16 patches, 7 pad]; lanes padded 48 -> 128
    patches = jnp.pad(patches, ((0, 0),
                                (1, SEQ_PAD - 1 - N_PATCHES),
                                (0, PATCH_DIM_PAD - PATCH_DIM)))
    patches = patches.reshape(B * SEQ_PAD, PATCH_DIM_PAD)

    logits_pad, probs_raw = pl.pallas_call(
        _vit_kernel,
        out_shape=(
            jax.ShapeDtypeStruct((B, 1, LANES), jnp.float32),
            jax.ShapeDtypeStruct((B, N_LAYERS, SEQ_PAD, LANES), jnp.float32),
        ),
        grid=(B,),
        in_specs=[
            pl.BlockSpec((SEQ_PAD, PATCH_DIM_PAD), lambda b: (b, 0)),
            pl.BlockSpec((SLAB_ROWS, LANES), lambda b: (0, 0)),   # resident weights
        ],
        out_specs=(
            pl.BlockSpec((1, 1, LANES), lambda b: (b, 0, 0)),
            pl.BlockSpec((1, N_LAYERS, SEQ_PAD, LANES), lambda b: (b, 0, 0, 0)),
        ),
        compiler_params=pltpu.CompilerParams(
            dimension_semantics=("parallel",)),                   # megacore on v7x
    )(patches, slab)

    # --- un-pad / split heads in XLA (free in HBM) ---
    logits = logits_pad[:, 0, :NUM_CLASSES]                        # (B, 1)
    pr = probs_raw[:, :, :, :N_HEADS * SEQ_PAD]                    # (B, L, 24, 96)
    pr = pr.reshape(B, N_LAYERS, SEQ_PAD, N_HEADS, SEQ_PAD)
    pr = pr.transpose(1, 0, 3, 2, 4)[:, :, :, :SEQ, :SEQ]          # (L, B, H, 17, 17)
    attn_weights = [pr[l] for l in range(N_LAYERS)]                # vis=True
    return logits, attn_weights


# ----------------------------------- main ------------------------------------
if __name__ == "__main__":
    key = jax.random.PRNGKey(0)
    kx, kp = jax.random.split(key)
    x = jax.random.normal(kx, (2, IN_CH, IMG_SIZE, IMG_SIZE), jnp.float32)

    params = init_params(kp)
    slab = pack_params(params)

    fwd = jax.jit(vit_bbone_forward)
    logits, attn_weights = fwd(x, slab)
    jax.block_until_ready((logits, attn_weights))

    assert logits.shape == (2, NUM_CLASSES)
    assert len(attn_weights) == N_LAYERS
    assert attn_weights[0].shape == (2, N_HEADS, SEQ, SEQ)
    assert bool(jnp.all(jnp.isfinite(logits)))
    print("KERNEL_OK")
</pallas_src>

<mosaic_0001>
module attributes {stable_mosaic.version = 11 : i64} {
  func.func @_vit_kernel(%arg0: i32, %arg1: memref<24x128xf32, #tpu.memory_space<vmem>>, %arg2: memref<496x128xf32, #tpu.memory_space<vmem>>, %arg3: memref<1x1x128xf32, #tpu.memory_space<vmem>>, %arg4: memref<1x2x24x128xf32, #tpu.memory_space<vmem>>) attributes {dimension_semantics = [#tpu.dimension_semantics<parallel>], iteration_bounds = array<i64: 2>, scalar_prefetch = 0 : i64, scratch_operands = 0 : i64, tpu.core_type = #tpu.core_type<tc>, window_params = [{transform_indices = @transform_0, window_bounds = array<i64: 24, 128>}, {pipeline_mode = #tpu.pipeline_mode<synchronous>, transform_indices = @transform_1, window_bounds = array<i64: 496, 128>}, {transform_indices = @transform_2, window_bounds = array<i64: 1, 1, 128>}, {transform_indices = @transform_3, window_bounds = array<i64: 1, 2, 24, 128>}]} {
    %c0 = arith.constant 0 : index
    %c0_0 = arith.constant 0 : index
    %0 = vector.load %arg2[%c0, %c0_0] : memref<496x128xf32, #tpu.memory_space<vmem>>, vector<128x32xf32>
    %c128 = arith.constant 128 : index
    %c0_1 = arith.constant 0 : index
    %1 = vector.load %arg2[%c128, %c0_1] : memref<496x128xf32, #tpu.memory_space<vmem>>, vector<24x32xf32>
    %c0_2 = arith.constant 0 : index
    %c0_3 = arith.constant 0 : index
    %2 = vector.load %arg1[%c0_2, %c0_3] : memref<24x128xf32, #tpu.memory_space<vmem>>, vector<24x128xf32>
    %cst = arith.constant dense<0.000000e+00> : vector<24x32xf32>
    %3 = tpu.matmul %2, %0, %cst {dimension_numbers = #tpu.dot_dimension_numbers<[1], [0], [0], [1], [0, 0, 1, 1], [], []>} : vector<24x128xf32>, vector<128x32xf32>, vector<24x32xf32> -> vector<24x32xf32>
    %4 = arith.addf %3, %1 : vector<24x32xf32>
    %5 = tpu.iota {dimensions = array<i32: 1>} : vector<24x24xi32>
    %c17_i32 = arith.constant 17 : i32
    %6 = vector.broadcast %c17_i32 : i32 to vector<24x24xi32>
    %7 = arith.cmpi slt, %5, %6 : vector<24x24xi32>
    %cst_4 = arith.constant 0.000000e+00 : f32
    %8 = vector.broadcast %cst_4 : f32 to vector<24x32xf32>
    %c314 = arith.constant 314 : index
    %c0_5 = arith.constant 0 : index
    %9 = vector.load %arg2[%c314, %c0_5] : memref<496x128xf32, #tpu.memory_space<vmem>>, vector<1x32xf32>
    %c315 = arith.constant 315 : index
    %c0_6 = arith.constant 0 : index
    %10 = vector.load %arg2[%c315, %c0_6] : memref<496x128xf32, #tpu.memory_space<vmem>>, vector<1x32xf32>
    %cst_7 = arith.constant dense<0.000000e+00> : vector<24xf32>
    %11 = vector.multi_reduction <add>, %4, %cst_7 [1] : vector<24x32xf32> to vector<24xf32>
    %12 = vector.shape_cast %11 : vector<24xf32> to vector<24x1xf32>
    %cst_8 = arith.constant 3.200000e+01 : f32
    %13 = vector.broadcast %cst_8 : f32 to vector<24x1xf32>
    %14 = arith.divf %12, %13 : vector<24x1xf32>
    %15 = vector.broadcast %14 : vector<24x1xf32> to vector<24x32xf32>
    %16 = arith.subf %4, %15 : vector<24x32xf32>
    %17 = arith.mulf %16, %16 : vector<24x32xf32>
    %cst_9 = arith.constant dense<0.000000e+00> : vector<24xf32>
    %18 = vector.multi_reduction <add>, %17, %cst_9 [1] : vector<24x32xf32> to vector<24xf32>
    %19 = vector.shape_cast %18 : vector<24xf32> to vector<24x1xf32>
    %cst_10 = arith.constant 3.200000e+01 : f32
    %20 = vector.broadcast %cst_10 : f32 to vector<24x1xf32>
    %21 = arith.divf %19, %20 : vector<24x1xf32>
    %22 = vector.broadcast %14 : vector<24x1xf32> to vector<24x32xf32>
    %23 = arith.subf %4, %22 : vector<24x32xf32>
    %cst_11 = arith.constant 9.99999997E-7 : f32
    %24 = vector.broadcast %cst_11 : f32 to vector<24x1xf32>
    %25 = arith.addf %21, %24 : vector<24x1xf32>
    %26 = math.rsqrt %25 : vector<24x1xf32>
    %27 = vector.broadcast %26 : vector<24x1xf32> to vector<24x32xf32>
    %28 = arith.mulf %23, %27 : vector<24x32xf32>
    %29 = vector.broadcast %9 : vector<1x32xf32> to vector<24x32xf32>
    %30 = arith.mulf %28, %29 : vector<24x32xf32>
    %31 = vector.broadcast %10 : vector<1x32xf32> to vector<24x32xf32>
    %32 = arith.addf %30, %31 : vector<24x32xf32>
    %c152 = arith.constant 152 : index
    %c0_12 = arith.constant 0 : index
    %33 = vector.load %arg2[%c152, %c0_12] : memref<496x128xf32, #tpu.memory_space<vmem>>, vector<32x96xf32>
    %cst_13 = arith.constant dense<0.000000e+00> : vector<24x96xf32>
    %34 = tpu.matmul %32, %33, %cst_13 {dimension_numbers = #tpu.dot_dimension_numbers<[1], [0], [0], [1], [0, 0, 1, 1], [], []>} : vector<24x32xf32>, vector<32x96xf32>, vector<24x96xf32> -> vector<24x96xf32>
    %c312 = arith.constant 312 : index
    %c0_14 = arith.constant 0 : index
    %35 = vector.load %arg2[%c312, %c0_14] : memref<496x128xf32, #tpu.memory_space<vmem>>, vector<1x96xf32>
    %36 = vector.broadcast %35 : vector<1x96xf32> to vector<24x96xf32>
    %37 = arith.addf %34, %36 : vector<24x96xf32>
    %38 = vector.extract_strided_slice %37 {offsets = [0, 0], sizes = [24, 8], strides = [1, 1]} : vector<24x96xf32> to vector<24x8xf32>
    %39 = vector.extract_strided_slice %37 {offsets = [0, 32], sizes = [24, 8], strides = [1, 1]} : vector<24x96xf32> to vector<24x8xf32>
    %40 = vector.extract_strided_slice %37 {offsets = [0, 64], sizes = [24, 8], strides = [1, 1]} : vector<24x96xf32> to vector<24x8xf32>
    %cst_15 = arith.constant dense<0.000000e+00> : vector<24x24xf32>
    %41 = tpu.matmul %38, %39, %cst_15 {dimension_numbers = #tpu.dot_dimension_numbers<[1], [1], [0], [0], [0, 0, 1, 0], [], []>} : vector<24x8xf32>, vector<24x8xf32>, vector<24x24xf32> -> vector<24x24xf32>
    %cst_16 = arith.constant 0.353553385 : f32
    %42 = vector.broadcast %cst_16 : f32 to vector<24x24xf32>
    %43 = arith.mulf %41, %42 : vector<24x24xf32>
    %cst_17 = arith.constant -1.000000e+30 : f32
    %44 = vector.broadcast %cst_17 : f32 to vector<24x24xf32>
    %45 = arith.select %7, %43, %44 : vector<24x24xi1>, vector<24x24xf32>
    %cst_18 = arith.constant dense<0xFF800000> : vector<24xf32>
    %46 = vector.multi_reduction <maximumf>, %45, %cst_18 [1] : vector<24x24xf32> to vector<24xf32>
    %47 = vector.shape_cast %46 : vector<24xf32> to vector<24x1xf32>
    %48 = vector.broadcast %47 : vector<24x1xf32> to vector<24x24xf32>
    %49 = arith.subf %45, %48 : vector<24x24xf32>
    %50 = math.exp %49 : vector<24x24xf32>
    %cst_19 = arith.constant dense<0.000000e+00> : vector<24xf32>
    %51 = vector.multi_reduction <add>, %50, %cst_19 [1] : vector<24x24xf32> to vector<24xf32>
    %52 = vector.shape_cast %51 : vector<24xf32> to vector<24x1xf32>
    %53 = tpu.reciprocal %52 : vector<24x1xf32> -> vector<24x1xf32>
    %54 = vector.broadcast %53 : vector<24x1xf32> to vector<24x24xf32>
    %55 = arith.mulf %50, %54 : vector<24x24xf32>
    %cst_20 = arith.constant dense<0.000000e+00> : vector<24x8xf32>
    %56 = tpu.matmul %55, %40, %cst_20 {dimension_numbers = #tpu.dot_dimension_numbers<[1], [0], [0], [1], [0, 0, 1, 1], [], []>} : vector<24x24xf32>, vector<24x8xf32>, vector<24x8xf32> -> vector<24x8xf32>
    %57 = vector.extract_strided_slice %37 {offsets = [0, 8], sizes = [24, 8], strides = [1, 1]} : vector<24x96xf32> to vector<24x8xf32>
    %58 = vector.extract_strided_slice %37 {offsets = [0, 40], sizes = [24, 8], strides = [1, 1]} : vector<24x96xf32> to vector<24x8xf32>
    %59 = vector.extract_strided_slice %37 {offsets = [0, 72], sizes = [24, 8], strides = [1, 1]} : vector<24x96xf32> to vector<24x8xf32>
    %cst_21 = arith.constant dense<0.000000e+00> : vector<24x24xf32>
    %60 = tpu.matmul %57, %58, %cst_21 {dimension_numbers = #tpu.dot_dimension_numbers<[1], [1], [0], [0], [0, 0, 1, 0], [], []>} : vector<24x8xf32>, vector<24x8xf32>, vector<24x24xf32> -> vector<24x24xf32>
    %cst_22 = arith.constant 0.353553385 : f32
    %61 = vector.broadcast %cst_22 : f32 to vector<24x24xf32>
    %62 = arith.mulf %60, %61 : vector<24x24xf32>
    %cst_23 = arith.constant -1.000000e+30 : f32
    %63 = vector.broadcast %cst_23 : f32 to vector<24x24xf32>
    %64 = arith.select %7, %62, %63 : vector<24x24xi1>, vector<24x24xf32>
    %cst_24 = arith.constant dense<0xFF800000> : vector<24xf32>
    %65 = vector.multi_reduction <maximumf>, %64, %cst_24 [1] : vector<24x24xf32> to vector<24xf32>
    %66 = vector.shape_cast %65 : vector<24xf32> to vector<24x1xf32>
    %67 = vector.broadcast %66 : vector<24x1xf32> to vector<24x24xf32>
    %68 = arith.subf %64, %67 : vector<24x24xf32>
    %69 = math.exp %68 : vector<24x24xf32>
    %cst_25 = arith.constant dense<0.000000e+00> : vector<24xf32>
    %70 = vector.multi_reduction <add>, %69, %cst_25 [1] : vector<24x24xf32> to vector<24xf32>
    %71 = vector.shape_cast %70 : vector<24xf32> to vector<24x1xf32>
    %72 = tpu.reciprocal %71 : vector<24x1xf32> -> vector<24x1xf32>
    %73 = vector.broadcast %72 : vector<24x1xf32> to vector<24x24xf32>
    %74 = arith.mulf %69, %73 : vector<24x24xf32>
    %cst_26 = arith.constant dense<0.000000e+00> : vector<24x8xf32>
    %75 = tpu.matmul %74, %59, %cst_26 {dimension_numbers = #tpu.dot_dimension_numbers<[1], [0], [0], [1], [0, 0, 1, 1], [], []>} : vector<24x24xf32>, vector<24x8xf32>, vector<24x8xf32> -> vector<24x8xf32>
    %76 = vector.extract_strided_slice %37 {offsets = [0, 16], sizes = [24, 8], strides = [1, 1]} : vector<24x96xf32> to vector<24x8xf32>
    %77 = vector.extract_strided_slice %37 {offsets = [0, 48], sizes = [24, 8], strides = [1, 1]} : vector<24x96xf32> to vector<24x8xf32>
    %78 = vector.extract_strided_slice %37 {offsets = [0, 80], sizes = [24, 8], strides = [1, 1]} : vector<24x96xf32> to vector<24x8xf32>
    %cst_27 = arith.constant dense<0.000000e+00> : vector<24x24xf32>
    %79 = tpu.matmul %76, %77, %cst_27 {dimension_numbers = #tpu.dot_dimension_numbers<[1], [1], [0], [0], [0, 0, 1, 0], [], []>} : vector<24x8xf32>, vector<24x8xf32>, vector<24x24xf32> -> vector<24x24xf32>
    %cst_28 = arith.constant 0.353553385 : f32
    %80 = vector.broadcast %cst_28 : f32 to vector<24x24xf32>
    %81 = arith.mulf %79, %80 : vector<24x24xf32>
    %cst_29 = arith.constant -1.000000e+30 : f32
    %82 = vector.broadcast %cst_29 : f32 to vector<24x24xf32>
    %83 = arith.select %7, %81, %82 : vector<24x24xi1>, vector<24x24xf32>
    %cst_30 = arith.constant dense<0xFF800000> : vector<24xf32>
    %84 = vector.multi_reduction <maximumf>, %83, %cst_30 [1] : vector<24x24xf32> to vector<24xf32>
    %85 = vector.shape_cast %84 : vector<24xf32> to vector<24x1xf32>
    %86 = vector.broadcast %85 : vector<24x1xf32> to vector<24x24xf32>
    %87 = arith.subf %83, %86 : vector<24x24xf32>
    %88 = math.exp %87 : vector<24x24xf32>
    %cst_31 = arith.constant dense<0.000000e+00> : vector<24xf32>
    %89 = vector.multi_reduction <add>, %88, %cst_31 [1] : vector<24x24xf32> to vector<24xf32>
    %90 = vector.shape_cast %89 : vector<24xf32> to vector<24x1xf32>
    %91 = tpu.reciprocal %90 : vector<24x1xf32> -> vector<24x1xf32>
    %92 = vector.broadcast %91 : vector<24x1xf32> to vector<24x24xf32>
    %93 = arith.mulf %88, %92 : vector<24x24xf32>
    %cst_32 = arith.constant dense<0.000000e+00> : vector<24x8xf32>
    %94 = tpu.matmul %93, %78, %cst_32 {dimension_numbers = #tpu.dot_dimension_numbers<[1], [0], [0], [1], [0, 0, 1, 1], [], []>} : vector<24x24xf32>, vector<24x8xf32>, vector<24x8xf32> -> vector<24x8xf32>
    %95 = vector.extract_strided_slice %37 {offsets = [0, 24], sizes = [24, 8], strides = [1, 1]} : vector<24x96xf32> to vector<24x8xf32>
    %96 = vector.extract_strided_slice %37 {offsets = [0, 56], sizes = [24, 8], strides = [1, 1]} : vector<24x96xf32> to vector<24x8xf32>
    %97 = vector.extract_strided_slice %37 {offsets = [0, 88], sizes = [24, 8], strides = [1, 1]} : vector<24x96xf32> to vector<24x8xf32>
    %cst_33 = arith.constant dense<0.000000e+00> : vector<24x24xf32>
    %98 = tpu.matmul %95, %96, %cst_33 {dimension_numbers = #tpu.dot_dimension_numbers<[1], [1], [0], [0], [0, 0, 1, 0], [], []>} : vector<24x8xf32>, vector<24x8xf32>, vector<24x24xf32> -> vector<24x24xf32>
    %cst_34 = arith.constant 0.353553385 : f32
    %99 = vector.broadcast %cst_34 : f32 to vector<24x24xf32>
    %100 = arith.mulf %98, %99 : vector<24x24xf32>
    %cst_35 = arith.constant -1.000000e+30 : f32
    %101 = vector.broadcast %cst_35 : f32 to vector<24x24xf32>
    %102 = arith.select %7, %100, %101 : vector<24x24xi1>, vector<24x24xf32>
    %cst_36 = arith.constant dense<0xFF800000> : vector<24xf32>
    %103 = vector.multi_reduction <maximumf>, %102, %cst_36 [1] : vector<24x24xf32> to vector<24xf32>
    %104 = vector.shape_cast %103 : vector<24xf32> to vector<24x1xf32>
    %105 = vector.broadcast %104 : vector<24x1xf32> to vector<24x24xf32>
    %106 = arith.subf %102, %105 : vector<24x24xf32>
    %107 = math.exp %106 : vector<24x24xf32>
    %cst_37 = arith.constant dense<0.000000e+00> : vector<24xf32>
    %108 = vector.multi_reduction <add>, %107, %cst_37 [1] : vector<24x24xf32> to vector<24xf32>
    %109 = vector.shape_cast %108 : vector<24xf32> to vector<24x1xf32>
    %110 = tpu.reciprocal %109 : vector<24x1xf32> -> vector<24x1xf32>
    %111 = vector.broadcast %110 : vector<24x1xf32> to vector<24x24xf32>
    %112 = arith.mulf %107, %111 : vector<24x24xf32>
    %cst_38 = arith.constant dense<0.000000e+00> : vector<24x8xf32>
    %113 = tpu.matmul %112, %97, %cst_38 {dimension_numbers = #tpu.dot_dimension_numbers<[1], [0], [0], [1], [0, 0, 1, 1], [], []>} : vector<24x24xf32>, vector<24x8xf32>, vector<24x8xf32> -> vector<24x8xf32>
    %114 = tpu.concatenate %55, %74, %93, %112, %8 in 1 : vector<24x24xf32>, vector<24x24xf32>, vector<24x24xf32>, vector<24x24xf32>, vector<24x32xf32> -> vector<24x128xf32>
    %c0_39 = arith.constant 0 : index
    %c0_40 = arith.constant 0 : index
    %c0_41 = arith.constant 0 : index
    %c0_42 = arith.constant 0 : index
    %115 = vector.load %arg4[%c0_39, %c0_40, %c0_41, %c0_42] : memref<1x2x24x128xf32, #tpu.memory_space<vmem>>, vector<1x1x24x128xf32>
    %116 = vector.shape_cast %115 : vector<1x1x24x128xf32> to vector<24x128xf32>
    %117 = vector.shape_cast %114 : vector<24x128xf32> to vector<1x1x24x128xf32>
    tpu.vector_store %arg4[%c0_39, %c0_40, %c0_41, %c0_42], %117 {strides = array<i32>} : memref<1x2x24x128xf32, #tpu.memory_space<vmem>>, vector<1x1x24x128xf32>,
    %118 = tpu.concatenate %56, %75, %94, %113 in 1 : vector<24x8xf32>, vector<24x8xf32>, vector<24x8xf32>, vector<24x8xf32> -> vector<24x32xf32>
    %c184 = arith.constant 184 : index
    %c0_43 = arith.constant 0 : index
    %119 = vector.load %arg2[%c184, %c0_43] : memref<496x128xf32, #tpu.memory_space<vmem>>, vector<32x32xf32>
    %cst_44 = arith.constant dense<0.000000e+00> : vector<24x32xf32>
    %120 = tpu.matmul %118, %119, %cst_44 {dimension_numbers = #tpu.dot_dimension_numbers<[1], [0], [0], [1], [0, 0, 1, 1], [], []>} : vector<24x32xf32>, vector<32x32xf32>, vector<24x32xf32> -> vector<24x32xf32>
    %c313 = arith.constant 313 : index
    %c0_45 = arith.constant 0 : index
    %121 = vector.load %arg2[%c313, %c0_45] : memref<496x128xf32, #tpu.memory_space<vmem>>, vector<1x32xf32>
    %122 = vector.broadcast %121 : vector<1x32xf32> to vector<24x32xf32>
    %123 = arith.addf %120, %122 : vector<24x32xf32>
    %124 = arith.addf %4, %123 : vector<24x32xf32>
    %c316 = arith.constant 316 : index
    %c0_46 = arith.constant 0 : index
    %125 = vector.load %arg2[%c316, %c0_46] : memref<496x128xf32, #tpu.memory_space<vmem>>, vector<1x32xf32>
    %c317 = arith.constant 317 : index
    %c0_47 = arith.constant 0 : index
    %126 = vector.load %arg2[%c317, %c0_47] : memref<496x128xf32, #tpu.memory_space<vmem>>, vector<1x32xf32>
    %cst_48 = arith.constant dense<0.000000e+00> : vector<24xf32>
    %127 = vector.multi_reduction <add>, %124, %cst_48 [1] : vector<24x32xf32> to vector<24xf32>
    %128 = vector.shape_cast %127 : vector<24xf32> to vector<24x1xf32>
    %cst_49 = arith.constant 3.200000e+01 : f32
    %129 = vector.broadcast %cst_49 : f32 to vector<24x1xf32>
    %130 = arith.divf %128, %129 : vector<24x1xf32>
    %131 = vector.broadcast %130 : vector<24x1xf32> to vector<24x32xf32>
    %132 = arith.subf %124, %131 : vector<24x32xf32>
    %133 = arith.mulf %132, %132 : vector<24x32xf32>
    %cst_50 = arith.constant dense<0.000000e+00> : vector<24xf32>
    %134 = vector.multi_reduction <add>, %133, %cst_50 [1] : vector<24x32xf32> to vector<24xf32>
    %135 = vector.shape_cast %134 : vector<24xf32> to vector<24x1xf32>
    %cst_51 = arith.constant 3.200000e+01 : f32
    %136 = vector.broadcast %cst_51 : f32 to vector<24x1xf32>
    %137 = arith.divf %135, %136 : vector<24x1xf32>
    %138 = vector.broadcast %130 : vector<24x1xf32> to vector<24x32xf32>
    %139 = arith.subf %124, %138 : vector<24x32xf32>
    %cst_52 = arith.constant 9.99999997E-7 : f32
    %140 = vector.broadcast %cst_52 : f32 to vector<24x1xf32>
    %141 = arith.addf %137, %140 : vector<24x1xf32>
    %142 = math.rsqrt %141 : vector<24x1xf32>
    %143 = vector.broadcast %142 : vector<24x1xf32> to vector<24x32xf32>
    %144 = arith.mulf %139, %143 : vector<24x32xf32>
    %145 = vector.broadcast %125 : vector<1x32xf32> to vector<24x32xf32>
    %146 = arith.mulf %144, %145 : vector<24x32xf32>
    %147 = vector.broadcast %126 : vector<1x32xf32> to vector<24x32xf32>
    %148 = arith.addf %146, %147 : vector<24x32xf32>
    %c216 = arith.constant 216 : index
    %c0_53 = arith.constant 0 : index
    %149 = vector.load %arg2[%c216, %c0_53] : memref<496x128xf32, #tpu.memory_space<vmem>>, vector<32x64xf32>
    %cst_54 = arith.constant dense<0.000000e+00> : vector<24x64xf32>
    %150 = tpu.matmul %148, %149, %cst_54 {dimension_numbers = #tpu.dot_dimension_numbers<[1], [0], [0], [1], [0, 0, 1, 1], [], []>} : vector<24x32xf32>, vector<32x64xf32>, vector<24x64xf32> -> vector<24x64xf32>
    %c318 = arith.constant 318 : index
    %c0_55 = arith.constant 0 : index
    %151 = vector.load %arg2[%c318, %c0_55] : memref<496x128xf32, #tpu.memory_space<vmem>>, vector<1x64xf32>
    %152 = vector.broadcast %151 : vector<1x64xf32> to vector<24x64xf32>
    %153 = arith.addf %150, %152 : vector<24x64xf32>
    %154 = arith.mulf %153, %153 : vector<24x64xf32>
    %155 = arith.mulf %153, %154 : vector<24x64xf32>
    %cst_56 = arith.constant 4.471500e-02 : f32
    %156 = vector.broadcast %cst_56 : f32 to vector<24x64xf32>
    %157 = arith.mulf %156, %155 : vector<24x64xf32>
    %158 = arith.addf %153, %157 : vector<24x64xf32>
    %cst_57 = arith.constant 0.797884583 : f32
    %159 = vector.broadcast %cst_57 : f32 to vector<24x64xf32>
    %160 = arith.mulf %159, %158 : vector<24x64xf32>
    %161 = math.tanh %160 : vector<24x64xf32>
    %cst_58 = arith.constant 1.000000e+00 : f32
    %162 = vector.broadcast %cst_58 : f32 to vector<24x64xf32>
    %163 = arith.addf %162, %161 : vector<24x64xf32>
    %cst_59 = arith.constant 5.000000e-01 : f32
    %164 = vector.broadcast %cst_59 : f32 to vector<24x64xf32>
    %165 = arith.mulf %164, %163 : vector<24x64xf32>
    %166 = arith.mulf %153, %165 : vector<24x64xf32>
    %c248 = arith.constant 248 : index
    %c0_60 = arith.constant 0 : index
    %167 = vector.load %arg2[%c248, %c0_60] : memref<496x128xf32, #tpu.memory_space<vmem>>, vector<64x32xf32>
    %cst_61 = arith.constant dense<0.000000e+00> : vector<24x32xf32>
    %168 = tpu.matmul %166, %167, %cst_61 {dimension_numbers = #tpu.dot_dimension_numbers<[1], [0], [0], [1], [0, 0, 1, 1], [], []>} : vector<24x64xf32>, vector<64x32xf32>, vector<24x32xf32> -> vector<24x32xf32>
    %c319 = arith.constant 319 : index
    %c0_62 = arith.constant 0 : index
    %169 = vector.load %arg2[%c319, %c0_62] : memref<496x128xf32, #tpu.memory_space<vmem>>, vector<1x32xf32>
    %170 = vector.broadcast %169 : vector<1x32xf32> to vector<24x32xf32>
    %171 = arith.addf %168, %170 : vector<24x32xf32>
    %172 = arith.addf %124, %171 : vector<24x32xf32>
    %c482 = arith.constant 482 : index
    %c0_63 = arith.constant 0 : index
    %173 = vector.load %arg2[%c482, %c0_63] : memref<496x128xf32, #tpu.memory_space<vmem>>, vector<1x32xf32>
    %c483 = arith.constant 483 : index
    %c0_64 = arith.constant 0 : index
    %174 = vector.load %arg2[%c483, %c0_64] : memref<496x128xf32, #tpu.memory_space<vmem>>, vector<1x32xf32>
    %cst_65 = arith.constant dense<0.000000e+00> : vector<24xf32>
    %175 = vector.multi_reduction <add>, %172, %cst_65 [1] : vector<24x32xf32> to vector<24xf32>
    %176 = vector.shape_cast %175 : vector<24xf32> to vector<24x1xf32>
    %cst_66 = arith.constant 3.200000e+01 : f32
    %177 = vector.broadcast %cst_66 : f32 to vector<24x1xf32>
    %178 = arith.divf %176, %177 : vector<24x1xf32>
    %179 = vector.broadcast %178 : vector<24x1xf32> to vector<24x32xf32>
    %180 = arith.subf %172, %179 : vector<24x32xf32>
    %181 = arith.mulf %180, %180 : vector<24x32xf32>
    %cst_67 = arith.constant dense<0.000000e+00> : vector<24xf32>
    %182 = vector.multi_reduction <add>, %181, %cst_67 [1] : vector<24x32xf32> to vector<24xf32>
    %183 = vector.shape_cast %182 : vector<24xf32> to vector<24x1xf32>
    %cst_68 = arith.constant 3.200000e+01 : f32
    %184 = vector.broadcast %cst_68 : f32 to vector<24x1xf32>
    %185 = arith.divf %183, %184 : vector<24x1xf32>
    %186 = vector.broadcast %178 : vector<24x1xf32> to vector<24x32xf32>
    %187 = arith.subf %172, %186 : vector<24x32xf32>
    %cst_69 = arith.constant 9.99999997E-7 : f32
    %188 = vector.broadcast %cst_69 : f32 to vector<24x1xf32>
    %189 = arith.addf %185, %188 : vector<24x1xf32>
    %190 = math.rsqrt %189 : vector<24x1xf32>
    %191 = vector.broadcast %190 : vector<24x1xf32> to vector<24x32xf32>
    %192 = arith.mulf %187, %191 : vector<24x32xf32>
    %193 = vector.broadcast %173 : vector<1x32xf32> to vector<24x32xf32>
    %194 = arith.mulf %192, %193 : vector<24x32xf32>
    %195 = vector.broadcast %174 : vector<1x32xf32> to vector<24x32xf32>
    %196 = arith.addf %194, %195 : vector<24x32xf32>
    %c320 = arith.constant 320 : index
    %c0_70 = arith.constant 0 : index
    %197 = vector.load %arg2[%c320, %c0_70] : memref<496x128xf32, #tpu.memory_space<vmem>>, vector<32x96xf32>
    %cst_71 = arith.constant dense<0.000000e+00> : vector<24x96xf32>
    %198 = tpu.matmul %196, %197, %cst_71 {dimension_numbers = #tpu.dot_dimension_numbers<[1], [0], [0], [1], [0, 0, 1, 1], [], []>} : vector<24x32xf32>, vector<32x96xf32>, vector<24x96xf32> -> vector<24x96xf32>
    %c480 = arith.constant 480 : index
    %c0_72 = arith.constant 0 : index
    %199 = vector.load %arg2[%c480, %c0_72] : memref<496x128xf32, #tpu.memory_space<vmem>>, vector<1x96xf32>
    %200 = vector.broadcast %199 : vector<1x96xf32> to vector<24x96xf32>
    %201 = arith.addf %198, %200 : vector<24x96xf32>
    %202 = vector.extract_strided_slice %201 {offsets = [0, 0], sizes = [24, 8], strides = [1, 1]} : vector<24x96xf32> to vector<24x8xf32>
    %203 = vector.extract_strided_slice %201 {offsets = [0, 32], sizes = [24, 8], strides = [1, 1]} : vector<24x96xf32> to vector<24x8xf32>
    %204 = vector.extract_strided_slice %201 {offsets = [0, 64], sizes = [24, 8], strides = [1, 1]} : vector<24x96xf32> to vector<24x8xf32>
    %cst_73 = arith.constant dense<0.000000e+00> : vector<24x24xf32>
    %205 = tpu.matmul %202, %203, %cst_73 {dimension_numbers = #tpu.dot_dimension_numbers<[1], [1], [0], [0], [0, 0, 1, 0], [], []>} : vector<24x8xf32>, vector<24x8xf32>, vector<24x24xf32> -> vector<24x24xf32>
    %cst_74 = arith.constant 0.353553385 : f32
    %206 = vector.broadcast %cst_74 : f32 to vector<24x24xf32>
    %207 = arith.mulf %205, %206 : vector<24x24xf32>
    %cst_75 = arith.constant -1.000000e+30 : f32
    %208 = vector.broadcast %cst_75 : f32 to vector<24x24xf32>
    %209 = arith.select %7, %207, %208 : vector<24x24xi1>, vector<24x24xf32>
    %cst_76 = arith.constant dense<0xFF800000> : vector<24xf32>
    %210 = vector.multi_reduction <maximumf>, %209, %cst_76 [1] : vector<24x24xf32> to vector<24xf32>
    %211 = vector.shape_cast %210 : vector<24xf32> to vector<24x1xf32>
    %212 = vector.broadcast %211 : vector<24x1xf32> to vector<24x24xf32>
    %213 = arith.subf %209, %212 : vector<24x24xf32>
    %214 = math.exp %213 : vector<24x24xf32>
    %cst_77 = arith.constant dense<0.000000e+00> : vector<24xf32>
    %215 = vector.multi_reduction <add>, %214, %cst_77 [1] : vector<24x24xf32> to vector<24xf32>
    %216 = vector.shape_cast %215 : vector<24xf32> to vector<24x1xf32>
    %217 = tpu.reciprocal %216 : vector<24x1xf32> -> vector<24x1xf32>
    %218 = vector.broadcast %217 : vector<24x1xf32> to vector<24x24xf32>
    %219 = arith.mulf %214, %218 : vector<24x24xf32>
    %cst_78 = arith.constant dense<0.000000e+00> : vector<24x8xf32>
    %220 = tpu.matmul %219, %204, %cst_78 {dimension_numbers = #tpu.dot_dimension_numbers<[1], [0], [0], [1], [0, 0, 1, 1], [], []>} : vector<24x24xf32>, vector<24x8xf32>, vector<24x8xf32> -> vector<24x8xf32>
    %221 = vector.extract_strided_slice %201 {offsets = [0, 8], sizes = [24, 8], strides = [1, 1]} : vector<24x96xf32> to vector<24x8xf32>
    %222 = vector.extract_strided_slice %201 {offsets = [0, 40], sizes = [24, 8], strides = [1, 1]} : vector<24x96xf32> to vector<24x8xf32>
    %223 = vector.extract_strided_slice %201 {offsets = [0, 72], sizes = [24, 8], strides = [1, 1]} : vector<24x96xf32> to vector<24x8xf32>
    %cst_79 = arith.constant dense<0.000000e+00> : vector<24x24xf32>
    %224 = tpu.matmul %221, %222, %cst_79 {dimension_numbers = #tpu.dot_dimension_numbers<[1], [1], [0], [0], [0, 0, 1, 0], [], []>} : vector<24x8xf32>, vector<24x8xf32>, vector<24x24xf32> -> vector<24x24xf32>
    %cst_80 = arith.constant 0.353553385 : f32
    %225 = vector.broadcast %cst_80 : f32 to vector<24x24xf32>
    %226 = arith.mulf %224, %225 : vector<24x24xf32>
    %cst_81 = arith.constant -1.000000e+30 : f32
    %227 = vector.broadcast %cst_81 : f32 to vector<24x24xf32>
    %228 = arith.select %7, %226, %227 : vector<24x24xi1>, vector<24x24xf32>
    %cst_82 = arith.constant dense<0xFF800000> : vector<24xf32>
    %229 = vector.multi_reduction <maximumf>, %228, %cst_82 [1] : vector<24x24xf32> to vector<24xf32>
    %230 = vector.shape_cast %229 : vector<24xf32> to vector<24x1xf32>
    %231 = vector.broadcast %230 : vector<24x1xf32> to vector<24x24xf32>
    %232 = arith.subf %228, %231 : vector<24x24xf32>
    %233 = math.exp %232 : vector<24x24xf32>
    %cst_83 = arith.constant dense<0.000000e+00> : vector<24xf32>
    %234 = vector.multi_reduction <add>, %233, %cst_83 [1] : vector<24x24xf32> to vector<24xf32>
    %235 = vector.shape_cast %234 : vector<24xf32> to vector<24x1xf32>
    %236 = tpu.reciprocal %235 : vector<24x1xf32> -> vector<24x1xf32>
    %237 = vector.broadcast %236 : vector<24x1xf32> to vector<24x24xf32>
    %238 = arith.mulf %233, %237 : vector<24x24xf32>
    %cst_84 = arith.constant dense<0.000000e+00> : vector<24x8xf32>
    %239 = tpu.matmul %238, %223, %cst_84 {dimension_numbers = #tpu.dot_dimension_numbers<[1], [0], [0], [1], [0, 0, 1, 1], [], []>} : vector<24x24xf32>, vector<24x8xf32>, vector<24x8xf32> -> vector<24x8xf32>
    %240 = vector.extract_strided_slice %201 {offsets = [0, 16], sizes = [24, 8], strides = [1, 1]} : vector<24x96xf32> to vector<24x8xf32>
    %241 = vector.extract_strided_slice %201 {offsets = [0, 48], sizes = [24, 8], strides = [1, 1]} : vector<24x96xf32> to vector<24x8xf32>
    %242 = vector.extract_strided_slice %201 {offsets = [0, 80], sizes = [24, 8], strides = [1, 1]} : vector<24x96xf32> to vector<24x8xf32>
    %cst_85 = arith.constant dense<0.000000e+00> : vector<24x24xf32>
    %243 = tpu.matmul %240, %241, %cst_85 {dimension_numbers = #tpu.dot_dimension_numbers<[1], [1], [0], [0], [0, 0, 1, 0], [], []>} : vector<24x8xf32>, vector<24x8xf32>, vector<24x24xf32> -> vector<24x24xf32>
    %cst_86 = arith.constant 0.353553385 : f32
    %244 = vector.broadcast %cst_86 : f32 to vector<24x24xf32>
    %245 = arith.mulf %243, %244 : vector<24x24xf32>
    %cst_87 = arith.constant -1.000000e+30 : f32
    %246 = vector.broadcast %cst_87 : f32 to vector<24x24xf32>
    %247 = arith.select %7, %245, %246 : vector<24x24xi1>, vector<24x24xf32>
    %cst_88 = arith.constant dense<0xFF800000> : vector<24xf32>
    %248 = vector.multi_reduction <maximumf>, %247, %cst_88 [1] : vector<24x24xf32> to vector<24xf32>
    %249 = vector.shape_cast %248 : vector<24xf32> to vector<24x1xf32>
    %250 = vector.broadcast %249 : vector<24x1xf32> to vector<24x24xf32>
    %251 = arith.subf %247, %250 : vector<24x24xf32>
    %252 = math.exp %251 : vector<24x24xf32>
    %cst_89 = arith.constant dense<0.000000e+00> : vector<24xf32>
    %253 = vector.multi_reduction <add>, %252, %cst_89 [1] : vector<24x24xf32> to vector<24xf32>
    %254 = vector.shape_cast %253 : vector<24xf32> to vector<24x1xf32>
    %255 = tpu.reciprocal %254 : vector<24x1xf32> -> vector<24x1xf32>
    %256 = vector.broadcast %255 : vector<24x1xf32> to vector<24x24xf32>
    %257 = arith.mulf %252, %256 : vector<24x24xf32>
    %cst_90 = arith.constant dense<0.000000e+00> : vector<24x8xf32>
    %258 = tpu.matmul %257, %242, %cst_90 {dimension_numbers = #tpu.dot_dimension_numbers<[1], [0], [0], [1], [0, 0, 1, 1], [], []>} : vector<24x24xf32>, vector<24x8xf32>, vector<24x8xf32> -> vector<24x8xf32>
    %259 = vector.extract_strided_slice %201 {offsets = [0, 24], sizes = [24, 8], strides = [1, 1]} : vector<24x96xf32> to vector<24x8xf32>
    %260 = vector.extract_strided_slice %201 {offsets = [0, 56], sizes = [24, 8], strides = [1, 1]} : vector<24x96xf32> to vector<24x8xf32>
    %261 = vector.extract_strided_slice %201 {offsets = [0, 88], sizes = [24, 8], strides = [1, 1]} : vector<24x96xf32> to vector<24x8xf32>
    %cst_91 = arith.constant dense<0.000000e+00> : vector<24x24xf32>
    %262 = tpu.matmul %259, %260, %cst_91 {dimension_numbers = #tpu.dot_dimension_numbers<[1], [1], [0], [0], [0, 0, 1, 0], [], []>} : vector<24x8xf32>, vector<24x8xf32>, vector<24x24xf32> -> vector<24x24xf32>
    %cst_92 = arith.constant 0.353553385 : f32
    %263 = vector.broadcast %cst_92 : f32 to vector<24x24xf32>
    %264 = arith.mulf %262, %263 : vector<24x24xf32>
    %cst_93 = arith.constant -1.000000e+30 : f32
    %265 = vector.broadcast %cst_93 : f32 to vector<24x24xf32>
    %266 = arith.select %7, %264, %265 : vector<24x24xi1>, vector<24x24xf32>
    %cst_94 = arith.constant dense<0xFF800000> : vector<24xf32>
    %267 = vector.multi_reduction <maximumf>, %266, %cst_94 [1] : vector<24x24xf32> to vector<24xf32>
    %268 = vector.shape_cast %267 : vector<24xf32> to vector<24x1xf32>
    %269 = vector.broadcast %268 : vector<24x1xf32> to vector<24x24xf32>
    %270 = arith.subf %266, %269 : vector<24x24xf32>
    %271 = math.exp %270 : vector<24x24xf32>
    %cst_95 = arith.constant dense<0.000000e+00> : vector<24xf32>
    %272 = vector.multi_reduction <add>, %271, %cst_95 [1] : vector<24x24xf32> to vector<24xf32>
    %273 = vector.shape_cast %272 : vector<24xf32> to vector<24x1xf32>
    %274 = tpu.reciprocal %273 : vector<24x1xf32> -> vector<24x1xf32>
    %275 = vector.broadcast %274 : vector<24x1xf32> to vector<24x24xf32>
    %276 = arith.mulf %271, %275 : vector<24x24xf32>
    %cst_96 = arith.constant dense<0.000000e+00> : vector<24x8xf32>
    %277 = tpu.matmul %276, %261, %cst_96 {dimension_numbers = #tpu.dot_dimension_numbers<[1], [0], [0], [1], [0, 0, 1, 1], [], []>} : vector<24x24xf32>, vector<24x8xf32>, vector<24x8xf32> -> vector<24x8xf32>
    %278 = tpu.concatenate %219, %238, %257, %276, %8 in 1 : vector<24x24xf32>, vector<24x24xf32>, vector<24x24xf32>, vector<24x24xf32>, vector<24x32xf32> -> vector<24x128xf32>
    %c0_97 = arith.constant 0 : index
    %c1 = arith.constant 1 : index
    %c0_98 = arith.constant 0 : index
    %c0_99 = arith.constant 0 : index
    %279 = vector.load %arg4[%c0_97, %c1, %c0_98, %c0_99] : memref<1x2x24x128xf32, #tpu.memory_space<vmem>>, vector<1x1x24x128xf32>
    %280 = vector.shape_cast %279 : vector<1x1x24x128xf32> to vector<24x128xf32>
    %281 = vector.shape_cast %278 : vector<24x128xf32> to vector<1x1x24x128xf32>
    tpu.vector_store %arg4[%c0_97, %c1, %c0_98, %c0_99], %281 {strides = array<i32>} : memref<1x2x24x128xf32, #tpu.memory_space<vmem>>, vector<1x1x24x128xf32>,
    %282 = tpu.concatenate %220, %239, %258, %277 in 1 : vector<24x8xf32>, vector<24x8xf32>, vector<24x8xf32>, vector<24x8xf32> -> vector<24x32xf32>
    %c352 = arith.constant 352 : index
    %c0_100 = arith.constant 0 : index
    %283 = vector.load %arg2[%c352, %c0_100] : memref<496x128xf32, #tpu.memory_space<vmem>>, vector<32x32xf32>
    %cst_101 = arith.constant dense<0.000000e+00> : vector<24x32xf32>
    %284 = tpu.matmul %282, %283, %cst_101 {dimension_numbers = #tpu.dot_dimension_numbers<[1], [0], [0], [1], [0, 0, 1, 1], [], []>} : vector<24x32xf32>, vector<32x32xf32>, vector<24x32xf32> -> vector<24x32xf32>
    %c481 = arith.constant 481 : index
    %c0_102 = arith.constant 0 : index
    %285 = vector.load %arg2[%c481, %c0_102] : memref<496x128xf32, #tpu.memory_space<vmem>>, vector<1x32xf32>
    %286 = vector.broadcast %285 : vector<1x32xf32> to vector<24x32xf32>
    %287 = arith.addf %284, %286 : vector<24x32xf32>
    %288 = arith.addf %172, %287 : vector<24x32xf32>
    %c484 = arith.constant 484 : index
    %c0_103 = arith.constant 0 : index
    %289 = vector.load %arg2[%c484, %c0_103] : memref<496x128xf32, #tpu.memory_space<vmem>>, vector<1x32xf32>
    %c485 = arith.constant 485 : index
    %c0_104 = arith.constant 0 : index
    %290 = vector.load %arg2[%c485, %c0_104] : memref<496x128xf32, #tpu.memory_space<vmem>>, vector<1x32xf32>
    %cst_105 = arith.constant dense<0.000000e+00> : vector<24xf32>
    %291 = vector.multi_reduction <add>, %288, %cst_105 [1] : vector<24x32xf32> to vector<24xf32>
    %292 = vector.shape_cast %291 : vector<24xf32> to vector<24x1xf32>
    %cst_106 = arith.constant 3.200000e+01 : f32
    %293 = vector.broadcast %cst_106 : f32 to vector<24x1xf32>
    %294 = arith.divf %292, %293 : vector<24x1xf32>
    %295 = vector.broadcast %294 : vector<24x1xf32> to vector<24x32xf32>
    %296 = arith.subf %288, %295 : vector<24x32xf32>
    %297 = arith.mulf %296, %296 : vector<24x32xf32>
    %cst_107 = arith.constant dense<0.000000e+00> : vector<24xf32>
    %298 = vector.multi_reduction <add>, %297, %cst_107 [1] : vector<24x32xf32> to vector<24xf32>
    %299 = vector.shape_cast %298 : vector<24xf32> to vector<24x1xf32>
    %cst_108 = arith.constant 3.200000e+01 : f32
    %300 = vector.broadcast %cst_108 : f32 to vector<24x1xf32>
    %301 = arith.divf %299, %300 : vector<24x1xf32>
    %302 = vector.broadcast %294 : vector<24x1xf32> to vector<24x32xf32>
    %303 = arith.subf %288, %302 : vector<24x32xf32>
    %cst_109 = arith.constant 9.99999997E-7 : f32
    %304 = vector.broadcast %cst_109 : f32 to vector<24x1xf32>
    %305 = arith.addf %301, %304 : vector<24x1xf32>
    %306 = math.rsqrt %305 : vector<24x1xf32>
    %307 = vector.broadcast %306 : vector<24x1xf32> to vector<24x32xf32>
    %308 = arith.mulf %303, %307 : vector<24x32xf32>
    %309 = vector.broadcast %289 : vector<1x32xf32> to vector<24x32xf32>
    %310 = arith.mulf %308, %309 : vector<24x32xf32>
    %311 = vector.broadcast %290 : vector<1x32xf32> to vector<24x32xf32>
    %312 = arith.addf %310, %311 : vector<24x32xf32>
    %c384 = arith.constant 384 : index
    %c0_110 = arith.constant 0 : index
    %313 = vector.load %arg2[%c384, %c0_110] : memref<496x128xf32, #tpu.memory_space<vmem>>, vector<32x64xf32>
    %cst_111 = arith.constant dense<0.000000e+00> : vector<24x64xf32>
    %314 = tpu.matmul %312, %313, %cst_111 {dimension_numbers = #tpu.dot_dimension_numbers<[1], [0], [0], [1], [0, 0, 1, 1], [], []>} : vector<24x32xf32>, vector<32x64xf32>, vector<24x64xf32> -> vector<24x64xf32>
    %c486 = arith.constant 486 : index
    %c0_112 = arith.constant 0 : index
    %315 = vector.load %arg2[%c486, %c0_112] : memref<496x128xf32, #tpu.memory_space<vmem>>, vector<1x64xf32>
    %316 = vector.broadcast %315 : vector<1x64xf32> to vector<24x64xf32>
    %317 = arith.addf %314, %316 : vector<24x64xf32>
    %318 = arith.mulf %317, %317 : vector<24x64xf32>
    %319 = arith.mulf %317, %318 : vector<24x64xf32>
    %cst_113 = arith.constant 4.471500e-02 : f32
    %320 = vector.broadcast %cst_113 : f32 to vector<24x64xf32>
    %321 = arith.mulf %320, %319 : vector<24x64xf32>
    %322 = arith.addf %317, %321 : vector<24x64xf32>
    %cst_114 = arith.constant 0.797884583 : f32
    %323 = vector.broadcast %cst_114 : f32 to vector<24x64xf32>
    %324 = arith.mulf %323, %322 : vector<24x64xf32>
    %325 = math.tanh %324 : vector<24x64xf32>
    %cst_115 = arith.constant 1.000000e+00 : f32
    %326 = vector.broadcast %cst_115 : f32 to vector<24x64xf32>
    %327 = arith.addf %326, %325 : vector<24x64xf32>
    %cst_116 = arith.constant 5.000000e-01 : f32
    %328 = vector.broadcast %cst_116 : f32 to vector<24x64xf32>
    %329 = arith.mulf %328, %327 : vector<24x64xf32>
    %330 = arith.mulf %317, %329 : vector<24x64xf32>
    %c416 = arith.constant 416 : index
    %c0_117 = arith.constant 0 : index
    %331 = vector.load %arg2[%c416, %c0_117] : memref<496x128xf32, #tpu.memory_space<vmem>>, vector<64x32xf32>
    %cst_118 = arith.constant dense<0.000000e+00> : vector<24x32xf32>
    %332 = tpu.matmul %330, %331, %cst_118 {dimension_numbers = #tpu.dot_dimension_numbers<[1], [0], [0], [1], [0, 0, 1, 1], [], []>} : vector<24x64xf32>, vector<64x32xf32>, vector<24x32xf32> -> vector<24x32xf32>
    %c487 = arith.constant 487 : index
    %c0_119 = arith.constant 0 : index
    %333 = vector.load %arg2[%c487, %c0_119] : memref<496x128xf32, #tpu.memory_space<vmem>>, vector<1x32xf32>
    %334 = vector.broadcast %333 : vector<1x32xf32> to vector<24x32xf32>
    %335 = arith.addf %332, %334 : vector<24x32xf32>
    %336 = arith.addf %288, %335 : vector<24x32xf32>
    %337 = vector.extract_strided_slice %336 {offsets = [0, 0], sizes = [1, 32], strides = [1, 1]} : vector<24x32xf32> to vector<1x32xf32>
    %c488 = arith.constant 488 : index
    %c0_120 = arith.constant 0 : index
    %338 = vector.load %arg2[%c488, %c0_120] : memref<496x128xf32, #tpu.memory_space<vmem>>, vector<1x32xf32>
    %c489 = arith.constant 489 : index
    %c0_121 = arith.constant 0 : index
    %339 = vector.load %arg2[%c489, %c0_121] : memref<496x128xf32, #tpu.memory_space<vmem>>, vector<1x32xf32>
    %cst_122 = arith.constant dense<0.000000e+00> : vector<1xf32>
    %340 = vector.multi_reduction <add>, %337, %cst_122 [1] : vector<1x32xf32> to vector<1xf32>
    %341 = vector.shape_cast %340 : vector<1xf32> to vector<1x1xf32>
    %cst_123 = arith.constant 3.200000e+01 : f32
    %342 = vector.broadcast %cst_123 : f32 to vector<1x1xf32>
    %343 = arith.divf %341, %342 : vector<1x1xf32>
    %344 = vector.broadcast %343 : vector<1x1xf32> to vector<1x32xf32>
    %345 = arith.subf %337, %344 : vector<1x32xf32>
    %346 = arith.mulf %345, %345 : vector<1x32xf32>
    %cst_124 = arith.constant dense<0.000000e+00> : vector<1xf32>
    %347 = vector.multi_reduction <add>, %346, %cst_124 [1] : vector<1x32xf32> to vector<1xf32>
    %348 = vector.shape_cast %347 : vector<1xf32> to vector<1x1xf32>
    %cst_125 = arith.constant 3.200000e+01 : f32
    %349 = vector.broadcast %cst_125 : f32 to vector<1x1xf32>
    %350 = arith.divf %348, %349 : vector<1x1xf32>
    %351 = vector.broadcast %343 : vector<1x1xf32> to vector<1x32xf32>
    %352 = arith.subf %337, %351 : vector<1x32xf32>
    %cst_126 = arith.constant 9.99999997E-7 : f32
    %353 = vector.broadcast %cst_126 : f32 to vector<1x1xf32>
    %354 = arith.addf %350, %353 : vector<1x1xf32>
    %355 = math.rsqrt %354 : vector<1x1xf32>
    %356 = vector.broadcast %355 : vector<1x1xf32> to vector<1x32xf32>
    %357 = arith.mulf %352, %356 : vector<1x32xf32>
    %358 = arith.mulf %357, %338 : vector<1x32xf32>
    %359 = arith.addf %358, %339 : vector<1x32xf32>
    %c490 = arith.constant 490 : index
    %c0_127 = arith.constant 0 : index
    %360 = vector.load %arg2[%c490, %c0_127] : memref<496x128xf32, #tpu.memory_space<vmem>>, vector<1x32xf32>
    %361 = arith.mulf %359, %360 : vector<1x32xf32>
    %cst_128 = arith.constant dense<0.000000e+00> : vector<1xf32>
    %362 = vector.multi_reduction <add>, %361, %cst_128 [1] : vector<1x32xf32> to vector<1xf32>
    %363 = vector.shape_cast %362 : vector<1xf32> to vector<1x1xf32>
    %c491 = arith.constant 491 : index
    %c0_129 = arith.constant 0 : index
    %364 = vector.load %arg2[%c491, %c0_129] : memref<496x128xf32, #tpu.memory_space<vmem>>, vector<1x1xf32>
    %365 = arith.addf %363, %364 : vector<1x1xf32>
    %366 = vector.shape_cast %365 : vector<1x1xf32> to vector<1x1xf32>
    %367 = vector.broadcast %366 : vector<1x1xf32> to vector<1x128xf32>
    %c0_130 = arith.constant 0 : index
    %c0_131 = arith.constant 0 : index
    %c0_132 = arith.constant 0 : index
    %368 = vector.load %arg3[%c0_130, %c0_131, %c0_132] : memref<1x1x128xf32, #tpu.memory_space<vmem>>, vector<1x1x128xf32>
    %369 = vector.shape_cast %368 : vector<1x1x128xf32> to vector<1x128xf32>
    %370 = vector.shape_cast %367 : vector<1x128xf32> to vector<1x1x128xf32>
    tpu.vector_store %arg3[%c0_130, %c0_131, %c0_132], %370 {strides = array<i32>} : memref<1x1x128xf32, #tpu.memory_space<vmem>>, vector<1x1x128xf32>,
    return
  }
  func.func @transform_0(%arg0: i32) -> (i32, i32) {
    %c0_i32 = arith.constant 0 : i32
    %c0_i32_0 = arith.constant 0 : i32
    return %arg0, %c0_i32 : i32, i32
  }
  func.func @transform_1(%arg0: i32) -> (i32, i32) {
    %c0_i32 = arith.constant 0 : i32
    %c0_i32_0 = arith.constant 0 : i32
    %c0_i32_1 = arith.constant 0 : i32
    return %c0_i32, %c0_i32_0 : i32, i32
  }
  func.func @transform_2(%arg0: i32) -> (i32, i32, i32) {
    %c0_i32 = arith.constant 0 : i32
    %c0_i32_0 = arith.constant 0 : i32
    %c0_i32_1 = arith.constant 0 : i32
    return %arg0, %c0_i32, %c0_i32_0 : i32, i32, i32
  }
  func.func @transform_3(%arg0: i32) -> (i32, i32, i32, i32) {
    %c0_i32 = arith.constant 0 : i32
    %c0_i32_0 = arith.constant 0 : i32
    %c0_i32_1 = arith.constant 0 : i32
    %c0_i32_2 = arith.constant 0 : i32
    return %arg0, %c0_i32, %c0_i32_0, %c0_i32_1 : i32, i32, i32, i32
  }
}

</mosaic_0001>

<llo_original>
// kernel: vit_bbone_forward.1
$region0: #{vit_bbone_forward.1}
  #allocation0 [shape = 'u32[]', space=smem, size = 0x4, offset = 0x4, fixed_abs, tag = 'smem constant byte address 0x4 - core index']
  #allocation1 [shape = 'u32[144,128]{1,0:T(1,128)}', space=vmem, size = 0x12000, scoped, tag = 'internal scratch']
  %s0 = inlined_call_operand.vmem [shape: f32[48,128], index: 0, kind: input, shape index: {}]
  %s1 = inlined_call_operand.vmem [shape: f32[496,128], index: 1, kind: input, shape index: {}]
  %s2 = inlined_call_operand.vmem [shape: f32[2,1,128], index: 2, kind: output, shape index: {0}]
  %s3 = inlined_call_operand.vmem [shape: f32[2,2,24,128], index: 3, kind: output, shape index: {1}]
  %4 = xla_tuple %s2, %s3
  %s5 = sld [smem:[#allocation0]]
  $region49: #{vit_bbone_forward.1} parent=0
    _
  %s7 = ssub.s32 1, %s5
  %s8 = scalar_select 0, %s7, %s5
  loop: start=0, step=1, limit=4
  $region2: #{vit_bbone_forward.1} parent=0 // loop_pre_header
    _
  $region3: #{vit_bbone_forward.1} parent=0 // loop_header
    %s10 = sphi 0, %s14
    %p11 = scmp.ge.s32.totalorder %s10, 4
    %s20 = sphi 0, %s22
    %s23 = sphi 0, %s20
    %s24 = sphi 0, %s23
    %s40 = sphi 0, %s24
    %s44 = sphi 0, %s44
    %s46 = sphi 0, %s44
    %s47 = sphi 0, %s46
    %s61 = sphi 0, %s47
    %s67 = sphi 0, %s69
    %s70 = sphi 0, %s67
    %s71 = sphi 0, %s70
    %s87 = sphi 0, %s71
    %s93 = sphi 0, %s95
    %s96 = sphi 0, %s93
    %s97 = sphi 0, %s96
    %s113 = sphi 0, %s97
  $region4: #{vit_bbone_forward.1} parent=0 // loop_header_branch
    %13 = sbr.rel (%p11) target = $region8
  $region5: #{vit_bbone_forward.1} parent=0 // loop_body
    %s15 = ssub.s32 %s10, 1
    %s16 = ssub.s32 %s10, 2
    %s17 = sadd.s32 %s10, 1
    %s18 = ssub.s32 %s10, %s17
    %p19 = scmp.eq.s32.totalorder %s18, 0
    %s21 = sadd.s32 %s20, 1
    %s22 = scalar_select %p19, %s20, %s21
    %p25 = pneg %p19
    %p26 = scmp.eq.s32.totalorder %s10, 1
    %p27 = por %p25, %p26
    %p28 = scmp.ne.s32.totalorder %s20, %s23
    %p29 = scmp.eq.s32.totalorder %s10, 0
    %p30 = por %p28, %p29
    %p31 = scmp.ne.s32.totalorder %s20, %s23
    %p32 = scmp.eq.s32.totalorder %s15, 1
    %p33 = por %p31, %p32
    %p34 = scmp.ne.s32.totalorder %s23, %s24
    %p35 = scmp.eq.s32.totalorder %s15, 0
    %p36 = por %p34, %p35
    %p37 = scmp.ne.s32.totalorder %s23, %s24
    %p38 = scmp.eq.s32.totalorder %s16, 1
    %p39 = por %p37, %p38
    %p41 = scmp.ne.s32.totalorder %s24, %s40
    %p42 = scmp.eq.s32.totalorder %s16, 0
    %p43 = por %p41, %p42
    %s45 = sadd.s32 %s44, 1
    %p48 = scmp.eq.s32.totalorder %s10, 1
    %p49 = scmp.ne.s32.totalorder %s44, %s46
    %p50 = scmp.eq.s32.totalorder %s10, 0
    %p51 = por %p49, %p50
    %p52 = scmp.ne.s32.totalorder %s44, %s46
    %p53 = scmp.eq.s32.totalorder %s15, 1
    %p54 = por %p52, %p53
    %p55 = scmp.ne.s32.totalorder %s46, %s47
    %p56 = scmp.eq.s32.totalorder %s15, 0
    %p57 = por %p55, %p56
    %p58 = scmp.ne.s32.totalorder %s46, %s47
    %p59 = scmp.eq.s32.totalorder %s16, 1
    %p60 = por %p58, %p59
    %p62 = scmp.ne.s32.totalorder %s47, %s61
    %p63 = scmp.eq.s32.totalorder %s16, 0
    %p64 = por %p62, %p63
    %s65 = ssub.s32 %s10, %s17
    %p66 = scmp.eq.s32.totalorder %s65, 0
    %s68 = sadd.s32 %s67, 1
    %s69 = scalar_select %p66, %s67, %s68
    %p72 = pneg %p66
    %p73 = scmp.eq.s32.totalorder %s10, 1
    %p74 = por %p72, %p73
    %p75 = scmp.ne.s32.totalorder %s67, %s70
    %p76 = scmp.eq.s32.totalorder %s10, 0
    %p77 = por %p75, %p76
    %p78 = scmp.ne.s32.totalorder %s67, %s70
    %p79 = scmp.eq.s32.totalorder %s15, 1
    %p80 = por %p78, %p79
    %p81 = scmp.ne.s32.totalorder %s70, %s71
    %p82 = scmp.eq.s32.totalorder %s15, 0
    %p83 = por %p81, %p82
    %p84 = scmp.ne.s32.totalorder %s70, %s71
    %p85 = scmp.eq.s32.totalorder %s16, 1
    %p86 = por %p84, %p85
    %p88 = scmp.ne.s32.totalorder %s71, %s87
    %p89 = scmp.eq.s32.totalorder %s16, 0
    %p90 = por %p88, %p89
    %s91 = ssub.s32 %s10, %s17
    %p92 = scmp.eq.s32.totalorder %s91, 0
    %s94 = sadd.s32 %s93, 1
    %s95 = scalar_select %p92, %s93, %s94
    %p98 = pneg %p92
    %p99 = scmp.eq.s32.totalorder %s10, 1
    %p100 = por %p98, %p99
    %p101 = scmp.ne.s32.totalorder %s93, %s96
    %p102 = scmp.eq.s32.totalorder %s10, 0
    %p103 = por %p101, %p102
    %p104 = scmp.ne.s32.totalorder %s93, %s96
    %p105 = scmp.eq.s32.totalorder %s15, 1
    %p106 = por %p104, %p105
    %p107 = scmp.ne.s32.totalorder %s96, %s97
    %p108 = scmp.eq.s32.totalorder %s15, 0
    %p109 = por %p107, %p108
    %p110 = scmp.ne.s32.totalorder %s96, %s97
    %p111 = scmp.eq.s32.totalorder %s16, 1
    %p112 = por %p110, %p111
    %p114 = scmp.ne.s32.totalorder %s97, %s113
    %p115 = scmp.eq.s32.totalorder %s16, 0
    %p116 = por %p114, %p115
    %p117 = scmp.le.s32.totalorder 1, %s10
    %p118 = scmp.lt.s32.totalorder %s10, 3
    %p119 = pnand %p117, %p118
    %p120 = pneg %p119
    // Predicated region
    $region9: #{vit_bbone_forward.1} parent=5 // pred_check
      _
    $region10: #{vit_bbone_forward.1} parent=5 // pred_check_branch
      %122 = sbr.rel (%p119) target = $region12
    $region11: #{vit_bbone_forward.1} parent=5 // pred_region
      %s123 = ssub.s32 %s10, 1
      // Predicated region
      $region13: #{vit_bbone_forward.1} parent=11 // pred_check
        %p124 = pneg %p57
      $region14: #{vit_bbone_forward.1} parent=11 // pred_check_branch
        %126 = sbr.rel (%p124) target = $region16
      $region15: #{vit_bbone_forward.1} parent=11 // pred_region
        _
      $region16: #{vit_bbone_forward.1} parent=11 // pred_fallthru
        _
    $region12: #{vit_bbone_forward.1} parent=5 // pred_fallthru
      _
    %p127 = scmp.lt.s32.totalorder %s10, 2
    // Predicated region
    $region17: #{vit_bbone_forward.1} parent=5 // pred_check
      %p128 = pneg %p127
    $region18: #{vit_bbone_forward.1} parent=5 // pred_check_branch
      %130 = sbr.rel (%p128) target = $region20
    $region19: #{vit_bbone_forward.1} parent=5 // pred_region
      // Predicated region
      $region21: #{vit_bbone_forward.1} parent=19 // pred_check
        %p131 = pneg %p30
      $region22: #{vit_bbone_forward.1} parent=19 // pred_check_branch
        %133 = sbr.rel (%p131) target = $region24
      $region23: #{vit_bbone_forward.1} parent=19 // pred_region
        %s134 = smul.u32 3, %s10
        %p135 = scmp.lt.s32.totalorder %s134, 5
        %s136 = scalar_select %p135, %s134, 5
        %s137 = smul.addr %s136, 8
        %s138 = scalar_lea.vmem %s0, %s137
        %s139 = smul.u32 3, %s10
      $region24: #{vit_bbone_forward.1} parent=19 // pred_fallthru
        _
    $region20: #{vit_bbone_forward.1} parent=5 // pred_fallthru
      _
    %p140 = scmp.le.s32.totalorder 1, %s10
    %p141 = scmp.lt.s32.totalorder %s10, 3
    %p142 = pnand %p140, %p141
    %p143 = pneg %p142
    // Predicated region
    $region25: #{vit_bbone_forward.1} parent=5 // pred_check
      _
    $region26: #{vit_bbone_forward.1} parent=5 // pred_check_branch
      %145 = sbr.rel (%p142) target = $region28
    $region27: #{vit_bbone_forward.1} parent=5 // pred_region
      %s146 = ssub.s32 %s10, 1
      %s147 = smul.u32 3, %s15
      %p148 = scmp.lt.s32.totalorder %s147, 5
      %s149 = scalar_select %p148, %s147, 5
      %s150 = smul.addr %s149, 8
      %s151 = scalar_lea.vmem %s0, %s150
      %p152 = pneg %p36
      %p153 = pneg %p33
      %p154 = pneg %p57
      %p155 = pneg %p54
      %p156 = pneg %p83
      %p157 = pneg %p80
      %p158 = scmp.lt.s32.totalorder %s15, 1
      %s159 = scalar_select %p158, %s15, 1
      %s160 = scalar_lea.vmem %s2, %s159
      %p161 = pneg %p109
      %p162 = pneg %p106
      %p163 = scmp.lt.s32.totalorder %s15, 1
      %s164 = scalar_select %p163, %s15, 1
      %s165 = smul.addr %s164, 6
      %s166 = smul.addr %s165, 8
      %s167 = scalar_lea.vmem %s3, %s166
      %s168 = smul.u32 3, %s15
      %p169 = scmp.lt.s32.totalorder %s168, 5
      %s170 = scalar_select %p169, %s168, 5
      %s171 = smul.addr %s170, 8
      %s172 = scalar_lea.vmem %s0, %s171
      %s173 = smul.u32 3, %s15
      %p174 = scmp.lt.s32.totalorder %s15, 1
      %s175 = scalar_select %p174, %s15, 1
      %s176 = scalar_lea.vmem %s2, %s175
      %p177 = scmp.lt.s32.totalorder %s15, 1
      %s178 = scalar_select %p177, %s15, 1
      %s179 = smul.addr %s178, 6
      %s180 = smul.addr %s179, 8
      %s181 = scalar_lea.vmem %s3, %s180
      %v182 = vld [vmem:[%s1] sm:$0xff]
      %v183 = vld [vmem:[%s1 + $0x8] sm:$0xff]
      %v184 = vld [vmem:[%s1 + $0x10] sm:$0xff]
      %v185 = vld [vmem:[%s1 + $0x18] sm:$0xff]
      %v186 = vld [vmem:[%s1 + $0x20] sm:$0xff]
      %v187 = vld [vmem:[%s1 + $0x28] sm:$0xff]
      %v188 = vld [vmem:[%s1 + $0x30] sm:$0xff]
      %v189 = vld [vmem:[%s1 + $0x38] sm:$0xff]
      %v190 = vld [vmem:[%s1 + $0x40] sm:$0xff]
      %v191 = vld [vmem:[%s1 + $0x48] sm:$0xff]
      %v192 = vld [vmem:[%s1 + $0x50] sm:$0xff]
      %v193 = vld [vmem:[%s1 + $0x58] sm:$0xff]
      %v194 = vld [vmem:[%s1 + $0x60] sm:$0xff]
      %v195 = vld [vmem:[%s1 + $0x68] sm:$0xff]
      %v196 = vld [vmem:[%s1 + $0x70] sm:$0xff]
      %v197 = vld [vmem:[%s1 + $0x78] sm:$0xff]
      %v198 = vld [vmem:[%s1 + $0x80] sm:$0xff]
      %v199 = vld [vmem:[%s1 + $0x88] sm:$0xff]
      %v200 = vld [vmem:[%s1 + $0x90] sm:$0xff]
      %v201 = vld [vmem:[%s172] sm:$0xff]
      %v202 = vld [vmem:[%s172 + $0x8] sm:$0xff]
      %v203 = vld [vmem:[%s172 + $0x10] sm:$0xff]
      %204 = vmatprep.subr.mxu0 0.0
      %205 = vmatpush1.msra.mxu0 %v197
      %206 = vmatprep.subr.mxu0 0.0
      %207 = vmatpush1.msra.mxu0 %v196
      %208 = vmatprep.subr.mxu0 0.0
      %209 = vmatpush1.msra.mxu0 %v195
      %210 = vmatprep.subr.mxu0 0.0
      %211 = vmatpush1.msra.mxu0 %v194
      %212 = vmatprep.subr.mxu0 0.0
      %213 = vmatpush1.msra.mxu0 %v193
      %214 = vmatprep.subr.mxu0 0.0
      %215 = vmatpush1.msra.mxu0 %v192
      %216 = vmatprep.subr.mxu0 0.0
      %217 = vmatpush1.msra.mxu0 %v191
      %218 = vmatprep.subr.mxu0 0.0
      %219 = vmatpush1.msra.mxu0 %v190
      %220 = vmatprep.subr.mxu0 0.0
      %221 = vmatpush1.msra.mxu0 %v189
      %222 = vmatprep.subr.mxu0 0.0
      %223 = vmatpush1.msra.mxu0 %v188
      %224 = vmatprep.subr.mxu0 0.0
      %225 = vmatpush1.msra.mxu0 %v187
      %226 = vmatprep.subr.mxu0 0.0
      %227 = vmatpush1.msra.mxu0 %v186
      %228 = vmatprep.subr.mxu0 0.0
      %229 = vmatpush1.msra.mxu0 %v185
      %230 = vmatprep.subr.mxu0 0.0
      %231 = vmatpush1.msra.mxu0 %v184
      %232 = vmatprep.subr.mxu0 0.0
      %233 = vmatpush1.msra.mxu0 %v183
      %234 = vmatprep.subr.mxu0 0.0
      %235 = vmatpush1.msra.mxu0 %v182
      %236 = vmatprep.subr.mxu0 0.0
      %237 = vmatpush2.msra.mxu0 0.0
      %238 = vmatprep.subr.mxu0 0.0
      %239 = vmatpush2.msra.mxu0 0.0
      %240 = vmatprep.subr.mxu0 0.0
      %241 = vmatpush2.msra.mxu0 0.0
      %242 = vmatprep.subr.mxu0 0.0
      %243 = vmatpush2.msra.mxu0 0.0
      %244 = vmatprep.subr.mxu0 0.0
      %245 = vmatpush2.msra.mxu0 0.0
      %246 = vmatprep.subr.mxu0 0.0
      %247 = vmatpush2.msra.mxu0 0.0
      %248 = vmatprep.subr.mxu0 0.0
      %249 = vmatpush2.msra.mxu0 0.0
      %250 = vmatprep.subr.mxu0 0.0
      %251 = vmatpush2.msra.mxu0 0.0
      %252 = vmatprep.subr.mxu0 0.0
      %253 = vmatpush2.msra.mxu0 0.0
      %254 = vmatprep.subr.mxu0 0.0
      %255 = vmatpush2.msra.mxu0 0.0
      %256 = vmatprep.subr.mxu0 0.0
      %257 = vmatpush2.msra.mxu0 0.0
      %258 = vmatprep.subr.mxu0 0.0
      %259 = vmatpush2.msra.mxu0 0.0
      %260 = vmatprep.subr.mxu0 0.0
      %261 = vmatpush2.msra.mxu0 0.0
      %262 = vmatprep.subr.mxu0 0.0
      %263 = vmatpush2.msra.mxu0 0.0
      %264 = vmatprep.subr.mxu0 0.0
      %265 = vmatpush2.msra.mxu0 0.0
      %266 = vmatprep.subr.mxu0 0.0
      %267 = vmatpush2.msra.mxu0 0.0
      %268 = vmatprep.mubr.f32.mxu0 0.0
      %269 = vmatmul.mubr.f32.gmra.mxu0 %v201
      %v270 = vpop.f32.mrf.mxu0
      %v271 = vadd.f32 %v198, %v270
      %v272 = vpop.f32.mrf.mxu0
      %273 = vmatprep.mubr.f32.mxu0 0.0
      %274 = vmatmul.mubr.f32.gmra.mxu0 %v202
      %v275 = vpop.f32.mrf.mxu0
      %v276 = vadd.f32 %v199, %v275
      %v277 = vpop.f32.mrf.mxu0
      %278 = vmatprep.mubr.f32.mxu0 0.0
      %279 = vmatmul.mubr.f32.gmra.mxu0 %v203
      %v280 = vpop.f32.mrf.mxu0
      %v281 = vadd.f32 %v200, %v280
      %v282 = vpop.f32.mrf.mxu0
      %283 = vdwg.mxu0
      %v284 = vlaneseq
      %v285 = vand.u32 %v284, 127
      %vm286 = vcmp.lt.s32.totalorder %v285, 17
      %v287 = vld [vmem:[%s1 + $0x13a] sm:$0x1]
      %v288 = vld [vmem:[%s1 + $0x13b] sm:$0x1]
      %vm289 = vcmask 261120
      %v290 = vsel %vm289, %v271, 0.0
      %291 = vadd.xlane.f32.xlu0 %v290
      %v292 = vpop.xlane.xlu0 %291
      %v293 = vsel %vm289, %v276, 0.0
      %294 = vadd.xlane.f32.xlu0 %v293
      %v295 = vpop.xlane.xlu0 %294
      %v296 = vsel %vm289, %v281, 0.0
      %297 = vadd.xlane.f32.xlu0 %v296
      %v298 = vpop.xlane.xlu0 %297
      %v299 = vrcp.pop 32.0
      %v300 = vmul.f32 %v292, %v299
      %v301 = vmul.f32 %v295, %v299
      %v302 = vmul.f32 %v298, %v299
      %v303 = vsub.f32 %v271, %v300
      %v304 = vsub.f32 %v276, %v301
      %v305 = vsub.f32 %v281, %v302
      %v306 = vmul.f32 %v303, %v303
      %v307 = vmul.f32 %v304, %v304
      %v308 = vmul.f32 %v305, %v305
      %v309 = vsel %vm289, %v306, 0.0
      %310 = vadd.xlane.f32.xlu0 %v309
      %v311 = vpop.xlane.xlu0 %310
      %v312 = vsel %vm289, %v307, 0.0
      %313 = vadd.xlane.f32.xlu0 %v312
      %v314 = vpop.xlane.xlu0 %313
      %v315 = vsel %vm289, %v308, 0.0
      %316 = vadd.xlane.f32.xlu0 %v315
      %v317 = vpop.xlane.xlu0 %316
      %v318 = vmul.f32 %v311, %v299
      %v319 = vmul.f32 %v314, %v299
      %v320 = vmul.f32 %v317, %v299
      %v321 = vadd.f32 %v318, 1e-06
      %v322 = vadd.f32 %v319, 1e-06
      %v323 = vadd.f32 %v320, 1e-06
      %v324 = vrsqrt.pop %v321
      %v325 = vrsqrt.pop %v322
      %v326 = vrsqrt.pop %v323
      %v327 = vmul.f32 %v303, %v324
      %v328 = vmul.f32 %v304, %v325
      %v329 = vmul.f32 %v305, %v326
      %v330 = vlaneseq
      %v331 = vshrl.u32 %v330, 7
      %v332 = vsub.s32 0, %v331
      %v333 = vrot.slane %v287, %v332
      %v334 = vmul.f32 %v327, %v333
      %v335 = vmul.f32 %v328, %v333
      %v336 = vmul.f32 %v329, %v333
      %v337 = vlaneseq
      %v338 = vshrl.u32 %v337, 7
      %v339 = vsub.s32 0, %v338
      %v340 = vrot.slane %v288, %v339
      %v341 = vadd.f32 %v334, %v340
      %v342 = vadd.f32 %v335, %v340
      %v343 = vadd.f32 %v336, %v340
      %v344 = vld [vmem:[%s1 + $0x98] sm:$0xff]
      %v345 = vld [vmem:[%s1 + $0xa0] sm:$0xff]
      %v346 = vld [vmem:[%s1 + $0xa8] sm:$0xff]
      %v347 = vld [vmem:[%s1 + $0xb0] sm:$0xff]
      %v348 = vld [vmem:[%s1 + $0x138] sm:$0x1]
      %v349 = vlaneseq
      %v350 = vshrl.u32 %v349, 7
      %v351 = vsub.s32 0, %v350
      %v352 = vrot.slane %v348, %v351
      %v354 = vsel %vm289, %v341, 0
      %v357 = vsel %vm289, %v342, 0
      %v360 = vsel %vm289, %v343, 0
      %362 = vmatprep.subr.mxu0 0.0
      %363 = vmatpush1.msra.mxu0 0.0
      %364 = vmatprep.subr.mxu0 0.0
      %365 = vmatpush1.msra.mxu0 0.0
      %366 = vmatprep.subr.mxu0 0.0
      %367 = vmatpush1.msra.mxu0 0.0
      %368 = vmatprep.subr.mxu0 0.0
      %369 = vmatpush1.msra.mxu0 0.0
      %370 = vmatprep.subr.mxu0 0.0
      %371 = vmatpush1.msra.mxu0 0.0
      %372 = vmatprep.subr.mxu0 0.0
      %373 = vmatpush1.msra.mxu0 0.0
      %374 = vmatprep.subr.mxu0 0.0
      %375 = vmatpush1.msra.mxu0 0.0
      %376 = vmatprep.subr.mxu0 0.0
      %377 = vmatpush1.msra.mxu0 0.0
      %378 = vmatprep.subr.mxu0 0.0
      %379 = vmatpush1.msra.mxu0 0.0
      %380 = vmatprep.subr.mxu0 0.0
      %381 = vmatpush1.msra.mxu0 0.0
      %382 = vmatprep.subr.mxu0 0.0
      %383 = vmatpush1.msra.mxu0 0.0
      %384 = vmatprep.subr.mxu0 0.0
      %385 = vmatpush1.msra.mxu0 0.0
      %386 = vmatprep.subr.mxu0 0.0
      %387 = vmatpush1.msra.mxu0 %v347
      %388 = vmatprep.subr.mxu0 0.0
      %389 = vmatpush1.msra.mxu0 %v346
      %390 = vmatprep.subr.mxu0 0.0
      %391 = vmatpush1.msra.mxu0 %v345
      %392 = vmatprep.subr.mxu0 0.0
      %393 = vmatpush1.msra.mxu0 %v344
      %394 = vmatprep.subr.mxu0 0.0
      %395 = vmatpush2.msra.mxu0 0.0
      %396 = vmatprep.subr.mxu0 0.0
      %397 = vmatpush2.msra.mxu0 0.0
      %398 = vmatprep.subr.mxu0 0.0
      %399 = vmatpush2.msra.mxu0 0.0
      %400 = vmatprep.subr.mxu0 0.0
      %401 = vmatpush2.msra.mxu0 0.0
      %402 = vmatprep.subr.mxu0 0.0
      %403 = vmatpush2.msra.mxu0 0.0
      %404 = vmatprep.subr.mxu0 0.0
      %405 = vmatpush2.msra.mxu0 0.0
      %406 = vmatprep.subr.mxu0 0.0
      %407 = vmatpush2.msra.mxu0 0.0
      %408 = vmatprep.subr.mxu0 0.0
      %409 = vmatpush2.msra.mxu0 0.0
      %410 = vmatprep.subr.mxu0 0.0
      %411 = vmatpush2.msra.mxu0 0.0
      %412 = vmatprep.subr.mxu0 0.0
      %413 = vmatpush2.msra.mxu0 0.0
      %414 = vmatprep.subr.mxu0 0.0
      %415 = vmatpush2.msra.mxu0 0.0
      %416 = vmatprep.subr.mxu0 0.0
      %417 = vmatpush2.msra.mxu0 0.0
      %418 = vmatprep.subr.mxu0 0.0
      %419 = vmatpush2.msra.mxu0 0.0
      %420 = vmatprep.subr.mxu0 0.0
      %421 = vmatpush2.msra.mxu0 0.0
      %422 = vmatprep.subr.mxu0 0.0
      %423 = vmatpush2.msra.mxu0 0.0
      %424 = vmatprep.subr.mxu0 0.0
      %425 = vmatpush2.msra.mxu0 0.0
      %426 = vmatprep.mubr.f32.mxu0 0.0
      %427 = vmatmul.mubr.f32.gmra.mxu0 %v354
      %v428 = vpop.f32.mrf.mxu0
      %v429 = vadd.f32 %v352, %v428
      %v430 = vpop.f32.mrf.mxu0
      %431 = vmatprep.mubr.f32.mxu0 0.0
      %432 = vmatmul.mubr.f32.gmra.mxu0 %v357
      %v433 = vpop.f32.mrf.mxu0
      %v434 = vadd.f32 %v352, %v433
      %v435 = vpop.f32.mrf.mxu0
      %436 = vmatprep.mubr.f32.mxu0 0.0
      %437 = vmatmul.mubr.f32.gmra.mxu0 %v360
      %v438 = vpop.f32.mrf.mxu0
      %v439 = vadd.f32 %v352, %v438
      %v440 = vpop.f32.mrf.mxu0
      %441 = vdwg.mxu0
      %445 = vrot.lane.b32.xlu0 %v429, 96
      %v446 = vpop.permute.xlu0 %445
      %447 = vrot.lane.b32.xlu0 %v434, 96
      %v448 = vpop.permute.xlu0 %447
      %449 = vrot.lane.b32.xlu0 %v439, 96
      %v450 = vpop.permute.xlu0 %449
      %vm451 = vcmask 64512
      %v452 = vsel %vm451, %v429, 0
      %v454 = vsel %vm451, %v434, 0
      %v456 = vsel %vm451, %v439, 0
      %v458 = vsel %vm451, %v446, 0
      %v460 = vsel %vm451, %v448, 0
      %v462 = vsel %vm451, %v450, 0
      %464 = vmatprep.subr.mxu0 0.0
      %465 = vmatpush1.xpose.msra.mxu0 0.0
      %466 = vmatprep.subr.mxu0 0.0
      %467 = vmatpush1.xpose.msra.mxu0 0.0
      %468 = vmatprep.subr.mxu0 0.0
      %469 = vmatpush1.xpose.msra.mxu0 0.0
      %470 = vmatprep.subr.mxu0 0.0
      %471 = vmatpush1.xpose.msra.mxu0 0.0
      %472 = vmatprep.subr.mxu0 0.0
      %473 = vmatpush1.xpose.msra.mxu0 0.0
      %474 = vmatprep.subr.mxu0 0.0
      %475 = vmatpush1.xpose.msra.mxu0 0.0
      %476 = vmatprep.subr.mxu0 0.0
      %477 = vmatpush1.xpose.msra.mxu0 0.0
      %478 = vmatprep.subr.mxu0 0.0
      %479 = vmatpush1.xpose.msra.mxu0 0.0
      %480 = vmatprep.subr.mxu0 0.0
      %481 = vmatpush1.xpose.msra.mxu0 0.0
      %482 = vmatprep.subr.mxu0 0.0
      %483 = vmatpush1.xpose.msra.mxu0 0.0
      %484 = vmatprep.subr.mxu0 0.0
      %485 = vmatpush1.xpose.msra.mxu0 0.0
      %486 = vmatprep.subr.mxu0 0.0
      %487 = vmatpush1.xpose.msra.mxu0 0.0
      %488 = vmatprep.subr.mxu0 0.0
      %489 = vmatpush1.xpose.msra.mxu0 0.0
      %490 = vmatprep.subr.mxu0 0.0
      %491 = vmatpush1.xpose.msra.mxu0 %v462
      %492 = vmatprep.subr.mxu0 0.0
      %493 = vmatpush1.xpose.msra.mxu0 %v460
      %494 = vmatprep.subr.mxu0 0.0
      %495 = vmatpush1.xpose.msra.mxu0 %v458
      %496 = vmatprep.subr.mxu0 0.0
      %497 = vmatpush2.xpose.msra.mxu0 0.0
      %498 = vmatprep.subr.mxu0 0.0
      %499 = vmatpush2.xpose.msra.mxu0 0.0
      %500 = vmatprep.subr.mxu0 0.0
      %501 = vmatpush2.xpose.msra.mxu0 0.0
      %502 = vmatprep.subr.mxu0 0.0
      %503 = vmatpush2.xpose.msra.mxu0 0.0
      %504 = vmatprep.subr.mxu0 0.0
      %505 = vmatpush2.xpose.msra.mxu0 0.0
      %506 = vmatprep.subr.mxu0 0.0
      %507 = vmatpush2.xpose.msra.mxu0 0.0
      %508 = vmatprep.subr.mxu0 0.0
      %509 = vmatpush2.xpose.msra.mxu0 0.0
      %510 = vmatprep.subr.mxu0 0.0
      %511 = vmatpush2.xpose.msra.mxu0 0.0
      %512 = vmatprep.subr.mxu0 0.0
      %513 = vmatpush2.xpose.msra.mxu0 0.0
      %514 = vmatprep.subr.mxu0 0.0
      %515 = vmatpush2.xpose.msra.mxu0 0.0
      %516 = vmatprep.subr.mxu0 0.0
      %517 = vmatpush2.xpose.msra.mxu0 0.0
      %518 = vmatprep.subr.mxu0 0.0
      %519 = vmatpush2.xpose.msra.mxu0 0.0
      %520 = vmatprep.subr.mxu0 0.0
      %521 = vmatpush2.xpose.msra.mxu0 0.0
      %522 = vmatprep.subr.mxu0 0.0
      %523 = vmatpush2.xpose.msra.mxu0 0.0
      %524 = vmatprep.subr.mxu0 0.0
      %525 = vmatpush2.xpose.msra.mxu0 0.0
      %526 = vmatprep.subr.mxu0 0.0
      %527 = vmatpush2.xpose.msra.mxu0 0.0
      %528 = vmatprep.mubr.f32.mxu0 0.0
      %529 = vmatmul.mubr.f32.gmra.mxu0 %v452
      %v530 = vpop.f32.mrf.mxu0
      %v531 = vadd.f32 0.0, %v530
      %v532 = vpop.f32.mrf.mxu0
      %533 = vmatprep.mubr.f32.mxu0 0.0
      %534 = vmatmul.mubr.f32.gmra.mxu0 %v454
      %v535 = vpop.f32.mrf.mxu0
      %v536 = vadd.f32 0.0, %v535
      %v537 = vpop.f32.mrf.mxu0
      %538 = vmatprep.mubr.f32.mxu0 0.0
      %539 = vmatmul.mubr.f32.gmra.mxu0 %v456
      %v540 = vpop.f32.mrf.mxu0
      %v541 = vadd.f32 0.0, %v540
      %v542 = vpop.f32.mrf.mxu0
      %543 = vdwg.mxu0
      %v544 = vmul.f32 %v531, 0.35355338
      %v545 = vmul.f32 %v536, 0.35355338
      %v546 = vmul.f32 %v541, 0.35355338
      %v547 = vsel %vm286, %v544, -1e+30
      %v548 = vsel %vm286, %v545, -1e+30
      %v549 = vsel %vm286, %v546, -1e+30
      %vm550 = vcmask 195584
      %v551 = vsel %vm550, %v547, -inf
      %552 = vmax.xlane.f32.xlu0 %v551
      %v553 = vpop.xlane.xlu0 %552
      %v554 = vsel %vm550, %v548, -inf
      %555 = vmax.xlane.f32.xlu0 %v554
      %v556 = vpop.xlane.xlu0 %555
      %v557 = vsel %vm550, %v549, -inf
      %558 = vmax.xlane.f32.xlu0 %v557
      %v559 = vpop.xlane.xlu0 %558
      %v560 = vsub.f32 %v547, %v553
      %v561 = vsub.f32 %v548, %v556
      %v562 = vsub.f32 %v549, %v559
      %v563 = vmul.f32 %v560, 1.442695
      %v564 = vpow.pop %v563
      %v565 = vmul.f32 %v561, 1.442695
      %v566 = vpow.pop %v565
      %v567 = vmul.f32 %v562, 1.442695
      %v568 = vpow.pop %v567
      %v569 = vsel %vm550, %v564, 0.0
      %570 = vadd.xlane.f32.xlu0 %v569
      %v571 = vpop.xlane.xlu0 %570
      %v572 = vsel %vm550, %v566, 0.0
      %573 = vadd.xlane.f32.xlu0 %v572
      %v574 = vpop.xlane.xlu0 %573
      %v575 = vsel %vm550, %v568, 0.0
      %576 = vadd.xlane.f32.xlu0 %v575
      %v577 = vpop.xlane.xlu0 %576
      %v578 = vrcp.pop %v571
      %v579 = vrcp.pop %v574
      %v580 = vrcp.pop %v577
      %v581 = vmul.f32 %v564, %v578
      %v582 = vmul.f32 %v566, %v579
      %v583 = vmul.f32 %v568, %v580
      %584 = vrot.lane.b32.xlu0 %v429, 64
      %v585 = vpop.permute.xlu0 %584
      %586 = vrot.lane.b32.xlu0 %v434, 64
      %v587 = vpop.permute.xlu0 %586
      %588 = vrot.lane.b32.xlu0 %v439, 64
      %v589 = vpop.permute.xlu0 %588
      %v594 = vsel %vm550, %v581, 0
      %v597 = vsel %vm550, %v582, 0
      %v600 = vsel %vm550, %v583, 0
      %602 = vmatprep.subr.mxu0 0.0
      %603 = vmatpush1.msra.mxu0 0.0
      %604 = vmatprep.subr.mxu0 0.0
      %605 = vmatpush1.msra.mxu0 0.0
      %606 = vmatprep.subr.mxu0 0.0
      %607 = vmatpush1.msra.mxu0 0.0
      %608 = vmatprep.subr.mxu0 0.0
      %609 = vmatpush1.msra.mxu0 0.0
      %610 = vmatprep.subr.mxu0 0.0
      %611 = vmatpush1.msra.mxu0 0.0
      %612 = vmatprep.subr.mxu0 0.0
      %613 = vmatpush1.msra.mxu0 0.0
      %614 = vmatprep.subr.mxu0 0.0
      %615 = vmatpush1.msra.mxu0 0.0
      %616 = vmatprep.subr.mxu0 0.0
      %617 = vmatpush1.msra.mxu0 0.0
      %618 = vmatprep.subr.mxu0 0.0
      %619 = vmatpush1.msra.mxu0 0.0
      %620 = vmatprep.subr.mxu0 0.0
      %621 = vmatpush1.msra.mxu0 0.0
      %622 = vmatprep.subr.mxu0 0.0
      %623 = vmatpush1.msra.mxu0 0.0
      %624 = vmatprep.subr.mxu0 0.0
      %625 = vmatpush1.msra.mxu0 0.0
      %626 = vmatprep.subr.mxu0 0.0
      %627 = vmatpush1.msra.mxu0 0.0
      %628 = vmatprep.subr.mxu0 0.0
      %629 = vmatpush1.msra.mxu0 %v589
      %630 = vmatprep.subr.mxu0 0.0
      %631 = vmatpush1.msra.mxu0 %v587
      %632 = vmatprep.subr.mxu0 0.0
      %633 = vmatpush1.msra.mxu0 %v585
      %634 = vmatprep.subr.mxu0 0.0
      %635 = vmatpush2.msra.mxu0 0.0
      %636 = vmatprep.subr.mxu0 0.0
      %637 = vmatpush2.msra.mxu0 0.0
      %638 = vmatprep.subr.mxu0 0.0
      %639 = vmatpush2.msra.mxu0 0.0
      %640 = vmatprep.subr.mxu0 0.0
      %641 = vmatpush2.msra.mxu0 0.0
      %642 = vmatprep.subr.mxu0 0.0
      %643 = vmatpush2.msra.mxu0 0.0
      %644 = vmatprep.subr.mxu0 0.0
      %645 = vmatpush2.msra.mxu0 0.0
      %646 = vmatprep.subr.mxu0 0.0
      %647 = vmatpush2.msra.mxu0 0.0
      %648 = vmatprep.subr.mxu0 0.0
      %649 = vmatpush2.msra.mxu0 0.0
      %650 = vmatprep.subr.mxu0 0.0
      %651 = vmatpush2.msra.mxu0 0.0
      %652 = vmatprep.subr.mxu0 0.0
      %653 = vmatpush2.msra.mxu0 0.0
      %654 = vmatprep.subr.mxu0 0.0
      %655 = vmatpush2.msra.mxu0 0.0
      %656 = vmatprep.subr.mxu0 0.0
      %657 = vmatpush2.msra.mxu0 0.0
      %658 = vmatprep.subr.mxu0 0.0
      %659 = vmatpush2.msra.mxu0 0.0
      %660 = vmatprep.subr.mxu0 0.0
      %661 = vmatpush2.msra.mxu0 0.0
      %662 = vmatprep.subr.mxu0 0.0
      %663 = vmatpush2.msra.mxu0 0.0
      %664 = vmatprep.subr.mxu0 0.0
      %665 = vmatpush2.msra.mxu0 0.0
      %666 = vmatprep.mubr.f32.mxu0 0.0
      %667 = vmatmul.mubr.f32.gmra.mxu0 %v594
      %v668 = vpop.f32.mrf.mxu0
      %v669 = vadd.f32 0.0, %v668
      %v670 = vpop.f32.mrf.mxu0
      %671 = vmatprep.mubr.f32.mxu0 0.0
      %672 = vmatmul.mubr.f32.gmra.mxu0 %v597
      %v673 = vpop.f32.mrf.mxu0
      %v674 = vadd.f32 0.0, %v673
      %v675 = vpop.f32.mrf.mxu0
      %676 = vmatprep.mubr.f32.mxu0 0.0
      %677 = vmatmul.mubr.f32.gmra.mxu0 %v600
      %v678 = vpop.f32.mrf.mxu0
      %v679 = vadd.f32 0.0, %v678
      %v680 = vpop.f32.mrf.mxu0
      %681 = vdwg.mxu0
      %682 = vrot.lane.b32.xlu0 %v429, 120
      %v683 = vpop.permute.xlu0 %682
      %684 = vrot.lane.b32.xlu0 %v434, 120
      %v685 = vpop.permute.xlu0 %684
      %686 = vrot.lane.b32.xlu0 %v439, 120
      %v687 = vpop.permute.xlu0 %686
      %688 = vrot.lane.b32.xlu0 %v429, 88
      %v689 = vpop.permute.xlu0 %688
      %690 = vrot.lane.b32.xlu0 %v434, 88
      %v691 = vpop.permute.xlu0 %690
      %692 = vrot.lane.b32.xlu0 %v439, 88
      %v693 = vpop.permute.xlu0 %692
      %v694 = vsel %vm451, %v683, 0
      %v696 = vsel %vm451, %v685, 0
      %v698 = vsel %vm451, %v687, 0
      %v700 = vsel %vm451, %v689, 0
      %v702 = vsel %vm451, %v691, 0
      %v704 = vsel %vm451, %v693, 0
      %706 = vmatprep.subr.mxu0 0.0
      %707 = vmatpush1.xpose.msra.mxu0 0.0
      %708 = vmatprep.subr.mxu0 0.0
      %709 = vmatpush1.xpose.msra.mxu0 0.0
      %710 = vmatprep.subr.mxu0 0.0
      %711 = vmatpush1.xpose.msra.mxu0 0.0
      %712 = vmatprep.subr.mxu0 0.0
      %713 = vmatpush1.xpose.msra.mxu0 0.0
      %714 = vmatprep.subr.mxu0 0.0
      %715 = vmatpush1.xpose.msra.mxu0 0.0
      %716 = vmatprep.subr.mxu0 0.0
      %717 = vmatpush1.xpose.msra.mxu0 0.0
      %718 = vmatprep.subr.mxu0 0.0
      %719 = vmatpush1.xpose.msra.mxu0 0.0
      %720 = vmatprep.subr.mxu0 0.0
      %721 = vmatpush1.xpose.msra.mxu0 0.0
      %722 = vmatprep.subr.mxu0 0.0
      %723 = vmatpush1.xpose.msra.mxu0 0.0
      %724 = vmatprep.subr.mxu0 0.0
      %725 = vmatpush1.xpose.msra.mxu0 0.0
      %726 = vmatprep.subr.mxu0 0.0
      %727 = vmatpush1.xpose.msra.mxu0 0.0
      %728 = vmatprep.subr.mxu0 0.0
      %729 = vmatpush1.xpose.msra.mxu0 0.0
      %730 = vmatprep.subr.mxu0 0.0
      %731 = vmatpush1.xpose.msra.mxu0 0.0
      %732 = vmatprep.subr.mxu0 0.0
      %733 = vmatpush1.xpose.msra.mxu0 %v704
      %734 = vmatprep.subr.mxu0 0.0
      %735 = vmatpush1.xpose.msra.mxu0 %v702
      %736 = vmatprep.subr.mxu0 0.0
      %737 = vmatpush1.xpose.msra.mxu0 %v700
      %738 = vmatprep.subr.mxu0 0.0
      %739 = vmatpush2.xpose.msra.mxu0 0.0
      %740 = vmatprep.subr.mxu0 0.0
      %741 = vmatpush2.xpose.msra.mxu0 0.0
      %742 = vmatprep.subr.mxu0 0.0
      %743 = vmatpush2.xpose.msra.mxu0 0.0
      %744 = vmatprep.subr.mxu0 0.0
      %745 = vmatpush2.xpose.msra.mxu0 0.0
      %746 = vmatprep.subr.mxu0 0.0
      %747 = vmatpush2.xpose.msra.mxu0 0.0
      %748 = vmatprep.subr.mxu0 0.0
      %749 = vmatpush2.xpose.msra.mxu0 0.0
      %750 = vmatprep.subr.mxu0 0.0
      %751 = vmatpush2.xpose.msra.mxu0 0.0
      %752 = vmatprep.subr.mxu0 0.0
      %753 = vmatpush2.xpose.msra.mxu0 0.0
      %754 = vmatprep.subr.mxu0 0.0
      %755 = vmatpush2.xpose.msra.mxu0 0.0
      %756 = vmatprep.subr.mxu0 0.0
      %757 = vmatpush2.xpose.msra.mxu0 0.0
      %758 = vmatprep.subr.mxu0 0.0
      %759 = vmatpush2.xpose.msra.mxu0 0.0
      %760 = vmatprep.subr.mxu0 0.0
      %761 = vmatpush2.xpose.msra.mxu0 0.0
      %762 = vmatprep.subr.mxu0 0.0
      %763 = vmatpush2.xpose.msra.mxu0 0.0
      %764 = vmatprep.subr.mxu0 0.0
      %765 = vmatpush2.xpose.msra.mxu0 0.0
      %766 = vmatprep.subr.mxu0 0.0
      %767 = vmatpush2.xpose.msra.mxu0 0.0
      %768 = vmatprep.subr.mxu0 0.0
      %769 = vmatpush2.xpose.msra.mxu0 0.0
      %770 = vmatprep.mubr.f32.mxu0 0.0
      %771 = vmatmul.mubr.f32.gmra.mxu0 %v694
      %v772 = vpop.f32.mrf.mxu0
      %v773 = vadd.f32 0.0, %v772
      %v774 = vpop.f32.mrf.mxu0
      %775 = vmatprep.mubr.f32.mxu0 0.0
      %776 = vmatmul.mubr.f32.gmra.mxu0 %v696
      %v777 = vpop.f32.mrf.mxu0
      %v778 = vadd.f32 0.0, %v777
      %v779 = vpop.f32.mrf.mxu0
      %780 = vmatprep.mubr.f32.mxu0 0.0
      %781 = vmatmul.mubr.f32.gmra.mxu0 %v698
      %v782 = vpop.f32.mrf.mxu0
      %v783 = vadd.f32 0.0, %v782
      %v784 = vpop.f32.mrf.mxu0
      %785 = vdwg.mxu0
      %v786 = vmul.f32 %v773, 0.35355338
      %v787 = vmul.f32 %v778, 0.35355338
      %v788 = vmul.f32 %v783, 0.35355338
      %v789 = vsel %vm286, %v786, -1e+30
      %v790 = vsel %vm286, %v787, -1e+30
      %v791 = vsel %vm286, %v788, -1e+30
      %v792 = vsel %vm550, %v789, -inf
      %793 = vmax.xlane.f32.xlu0 %v792
      %v794 = vpop.xlane.xlu0 %793
      %v795 = vsel %vm550, %v790, -inf
      %796 = vmax.xlane.f32.xlu0 %v795
      %v797 = vpop.xlane.xlu0 %796
      %v798 = vsel %vm550, %v791, -inf
      %799 = vmax.xlane.f32.xlu0 %v798
      %v800 = vpop.xlane.xlu0 %799
      %v801 = vsub.f32 %v789, %v794
      %v802 = vsub.f32 %v790, %v797
      %v803 = vsub.f32 %v791, %v800
      %v804 = vmul.f32 %v801, 1.442695
      %v805 = vpow.pop %v804
      %v806 = vmul.f32 %v802, 1.442695
      %v807 = vpow.pop %v806
      %v808 = vmul.f32 %v803, 1.442695
      %v809 = vpow.pop %v808
      %v810 = vsel %vm550, %v805, 0.0
      %811 = vadd.xlane.f32.xlu0 %v810
      %v812 = vpop.xlane.xlu0 %811
      %v813 = vsel %vm550, %v807, 0.0
      %814 = vadd.xlane.f32.xlu0 %v813
      %v815 = vpop.xlane.xlu0 %814
      %v816 = vsel %vm550, %v809, 0.0
      %817 = vadd.xlane.f32.xlu0 %v816
      %v818 = vpop.xlane.xlu0 %817
      %v819 = vrcp.pop %v812
      %v820 = vrcp.pop %v815
      %v821 = vrcp.pop %v818
      %v822 = vmul.f32 %v805, %v819
      %v823 = vmul.f32 %v807, %v820
      %v824 = vmul.f32 %v809, %v821
      %825 = vrot.lane.b32.xlu0 %v429, 56
      %v826 = vpop.permute.xlu0 %825
      %827 = vrot.lane.b32.xlu0 %v434, 56
      %v828 = vpop.permute.xlu0 %827
      %829 = vrot.lane.b32.xlu0 %v439, 56
      %v830 = vpop.permute.xlu0 %829
      %v835 = vsel %vm550, %v822, 0
      %v838 = vsel %vm550, %v823, 0
      %v841 = vsel %vm550, %v824, 0
      %843 = vmatprep.subr.mxu0 0.0
      %844 = vmatpush1.msra.mxu0 0.0
      %845 = vmatprep.subr.mxu0 0.0
      %846 = vmatpush1.msra.mxu0 0.0
      %847 = vmatprep.subr.mxu0 0.0
      %848 = vmatpush1.msra.mxu0 0.0
      %849 = vmatprep.subr.mxu0 0.0
      %850 = vmatpush1.msra.mxu0 0.0
      %851 = vmatprep.subr.mxu0 0.0
      %852 = vmatpush1.msra.mxu0 0.0
      %853 = vmatprep.subr.mxu0 0.0
      %854 = vmatpush1.msra.mxu0 0.0
      %855 = vmatprep.subr.mxu0 0.0
      %856 = vmatpush1.msra.mxu0 0.0
      %857 = vmatprep.subr.mxu0 0.0
      %858 = vmatpush1.msra.mxu0 0.0
      %859 = vmatprep.subr.mxu0 0.0
      %860 = vmatpush1.msra.mxu0 0.0
      %861 = vmatprep.subr.mxu0 0.0
      %862 = vmatpush1.msra.mxu0 0.0
      %863 = vmatprep.subr.mxu0 0.0
      %864 = vmatpush1.msra.mxu0 0.0
      %865 = vmatprep.subr.mxu0 0.0
      %866 = vmatpush1.msra.mxu0 0.0
      %867 = vmatprep.subr.mxu0 0.0
      %868 = vmatpush1.msra.mxu0 0.0
      %869 = vmatprep.subr.mxu0 0.0
      %870 = vmatpush1.msra.mxu0 %v830
      %871 = vmatprep.subr.mxu0 0.0
      %872 = vmatpush1.msra.mxu0 %v828
      %873 = vmatprep.subr.mxu0 0.0
      %874 = vmatpush1.msra.mxu0 %v826
      %875 = vmatprep.subr.mxu0 0.0
      %876 = vmatpush2.msra.mxu0 0.0
      %877 = vmatprep.subr.mxu0 0.0
      %878 = vmatpush2.msra.mxu0 0.0
      %879 = vmatprep.subr.mxu0 0.0
      %880 = vmatpush2.msra.mxu0 0.0
      %881 = vmatprep.subr.mxu0 0.0
      %882 = vmatpush2.msra.mxu0 0.0
      %883 = vmatprep.subr.mxu0 0.0
      %884 = vmatpush2.msra.mxu0 0.0
      %885 = vmatprep.subr.mxu0 0.0
      %886 = vmatpush2.msra.mxu0 0.0
      %887 = vmatprep.subr.mxu0 0.0
      %888 = vmatpush2.msra.mxu0 0.0
      %889 = vmatprep.subr.mxu0 0.0
      %890 = vmatpush2.msra.mxu0 0.0
      %891 = vmatprep.subr.mxu0 0.0
      %892 = vmatpush2.msra.mxu0 0.0
      %893 = vmatprep.subr.mxu0 0.0
      %894 = vmatpush2.msra.mxu0 0.0
      %895 = vmatprep.subr.mxu0 0.0
      %896 = vmatpush2.msra.mxu0 0.0
      %897 = vmatprep.subr.mxu0 0.0
      %898 = vmatpush2.msra.mxu0 0.0
      %899 = vmatprep.subr.mxu0 0.0
      %900 = vmatpush2.msra.mxu0 0.0
      %901 = vmatprep.subr.mxu0 0.0
      %902 = vmatpush2.msra.mxu0 0.0
      %903 = vmatprep.subr.mxu0 0.0
      %904 = vmatpush2.msra.mxu0 0.0
      %905 = vmatprep.subr.mxu0 0.0
      %906 = vmatpush2.msra.mxu0 0.0
      %907 = vmatprep.mubr.f32.mxu0 0.0
      %908 = vmatmul.mubr.f32.gmra.mxu0 %v835
      %v909 = vpop.f32.mrf.mxu0
      %v910 = vadd.f32 0.0, %v909
      %v911 = vpop.f32.mrf.mxu0
      %912 = vmatprep.mubr.f32.mxu0 0.0
      %913 = vmatmul.mubr.f32.gmra.mxu0 %v838
      %v914 = vpop.f32.mrf.mxu0
      %v915 = vadd.f32 0.0, %v914
      %v916 = vpop.f32.mrf.mxu0
      %917 = vmatprep.mubr.f32.mxu0 0.0
      %918 = vmatmul.mubr.f32.gmra.mxu0 %v841
      %v919 = vpop.f32.mrf.mxu0
      %v920 = vadd.f32 0.0, %v919
      %v921 = vpop.f32.mrf.mxu0
      %922 = vdwg.mxu0
      %923 = vrot.lane.b32.xlu0 %v429, 112
      %v924 = vpop.permute.xlu0 %923
      %925 = vrot.lane.b32.xlu0 %v434, 112
      %v926 = vpop.permute.xlu0 %925
      %927 = vrot.lane.b32.xlu0 %v439, 112
      %v928 = vpop.permute.xlu0 %927
      %929 = vrot.lane.b32.xlu0 %v429, 80
      %v930 = vpop.permute.xlu0 %929
      %931 = vrot.lane.b32.xlu0 %v434, 80
      %v932 = vpop.permute.xlu0 %931
      %933 = vrot.lane.b32.xlu0 %v439, 80
      %v934 = vpop.permute.xlu0 %933
      %v935 = vsel %vm451, %v924, 0
      %v937 = vsel %vm451, %v926, 0
      %v939 = vsel %vm451, %v928, 0
      %v941 = vsel %vm451, %v930, 0
      %v943 = vsel %vm451, %v932, 0
      %v945 = vsel %vm451, %v934, 0
      %947 = vmatprep.subr.mxu0 0.0
      %948 = vmatpush1.xpose.msra.mxu0 0.0
      %949 = vmatprep.subr.mxu0 0.0
      %950 = vmatpush1.xpose.msra.mxu0 0.0
      %951 = vmatprep.subr.mxu0 0.0
      %952 = vmatpush1.xpose.msra.mxu0 0.0
      %953 = vmatprep.subr.mxu0 0.0
      %954 = vmatpush1.xpose.msra.mxu0 0.0
      %955 = vmatprep.subr.mxu0 0.0
      %956 = vmatpush1.xpose.msra.mxu0 0.0
      %957 = vmatprep.subr.mxu0 0.0
      %958 = vmatpush1.xpose.msra.mxu0 0.0
      %959 = vmatprep.subr.mxu0 0.0
      %960 = vmatpush1.xpose.msra.mxu0 0.0
      %961 = vmatprep.subr.mxu0 0.0
      %962 = vmatpush1.xpose.msra.mxu0 0.0
      %963 = vmatprep.subr.mxu0 0.0
      %964 = vmatpush1.xpose.msra.mxu0 0.0
      %965 = vmatprep.subr.mxu0 0.0
      %966 = vmatpush1.xpose.msra.mxu0 0.0
      %967 = vmatprep.subr.mxu0 0.0
      %968 = vmatpush1.xpose.msra.mxu0 0.0
      %969 = vmatprep.subr.mxu0 0.0
      %970 = vmatpush1.xpose.msra.mxu0 0.0
      %971 = vmatprep.subr.mxu0 0.0
      %972 = vmatpush1.xpose.msra.mxu0 0.0
      %973 = vmatprep.subr.mxu0 0.0
      %974 = vmatpush1.xpose.msra.mxu0 %v945
      %975 = vmatprep.subr.mxu0 0.0
      %976 = vmatpush1.xpose.msra.mxu0 %v943
      %977 = vmatprep.subr.mxu0 0.0
      %978 = vmatpush1.xpose.msra.mxu0 %v941
      %979 = vmatprep.subr.mxu0 0.0
      %980 = vmatpush2.xpose.msra.mxu0 0.0
      %981 = vmatprep.subr.mxu0 0.0
      %982 = vmatpush2.xpose.msra.mxu0 0.0
      %983 = vmatprep.subr.mxu0 0.0
      %984 = vmatpush2.xpose.msra.mxu0 0.0
      %985 = vmatprep.subr.mxu0 0.0
      %986 = vmatpush2.xpose.msra.mxu0 0.0
      %987 = vmatprep.subr.mxu0 0.0
      %988 = vmatpush2.xpose.msra.mxu0 0.0
      %989 = vmatprep.subr.mxu0 0.0
      %990 = vmatpush2.xpose.msra.mxu0 0.0
      %991 = vmatprep.subr.mxu0 0.0
      %992 = vmatpush2.xpose.msra.mxu0 0.0
      %993 = vmatprep.subr.mxu0 0.0
      %994 = vmatpush2.xpose.msra.mxu0 0.0
      %995 = vmatprep.subr.mxu0 0.0
      %996 = vmatpush2.xpose.msra.mxu0 0.0
      %997 = vmatprep.subr.mxu0 0.0
      %998 = vmatpush2.xpose.msra.mxu0 0.0
      %999 = vmatprep.subr.mxu0 0.0
      %1000 = vmatpush2.xpose.msra.mxu0 0.0
      %1001 = vmatprep.subr.mxu0 0.0
      %1002 = vmatpush2.xpose.msra.mxu0 0.0
      %1003 = vmatprep.subr.mxu0 0.0
      %1004 = vmatpush2.xpose.msra.mxu0 0.0
      %1005 = vmatprep.subr.mxu0 0.0
      %1006 = vmatpush2.xpose.msra.mxu0 0.0
      %1007 = vmatprep.subr.mxu0 0.0
      %1008 = vmatpush2.xpose.msra.mxu0 0.0
      %1009 = vmatprep.subr.mxu0 0.0
      %1010 = vmatpush2.xpose.msra.mxu0 0.0
      %1011 = vmatprep.mubr.f32.mxu0 0.0
      %1012 = vmatmul.mubr.f32.gmra.mxu0 %v935
      %v1013 = vpop.f32.mrf.mxu0
      %v1014 = vadd.f32 0.0, %v1013
      %v1015 = vpop.f32.mrf.mxu0
      %1016 = vmatprep.mubr.f32.mxu0 0.0
      %1017 = vmatmul.mubr.f32.gmra.mxu0 %v937
      %v1018 = vpop.f32.mrf.mxu0
      %v1019 = vadd.f32 0.0, %v1018
      %v1020 = vpop.f32.mrf.mxu0
      %1021 = vmatprep.mubr.f32.mxu0 0.0
      %1022 = vmatmul.mubr.f32.gmra.mxu0 %v939
      %v1023 = vpop.f32.mrf.mxu0
      %v1024 = vadd.f32 0.0, %v1023
      %v1025 = vpop.f32.mrf.mxu0
      %1026 = vdwg.mxu0
      %v1027 = vmul.f32 %v1014, 0.35355338
      %v1028 = vmul.f32 %v1019, 0.35355338
      %v1029 = vmul.f32 %v1024, 0.35355338
      %v1030 = vsel %vm286, %v1027, -1e+30
      %v1031 = vsel %vm286, %v1028, -1e+30
      %v1032 = vsel %vm286, %v1029, -1e+30
      %v1033 = vsel %vm550, %v1030, -inf
      %1034 = vmax.xlane.f32.xlu0 %v1033
      %v1035 = vpop.xlane.xlu0 %1034
      %v1036 = vsel %vm550, %v1031, -inf
      %1037 = vmax.xlane.f32.xlu0 %v1036
      %v1038 = vpop.xlane.xlu0 %1037
      %v1039 = vsel %vm550, %v1032, -inf
      %1040 = vmax.xlane.f32.xlu0 %v1039
      %v1041 = vpop.xlane.xlu0 %1040
      %v1042 = vsub.f32 %v1030, %v1035
      %v1043 = vsub.f32 %v1031, %v1038
      %v1044 = vsub.f32 %v1032, %v1041
      %v1045 = vmul.f32 %v1042, 1.442695
      %v1046 = vpow.pop %v1045
      %v1047 = vmul.f32 %v1043, 1.442695
      %v1048 = vpow.pop %v1047
      %v1049 = vmul.f32 %v1044, 1.442695
      %v1050 = vpow.pop %v1049
      %v1051 = vsel %vm550, %v1046, 0.0
      %1052 = vadd.xlane.f32.xlu0 %v1051
      %v1053 = vpop.xlane.xlu0 %1052
      %v1054 = vsel %vm550, %v1048, 0.0
      %1055 = vadd.xlane.f32.xlu0 %v1054
      %v1056 = vpop.xlane.xlu0 %1055
      %v1057 = vsel %vm550, %v1050, 0.0
      %1058 = vadd.xlane.f32.xlu0 %v1057
      %v1059 = vpop.xlane.xlu0 %1058
      %v1060 = vrcp.pop %v1053
      %v1061 = vrcp.pop %v1056
      %v1062 = vrcp.pop %v1059
      %v1063 = vmul.f32 %v1046, %v1060
      %v1064 = vmul.f32 %v1048, %v1061
      %v1065 = vmul.f32 %v1050, %v1062
      %1066 = vrot.lane.b32.xlu0 %v429, 48
      %v1067 = vpop.permute.xlu0 %1066
      %1068 = vrot.lane.b32.xlu0 %v434, 48
      %v1069 = vpop.permute.xlu0 %1068
      %1070 = vrot.lane.b32.xlu0 %v439, 48
      %v1071 = vpop.permute.xlu0 %1070
      %v1076 = vsel %vm550, %v1063, 0
      %v1079 = vsel %vm550, %v1064, 0
      %v1082 = vsel %vm550, %v1065, 0
      %1084 = vmatprep.subr.mxu0 0.0
      %1085 = vmatpush1.msra.mxu0 0.0
      %1086 = vmatprep.subr.mxu0 0.0
      %1087 = vmatpush1.msra.mxu0 0.0
      %1088 = vmatprep.subr.mxu0 0.0
      %1089 = vmatpush1.msra.mxu0 0.0
      %1090 = vmatprep.subr.mxu0 0.0
      %1091 = vmatpush1.msra.mxu0 0.0
      %1092 = vmatprep.subr.mxu0 0.0
      %1093 = vmatpush1.msra.mxu0 0.0
      %1094 = vmatprep.subr.mxu0 0.0
      %1095 = vmatpush1.msra.mxu0 0.0
      %1096 = vmatprep.subr.mxu0 0.0
      %1097 = vmatpush1.msra.mxu0 0.0
      %1098 = vmatprep.subr.mxu0 0.0
      %1099 = vmatpush1.msra.mxu0 0.0
      %1100 = vmatprep.subr.mxu0 0.0
      %1101 = vmatpush1.msra.mxu0 0.0
      %1102 = vmatprep.subr.mxu0 0.0
      %1103 = vmatpush1.msra.mxu0 0.0
      %1104 = vmatprep.subr.mxu0 0.0
      %1105 = vmatpush1.msra.mxu0 0.0
      %1106 = vmatprep.subr.mxu0 0.0
      %1107 = vmatpush1.msra.mxu0 0.0
      %1108 = vmatprep.subr.mxu0 0.0
      %1109 = vmatpush1.msra.mxu0 0.0
      %1110 = vmatprep.subr.mxu0 0.0
      %1111 = vmatpush1.msra.mxu0 %v1071
      %1112 = vmatprep.subr.mxu0 0.0
      %1113 = vmatpush1.msra.mxu0 %v1069
      %1114 = vmatprep.subr.mxu0 0.0
      %1115 = vmatpush1.msra.mxu0 %v1067
      %1116 = vmatprep.subr.mxu0 0.0
      %1117 = vmatpush2.msra.mxu0 0.0
      %1118 = vmatprep.subr.mxu0 0.0
      %1119 = vmatpush2.msra.mxu0 0.0
      %1120 = vmatprep.subr.mxu0 0.0
      %1121 = vmatpush2.msra.mxu0 0.0
      %1122 = vmatprep.subr.mxu0 0.0
      %1123 = vmatpush2.msra.mxu0 0.0
      %1124 = vmatprep.subr.mxu0 0.0
      %1125 = vmatpush2.msra.mxu0 0.0
      %1126 = vmatprep.subr.mxu0 0.0
      %1127 = vmatpush2.msra.mxu0 0.0
      %1128 = vmatprep.subr.mxu0 0.0
      %1129 = vmatpush2.msra.mxu0 0.0
      %1130 = vmatprep.subr.mxu0 0.0
      %1131 = vmatpush2.msra.mxu0 0.0
      %1132 = vmatprep.subr.mxu0 0.0
      %1133 = vmatpush2.msra.mxu0 0.0
      %1134 = vmatprep.subr.mxu0 0.0
      %1135 = vmatpush2.msra.mxu0 0.0
      %1136 = vmatprep.subr.mxu0 0.0
      %1137 = vmatpush2.msra.mxu0 0.0
      %1138 = vmatprep.subr.mxu0 0.0
      %1139 = vmatpush2.msra.mxu0 0.0
      %1140 = vmatprep.subr.mxu0 0.0
      %1141 = vmatpush2.msra.mxu0 0.0
      %1142 = vmatprep.subr.mxu0 0.0
      %1143 = vmatpush2.msra.mxu0 0.0
      %1144 = vmatprep.subr.mxu0 0.0
      %1145 = vmatpush2.msra.mxu0 0.0
      %1146 = vmatprep.subr.mxu0 0.0
      %1147 = vmatpush2.msra.mxu0 0.0
      %1148 = vmatprep.mubr.f32.mxu0 0.0
      %1149 = vmatmul.mubr.f32.gmra.mxu0 %v1076
      %v1150 = vpop.f32.mrf.mxu0
      %v1151 = vadd.f32 0.0, %v1150
      %v1152 = vpop.f32.mrf.mxu0
      %1153 = vmatprep.mubr.f32.mxu0 0.0
      %1154 = vmatmul.mubr.f32.gmra.mxu0 %v1079
      %v1155 = vpop.f32.mrf.mxu0
      %v1156 = vadd.f32 0.0, %v1155
      %v1157 = vpop.f32.mrf.mxu0
      %1158 = vmatprep.mubr.f32.mxu0 0.0
      %1159 = vmatmul.mubr.f32.gmra.mxu0 %v1082
      %v1160 = vpop.f32.mrf.mxu0
      %v1161 = vadd.f32 0.0, %v1160
      %v1162 = vpop.f32.mrf.mxu0
      %1163 = vdwg.mxu0
      %1164 = vrot.lane.b32.xlu0 %v429, 104
      %v1165 = vpop.permute.xlu0 %1164
      %1166 = vrot.lane.b32.xlu0 %v434, 104
      %v1167 = vpop.permute.xlu0 %1166
      %1168 = vrot.lane.b32.xlu0 %v439, 104
      %v1169 = vpop.permute.xlu0 %1168
      %1170 = vrot.lane.b32.xlu0 %v429, 72
      %v1171 = vpop.permute.xlu0 %1170
      %1172 = vrot.lane.b32.xlu0 %v434, 72
      %v1173 = vpop.permute.xlu0 %1172
      %1174 = vrot.lane.b32.xlu0 %v439, 72
      %v1175 = vpop.permute.xlu0 %1174
      %v1176 = vsel %vm451, %v1165, 0
      %v1178 = vsel %vm451, %v1167, 0
      %v1180 = vsel %vm451, %v1169, 0
      %v1182 = vsel %vm451, %v1171, 0
      %v1184 = vsel %vm451, %v1173, 0
      %v1186 = vsel %vm451, %v1175, 0
      %1188 = vmatprep.subr.mxu0 0.0
      %1189 = vmatpush1.xpose.msra.mxu0 0.0
      %1190 = vmatprep.subr.mxu0 0.0
      %1191 = vmatpush1.xpose.msra.mxu0 0.0
      %1192 = vmatprep.subr.mxu0 0.0
      %1193 = vmatpush1.xpose.msra.mxu0 0.0
      %1194 = vmatprep.subr.mxu0 0.0
      %1195 = vmatpush1.xpose.msra.mxu0 0.0
      %1196 = vmatprep.subr.mxu0 0.0
      %1197 = vmatpush1.xpose.msra.mxu0 0.0
      %1198 = vmatprep.subr.mxu0 0.0
      %1199 = vmatpush1.xpose.msra.mxu0 0.0
      %1200 = vmatprep.subr.mxu0 0.0
      %1201 = vmatpush1.xpose.msra.mxu0 0.0
      %1202 = vmatprep.subr.mxu0 0.0
      %1203 = vmatpush1.xpose.msra.mxu0 0.0
      %1204 = vmatprep.subr.mxu0 0.0
      %1205 = vmatpush1.xpose.msra.mxu0 0.0
      %1206 = vmatprep.subr.mxu0 0.0
      %1207 = vmatpush1.xpose.msra.mxu0 0.0
      %1208 = vmatprep.subr.mxu0 0.0
      %1209 = vmatpush1.xpose.msra.mxu0 0.0
      %1210 = vmatprep.subr.mxu0 0.0
      %1211 = vmatpush1.xpose.msra.mxu0 0.0
      %1212 = vmatprep.subr.mxu0 0.0
      %1213 = vmatpush1.xpose.msra.mxu0 0.0
      %1214 = vmatprep.subr.mxu0 0.0
      %1215 = vmatpush1.xpose.msra.mxu0 %v1186
      %1216 = vmatprep.subr.mxu0 0.0
      %1217 = vmatpush1.xpose.msra.mxu0 %v1184
      %1218 = vmatprep.subr.mxu0 0.0
      %1219 = vmatpush1.xpose.msra.mxu0 %v1182
      %1220 = vmatprep.subr.mxu0 0.0
      %1221 = vmatpush2.xpose.msra.mxu0 0.0
      %1222 = vmatprep.subr.mxu0 0.0
      %1223 = vmatpush2.xpose.msra.mxu0 0.0
      %1224 = vmatprep.subr.mxu0 0.0
      %1225 = vmatpush2.xpose.msra.mxu0 0.0
      %1226 = vmatprep.subr.mxu0 0.0
      %1227 = vmatpush2.xpose.msra.mxu0 0.0
      %1228 = vmatprep.subr.mxu0 0.0
      %1229 = vmatpush2.xpose.msra.mxu0 0.0
      %1230 = vmatprep.subr.mxu0 0.0
      %1231 = vmatpush2.xpose.msra.mxu0 0.0
      %1232 = vmatprep.subr.mxu0 0.0
      %1233 = vmatpush2.xpose.msra.mxu0 0.0
      %1234 = vmatprep.subr.mxu0 0.0
      %1235 = vmatpush2.xpose.msra.mxu0 0.0
      %1236 = vmatprep.subr.mxu0 0.0
      %1237 = vmatpush2.xpose.msra.mxu0 0.0
      %1238 = vmatprep.subr.mxu0 0.0
      %1239 = vmatpush2.xpose.msra.mxu0 0.0
      %1240 = vmatprep.subr.mxu0 0.0
      %1241 = vmatpush2.xpose.msra.mxu0 0.0
      %1242 = vmatprep.subr.mxu0 0.0
      %1243 = vmatpush2.xpose.msra.mxu0 0.0
      %1244 = vmatprep.subr.mxu0 0.0
      %1245 = vmatpush2.xpose.msra.mxu0 0.0
      %1246 = vmatprep.subr.mxu0 0.0
      %1247 = vmatpush2.xpose.msra.mxu0 0.0
      %1248 = vmatprep.subr.mxu0 0.0
      %1249 = vmatpush2.xpose.msra.mxu0 0.0
      %1250 = vmatprep.subr.mxu0 0.0
      %1251 = vmatpush2.xpose.msra.mxu0 0.0
      %1252 = vmatprep.mubr.f32.mxu0 0.0
      %1253 = vmatmul.mubr.f32.gmra.mxu0 %v1176
      %v1254 = vpop.f32.mrf.mxu0
      %v1255 = vadd.f32 0.0, %v1254
      %v1256 = vpop.f32.mrf.mxu0
      %1257 = vmatprep.mubr.f32.mxu0 0.0
      %1258 = vmatmul.mubr.f32.gmra.mxu0 %v1178
      %v1259 = vpop.f32.mrf.mxu0
      %v1260 = vadd.f32 0.0, %v1259
      %v1261 = vpop.f32.mrf.mxu0
      %1262 = vmatprep.mubr.f32.mxu0 0.0
      %1263 = vmatmul.mubr.f32.gmra.mxu0 %v1180
      %v1264 = vpop.f32.mrf.mxu0
      %v1265 = vadd.f32 0.0, %v1264
      %v1266 = vpop.f32.mrf.mxu0
      %1267 = vdwg.mxu0
      %v1268 = vmul.f32 %v1255, 0.35355338
      %v1269 = vmul.f32 %v1260, 0.35355338
      %v1270 = vmul.f32 %v1265, 0.35355338
      %v1271 = vsel %vm286, %v1268, -1e+30
      %v1272 = vsel %vm286, %v1269, -1e+30
      %v1273 = vsel %vm286, %v1270, -1e+30
      %v1274 = vsel %vm550, %v1271, -inf
      %1275 = vmax.xlane.f32.xlu0 %v1274
      %v1276 = vpop.xlane.xlu0 %1275
      %v1277 = vsel %vm550, %v1272, -inf
      %1278 = vmax.xlane.f32.xlu0 %v1277
      %v1279 = vpop.xlane.xlu0 %1278
      %v1280 = vsel %vm550, %v1273, -inf
      %1281 = vmax.xlane.f32.xlu0 %v1280
      %v1282 = vpop.xlane.xlu0 %1281
      %v1283 = vsub.f32 %v1271, %v1276
      %v1284 = vsub.f32 %v1272, %v1279
      %v1285 = vsub.f32 %v1273, %v1282
      %v1286 = vmul.f32 %v1283, 1.442695
      %v1287 = vpow.pop %v1286
      %v1288 = vmul.f32 %v1284, 1.442695
      %v1289 = vpow.pop %v1288
      %v1290 = vmul.f32 %v1285, 1.442695
      %v1291 = vpow.pop %v1290
      %v1292 = vsel %vm550, %v1287, 0.0
      %1293 = vadd.xlane.f32.xlu0 %v1292
      %v1294 = vpop.xlane.xlu0 %1293
      %v1295 = vsel %vm550, %v1289, 0.0
      %1296 = vadd.xlane.f32.xlu0 %v1295
      %v1297 = vpop.xlane.xlu0 %1296
      %v1298 = vsel %vm550, %v1291, 0.0
      %1299 = vadd.xlane.f32.xlu0 %v1298
      %v1300 = vpop.xlane.xlu0 %1299
      %v1301 = vrcp.pop %v1294
      %v1302 = vrcp.pop %v1297
      %v1303 = vrcp.pop %v1300
      %v1304 = vmul.f32 %v1287, %v1301
      %v1305 = vmul.f32 %v1289, %v1302
      %v1306 = vmul.f32 %v1291, %v1303
      %1307 = vrot.lane.b32.xlu0 %v429, 40
      %v1308 = vpop.permute.xlu0 %1307
      %1309 = vrot.lane.b32.xlu0 %v434, 40
      %v1310 = vpop.permute.xlu0 %1309
      %1311 = vrot.lane.b32.xlu0 %v439, 40
      %v1312 = vpop.permute.xlu0 %1311
      %v1317 = vsel %vm550, %v1304, 0
      %v1320 = vsel %vm550, %v1305, 0
      %v1323 = vsel %vm550, %v1306, 0
      %1325 = vmatprep.subr.mxu0 0.0
      %1326 = vmatpush1.msra.mxu0 0.0
      %1327 = vmatprep.subr.mxu0 0.0
      %1328 = vmatpush1.msra.mxu0 0.0
      %1329 = vmatprep.subr.mxu0 0.0
      %1330 = vmatpush1.msra.mxu0 0.0
      %1331 = vmatprep.subr.mxu0 0.0
      %1332 = vmatpush1.msra.mxu0 0.0
      %1333 = vmatprep.subr.mxu0 0.0
      %1334 = vmatpush1.msra.mxu0 0.0
      %1335 = vmatprep.subr.mxu0 0.0
      %1336 = vmatpush1.msra.mxu0 0.0
      %1337 = vmatprep.subr.mxu0 0.0
      %1338 = vmatpush1.msra.mxu0 0.0
      %1339 = vmatprep.subr.mxu0 0.0
      %1340 = vmatpush1.msra.mxu0 0.0
      %1341 = vmatprep.subr.mxu0 0.0
      %1342 = vmatpush1.msra.mxu0 0.0
      %1343 = vmatprep.subr.mxu0 0.0
      %1344 = vmatpush1.msra.mxu0 0.0
      %1345 = vmatprep.subr.mxu0 0.0
      %1346 = vmatpush1.msra.mxu0 0.0
      %1347 = vmatprep.subr.mxu0 0.0
      %1348 = vmatpush1.msra.mxu0 0.0
      %1349 = vmatprep.subr.mxu0 0.0
      %1350 = vmatpush1.msra.mxu0 0.0
      %1351 = vmatprep.subr.mxu0 0.0
      %1352 = vmatpush1.msra.mxu0 %v1312
      %1353 = vmatprep.subr.mxu0 0.0
      %1354 = vmatpush1.msra.mxu0 %v1310
      %1355 = vmatprep.subr.mxu0 0.0
      %1356 = vmatpush1.msra.mxu0 %v1308
      %1357 = vmatprep.subr.mxu0 0.0
      %1358 = vmatpush2.msra.mxu0 0.0
      %1359 = vmatprep.subr.mxu0 0.0
      %1360 = vmatpush2.msra.mxu0 0.0
      %1361 = vmatprep.subr.mxu0 0.0
      %1362 = vmatpush2.msra.mxu0 0.0
      %1363 = vmatprep.subr.mxu0 0.0
      %1364 = vmatpush2.msra.mxu0 0.0
      %1365 = vmatprep.subr.mxu0 0.0
      %1366 = vmatpush2.msra.mxu0 0.0
      %1367 = vmatprep.subr.mxu0 0.0
      %1368 = vmatpush2.msra.mxu0 0.0
      %1369 = vmatprep.subr.mxu0 0.0
      %1370 = vmatpush2.msra.mxu0 0.0
      %1371 = vmatprep.subr.mxu0 0.0
      %1372 = vmatpush2.msra.mxu0 0.0
      %1373 = vmatprep.subr.mxu0 0.0
      %1374 = vmatpush2.msra.mxu0 0.0
      %1375 = vmatprep.subr.mxu0 0.0
      %1376 = vmatpush2.msra.mxu0 0.0
      %1377 = vmatprep.subr.mxu0 0.0
      %1378 = vmatpush2.msra.mxu0 0.0
      %1379 = vmatprep.subr.mxu0 0.0
      %1380 = vmatpush2.msra.mxu0 0.0
      %1381 = vmatprep.subr.mxu0 0.0
      %1382 = vmatpush2.msra.mxu0 0.0
      %1383 = vmatprep.subr.mxu0 0.0
      %1384 = vmatpush2.msra.mxu0 0.0
      %1385 = vmatprep.subr.mxu0 0.0
      %1386 = vmatpush2.msra.mxu0 0.0
      %1387 = vmatprep.subr.mxu0 0.0
      %1388 = vmatpush2.msra.mxu0 0.0
      %1389 = vmatprep.mubr.f32.mxu0 0.0
      %1390 = vmatmul.mubr.f32.gmra.mxu0 %v1317
      %v1391 = vpop.f32.mrf.mxu0
      %v1392 = vadd.f32 0.0, %v1391
      %v1393 = vpop.f32.mrf.mxu0
      %1394 = vmatprep.mubr.f32.mxu0 0.0
      %1395 = vmatmul.mubr.f32.gmra.mxu0 %v1320
      %v1396 = vpop.f32.mrf.mxu0
      %v1397 = vadd.f32 0.0, %v1396
      %v1398 = vpop.f32.mrf.mxu0
      %1399 = vmatprep.mubr.f32.mxu0 0.0
      %1400 = vmatmul.mubr.f32.gmra.mxu0 %v1323
      %v1401 = vpop.f32.mrf.mxu0
      %v1402 = vadd.f32 0.0, %v1401
      %v1403 = vpop.f32.mrf.mxu0
      %1404 = vdwg.mxu0
      %1405 = vrot.lane.b32.xlu0 %v822, 24
      %v1406 = vpop.permute.xlu0 %1405
      %1407 = vrot.lane.b32.xlu0 %v823, 24
      %v1408 = vpop.permute.xlu0 %1407
      %1409 = vrot.lane.b32.xlu0 %v824, 24
      %v1410 = vpop.permute.xlu0 %1409
      %1414 = vrot.lane.b32.xlu0 %v1063, 48
      %v1415 = vpop.permute.xlu0 %1414
      %1416 = vrot.lane.b32.xlu0 %v1064, 48
      %v1417 = vpop.permute.xlu0 %1416
      %1418 = vrot.lane.b32.xlu0 %v1065, 48
      %v1419 = vpop.permute.xlu0 %1418
      %1423 = vrot.lane.b32.xlu0 %v1304, 72
      %v1424 = vpop.permute.xlu0 %1423
      %1425 = vrot.lane.b32.xlu0 %v1305, 72
      %v1426 = vpop.permute.xlu0 %1425
      %1427 = vrot.lane.b32.xlu0 %v1306, 72
      %v1428 = vpop.permute.xlu0 %1427
      %v1432 = vsel %vm550, %v581, %v1406
      %v1433 = vsel %vm550, %v582, %v1408
      %v1434 = vsel %vm550, %v583, %v1410
      %vm1435 = vcmask 392192
      %v1436 = vsel %vm1435, %v1432, %v1415
      %v1437 = vsel %vm1435, %v1433, %v1417
      %v1438 = vsel %vm1435, %v1434, %v1419
      %vm1439 = vcmask 588800
      %v1440 = vsel %vm1439, %v1436, %v1424
      %v1441 = vsel %vm1439, %v1437, %v1426
      %v1442 = vsel %vm1439, %v1438, %v1428
      %vm1443 = vcmask 785408
      %v1444 = vsel %vm1443, %v1440, 0.0
      %v1445 = vsel %vm1443, %v1441, 0.0
      %v1446 = vsel %vm1443, %v1442, 0.0
      %1447 = vst [vmem:[%s181] sm:$0xff] %v1444
      %1448 = vst [vmem:[%s181 + $0x8] sm:$0xff] %v1445
      %1449 = vst [vmem:[%s181 + $0x10] sm:$0xff] %v1446
      %1453 = vrot.lane.b32.xlu0 %v910, 8
      %v1454 = vpop.permute.xlu0 %1453
      %1455 = vrot.lane.b32.xlu0 %v915, 8
      %v1456 = vpop.permute.xlu0 %1455
      %1457 = vrot.lane.b32.xlu0 %v920, 8
      %v1458 = vpop.permute.xlu0 %1457
      %1465 = vrot.lane.b32.xlu0 %v1151, 16
      %v1466 = vpop.permute.xlu0 %1465
      %1467 = vrot.lane.b32.xlu0 %v1156, 16
      %v1468 = vpop.permute.xlu0 %1467
      %1469 = vrot.lane.b32.xlu0 %v1161, 16
      %v1470 = vpop.permute.xlu0 %1469
      %1477 = vrot.lane.b32.xlu0 %v1392, 24
      %v1478 = vpop.permute.xlu0 %1477
      %1479 = vrot.lane.b32.xlu0 %v1397, 24
      %v1480 = vpop.permute.xlu0 %1479
      %1481 = vrot.lane.b32.xlu0 %v1402, 24
      %v1482 = vpop.permute.xlu0 %1481
      %v1486 = vsel %vm451, %v669, %v1454
      %v1487 = vsel %vm451, %v674, %v1456
      %v1488 = vsel %vm451, %v679, %v1458
      %vm1489 = vcmask 130048
      %v1490 = vsel %vm1489, %v1486, %v1466
      %v1491 = vsel %vm1489, %v1487, %v1468
      %v1492 = vsel %vm1489, %v1488, %v1470
      %v1493 = vsel %vm550, %v1490, %v1478
      %v1494 = vsel %vm550, %v1491, %v1480
      %v1495 = vsel %vm550, %v1492, %v1482
      %v1496 = vld [vmem:[%s1 + $0xb8] sm:$0xff]
      %v1497 = vld [vmem:[%s1 + $0xc0] sm:$0xff]
      %v1498 = vld [vmem:[%s1 + $0xc8] sm:$0xff]
      %v1499 = vld [vmem:[%s1 + $0xd0] sm:$0xff]
      %v1500 = vld [vmem:[%s1 + $0x139] sm:$0x1]
      %v1501 = vlaneseq
      %v1502 = vshrl.u32 %v1501, 7
      %v1503 = vsub.s32 0, %v1502
      %v1504 = vrot.slane %v1500, %v1503
      %v1506 = vsel %vm289, %v1493, 0
      %v1509 = vsel %vm289, %v1494, 0
      %v1512 = vsel %vm289, %v1495, 0
      %1514 = vmatprep.subr.mxu0 0.0
      %1515 = vmatpush1.msra.mxu0 0.0
      %1516 = vmatprep.subr.mxu0 0.0
      %1517 = vmatpush1.msra.mxu0 0.0
      %1518 = vmatprep.subr.mxu0 0.0
      %1519 = vmatpush1.msra.mxu0 0.0
      %1520 = vmatprep.subr.mxu0 0.0
      %1521 = vmatpush1.msra.mxu0 0.0
      %1522 = vmatprep.subr.mxu0 0.0
      %1523 = vmatpush1.msra.mxu0 0.0
      %1524 = vmatprep.subr.mxu0 0.0
      %1525 = vmatpush1.msra.mxu0 0.0
      %1526 = vmatprep.subr.mxu0 0.0
      %1527 = vmatpush1.msra.mxu0 0.0
      %1528 = vmatprep.subr.mxu0 0.0
      %1529 = vmatpush1.msra.mxu0 0.0
      %1530 = vmatprep.subr.mxu0 0.0
      %1531 = vmatpush1.msra.mxu0 0.0
      %1532 = vmatprep.subr.mxu0 0.0
      %1533 = vmatpush1.msra.mxu0 0.0
      %1534 = vmatprep.subr.mxu0 0.0
      %1535 = vmatpush1.msra.mxu0 0.0
      %1536 = vmatprep.subr.mxu0 0.0
      %1537 = vmatpush1.msra.mxu0 0.0
      %1538 = vmatprep.subr.mxu0 0.0
      %1539 = vmatpush1.msra.mxu0 %v1499
      %1540 = vmatprep.subr.mxu0 0.0
      %1541 = vmatpush1.msra.mxu0 %v1498
      %1542 = vmatprep.subr.mxu0 0.0
      %1543 = vmatpush1.msra.mxu0 %v1497
      %1544 = vmatprep.subr.mxu0 0.0
      %1545 = vmatpush1.msra.mxu0 %v1496
      %1546 = vmatprep.subr.mxu0 0.0
      %1547 = vmatpush2.msra.mxu0 0.0
      %1548 = vmatprep.subr.mxu0 0.0
      %1549 = vmatpush2.msra.mxu0 0.0
      %1550 = vmatprep.subr.mxu0 0.0
      %1551 = vmatpush2.msra.mxu0 0.0
      %1552 = vmatprep.subr.mxu0 0.0
      %1553 = vmatpush2.msra.mxu0 0.0
      %1554 = vmatprep.subr.mxu0 0.0
      %1555 = vmatpush2.msra.mxu0 0.0
      %1556 = vmatprep.subr.mxu0 0.0
      %1557 = vmatpush2.msra.mxu0 0.0
      %1558 = vmatprep.subr.mxu0 0.0
      %1559 = vmatpush2.msra.mxu0 0.0
      %1560 = vmatprep.subr.mxu0 0.0
      %1561 = vmatpush2.msra.mxu0 0.0
      %1562 = vmatprep.subr.mxu0 0.0
      %1563 = vmatpush2.msra.mxu0 0.0
      %1564 = vmatprep.subr.mxu0 0.0
      %1565 = vmatpush2.msra.mxu0 0.0
      %1566 = vmatprep.subr.mxu0 0.0
      %1567 = vmatpush2.msra.mxu0 0.0
      %1568 = vmatprep.subr.mxu0 0.0
      %1569 = vmatpush2.msra.mxu0 0.0
      %1570 = vmatprep.subr.mxu0 0.0
      %1571 = vmatpush2.msra.mxu0 0.0
      %1572 = vmatprep.subr.mxu0 0.0
      %1573 = vmatpush2.msra.mxu0 0.0
      %1574 = vmatprep.subr.mxu0 0.0
      %1575 = vmatpush2.msra.mxu0 0.0
      %1576 = vmatprep.subr.mxu0 0.0
      %1577 = vmatpush2.msra.mxu0 0.0
      %1578 = vmatprep.mubr.f32.mxu0 0.0
      %1579 = vmatmul.mubr.f32.gmra.mxu0 %v1506
      %v1580 = vpop.f32.mrf.mxu0
      %v1581 = vadd.f32 %v1504, %v1580
      %v1582 = vpop.f32.mrf.mxu0
      %1583 = vmatprep.mubr.f32.mxu0 0.0
      %1584 = vmatmul.mubr.f32.gmra.mxu0 %v1509
      %v1585 = vpop.f32.mrf.mxu0
      %v1586 = vadd.f32 %v1504, %v1585
      %v1587 = vpop.f32.mrf.mxu0
      %1588 = vmatprep.mubr.f32.mxu0 0.0
      %1589 = vmatmul.mubr.f32.gmra.mxu0 %v1512
      %v1590 = vpop.f32.mrf.mxu0
      %v1591 = vadd.f32 %v1504, %v1590
      %v1592 = vpop.f32.mrf.mxu0
      %1593 = vdwg.mxu0
      %v1594 = vadd.f32 %v271, %v1581
      %v1595 = vadd.f32 %v276, %v1586
      %v1596 = vadd.f32 %v281, %v1591
      %v1597 = vld [vmem:[%s1 + $0x13c] sm:$0x1]
      %v1598 = vld [vmem:[%s1 + $0x13d] sm:$0x1]
      %v1599 = vsel %vm289, %v1594, 0.0
      %1600 = vadd.xlane.f32.xlu0 %v1599
      %v1601 = vpop.xlane.xlu0 %1600
      %v1602 = vsel %vm289, %v1595, 0.0
      %1603 = vadd.xlane.f32.xlu0 %v1602
      %v1604 = vpop.xlane.xlu0 %1603
      %v1605 = vsel %vm289, %v1596, 0.0
      %1606 = vadd.xlane.f32.xlu0 %v1605
      %v1607 = vpop.xlane.xlu0 %1606
      %v1608 = vmul.f32 %v1601, %v299
      %v1609 = vmul.f32 %v1604, %v299
      %v1610 = vmul.f32 %v1607, %v299
      %v1611 = vsub.f32 %v1594, %v1608
      %v1612 = vsub.f32 %v1595, %v1609
      %v1613 = vsub.f32 %v1596, %v1610
      %v1614 = vmul.f32 %v1611, %v1611
      %v1615 = vmul.f32 %v1612, %v1612
      %v1616 = vmul.f32 %v1613, %v1613
      %v1617 = vsel %vm289, %v1614, 0.0
      %1618 = vadd.xlane.f32.xlu0 %v1617
      %v1619 = vpop.xlane.xlu0 %1618
      %v1620 = vsel %vm289, %v1615, 0.0
      %1621 = vadd.xlane.f32.xlu0 %v1620
      %v1622 = vpop.xlane.xlu0 %1621
      %v1623 = vsel %vm289, %v1616, 0.0
      %1624 = vadd.xlane.f32.xlu0 %v1623
      %v1625 = vpop.xlane.xlu0 %1624
      %v1626 = vmul.f32 %v1619, %v299
      %v1627 = vmul.f32 %v1622, %v299
      %v1628 = vmul.f32 %v1625, %v299
      %v1629 = vadd.f32 %v1626, 1e-06
      %v1630 = vadd.f32 %v1627, 1e-06
      %v1631 = vadd.f32 %v1628, 1e-06
      %v1632 = vrsqrt.pop %v1629
      %v1633 = vrsqrt.pop %v1630
      %v1634 = vrsqrt.pop %v1631
      %v1635 = vmul.f32 %v1611, %v1632
      %v1636 = vmul.f32 %v1612, %v1633
      %v1637 = vmul.f32 %v1613, %v1634
      %v1638 = vlaneseq
      %v1639 = vshrl.u32 %v1638, 7
      %v1640 = vsub.s32 0, %v1639
      %v1641 = vrot.slane %v1597, %v1640
      %v1642 = vmul.f32 %v1635, %v1641
      %v1643 = vmul.f32 %v1636, %v1641
      %v1644 = vmul.f32 %v1637, %v1641
      %v1645 = vlaneseq
      %v1646 = vshrl.u32 %v1645, 7
      %v1647 = vsub.s32 0, %v1646
      %v1648 = vrot.slane %v1598, %v1647
      %v1649 = vadd.f32 %v1642, %v1648
      %v1650 = vadd.f32 %v1643, %v1648
      %v1651 = vadd.f32 %v1644, %v1648
      %v1652 = vld [vmem:[%s1 + $0xd8] sm:$0xff]
      %v1653 = vld [vmem:[%s1 + $0xe0] sm:$0xff]
      %v1654 = vld [vmem:[%s1 + $0xe8] sm:$0xff]
      %v1655 = vld [vmem:[%s1 + $0xf0] sm:$0xff]
      %v1656 = vld [vmem:[%s1 + $0x13e] sm:$0x1]
      %v1657 = vlaneseq
      %v1658 = vshrl.u32 %v1657, 7
      %v1659 = vsub.s32 0, %v1658
      %v1660 = vrot.slane %v1656, %v1659
      %v1662 = vsel %vm289, %v1649, 0
      %v1665 = vsel %vm289, %v1650, 0
      %v1668 = vsel %vm289, %v1651, 0
      %1670 = vmatprep.subr.mxu0 0.0
      %1671 = vmatpush1.msra.mxu0 0.0
      %1672 = vmatprep.subr.mxu0 0.0
      %1673 = vmatpush1.msra.mxu0 0.0
      %1674 = vmatprep.subr.mxu0 0.0
      %1675 = vmatpush1.msra.mxu0 0.0
      %1676 = vmatprep.subr.mxu0 0.0
      %1677 = vmatpush1.msra.mxu0 0.0
      %1678 = vmatprep.subr.mxu0 0.0
      %1679 = vmatpush1.msra.mxu0 0.0
      %1680 = vmatprep.subr.mxu0 0.0
      %1681 = vmatpush1.msra.mxu0 0.0
      %1682 = vmatprep.subr.mxu0 0.0
      %1683 = vmatpush1.msra.mxu0 0.0
      %1684 = vmatprep.subr.mxu0 0.0
      %1685 = vmatpush1.msra.mxu0 0.0
      %1686 = vmatprep.subr.mxu0 0.0
      %1687 = vmatpush1.msra.mxu0 0.0
      %1688 = vmatprep.subr.mxu0 0.0
      %1689 = vmatpush1.msra.mxu0 0.0
      %1690 = vmatprep.subr.mxu0 0.0
      %1691 = vmatpush1.msra.mxu0 0.0
      %1692 = vmatprep.subr.mxu0 0.0
      %1693 = vmatpush1.msra.mxu0 0.0
      %1694 = vmatprep.subr.mxu0 0.0
      %1695 = vmatpush1.msra.mxu0 %v1655
      %1696 = vmatprep.subr.mxu0 0.0
      %1697 = vmatpush1.msra.mxu0 %v1654
      %1698 = vmatprep.subr.mxu0 0.0
      %1699 = vmatpush1.msra.mxu0 %v1653
      %1700 = vmatprep.subr.mxu0 0.0
      %1701 = vmatpush1.msra.mxu0 %v1652
      %1702 = vmatprep.subr.mxu0 0.0
      %1703 = vmatpush2.msra.mxu0 0.0
      %1704 = vmatprep.subr.mxu0 0.0
      %1705 = vmatpush2.msra.mxu0 0.0
      %1706 = vmatprep.subr.mxu0 0.0
      %1707 = vmatpush2.msra.mxu0 0.0
      %1708 = vmatprep.subr.mxu0 0.0
      %1709 = vmatpush2.msra.mxu0 0.0
      %1710 = vmatprep.subr.mxu0 0.0
      %1711 = vmatpush2.msra.mxu0 0.0
      %1712 = vmatprep.subr.mxu0 0.0
      %1713 = vmatpush2.msra.mxu0 0.0
      %1714 = vmatprep.subr.mxu0 0.0
      %1715 = vmatpush2.msra.mxu0 0.0
      %1716 = vmatprep.subr.mxu0 0.0
      %1717 = vmatpush2.msra.mxu0 0.0
      %1718 = vmatprep.subr.mxu0 0.0
      %1719 = vmatpush2.msra.mxu0 0.0
      %1720 = vmatprep.subr.mxu0 0.0
      %1721 = vmatpush2.msra.mxu0 0.0
      %1722 = vmatprep.subr.mxu0 0.0
      %1723 = vmatpush2.msra.mxu0 0.0
      %1724 = vmatprep.subr.mxu0 0.0
      %1725 = vmatpush2.msra.mxu0 0.0
      %1726 = vmatprep.subr.mxu0 0.0
      %1727 = vmatpush2.msra.mxu0 0.0
      %1728 = vmatprep.subr.mxu0 0.0
      %1729 = vmatpush2.msra.mxu0 0.0
      %1730 = vmatprep.subr.mxu0 0.0
      %1731 = vmatpush2.msra.mxu0 0.0
      %1732 = vmatprep.subr.mxu0 0.0
      %1733 = vmatpush2.msra.mxu0 0.0
      %1734 = vmatprep.mubr.f32.mxu0 0.0
      %1735 = vmatmul.mubr.f32.gmra.mxu0 %v1662
      %v1736 = vpop.f32.mrf.mxu0
      %v1737 = vadd.f32 %v1660, %v1736
      %v1738 = vpop.f32.mrf.mxu0
      %1739 = vmatprep.mubr.f32.mxu0 0.0
      %1740 = vmatmul.mubr.f32.gmra.mxu0 %v1665
      %v1741 = vpop.f32.mrf.mxu0
      %v1742 = vadd.f32 %v1660, %v1741
      %v1743 = vpop.f32.mrf.mxu0
      %1744 = vmatprep.mubr.f32.mxu0 0.0
      %1745 = vmatmul.mubr.f32.gmra.mxu0 %v1668
      %v1746 = vpop.f32.mrf.mxu0
      %v1747 = vadd.f32 %v1660, %v1746
      %v1748 = vpop.f32.mrf.mxu0
      %1749 = vdwg.mxu0
      %v1750 = vmul.f32 %v1737, %v1737
      %v1751 = vmul.f32 %v1742, %v1742
      %v1752 = vmul.f32 %v1747, %v1747
      %v1753 = vmul.f32 %v1737, %v1750
      %v1754 = vmul.f32 %v1742, %v1751
      %v1755 = vmul.f32 %v1747, %v1752
      %v1756 = vmul.f32 %v1753, 0.044715
      %v1757 = vmul.f32 %v1754, 0.044715
      %v1758 = vmul.f32 %v1755, 0.044715
      %v1759 = vadd.f32 %v1737, %v1756
      %v1760 = vadd.f32 %v1742, %v1757
      %v1761 = vadd.f32 %v1747, %v1758
      %v1762 = vmul.f32 %v1759, 0.7978846
      %v1763 = vmul.f32 %v1760, 0.7978846
      %v1764 = vmul.f32 %v1761, 0.7978846
      %v1765 = vtanh.pop %v1762
      %v1766 = vtanh.pop %v1763
      %v1767 = vtanh.pop %v1764
      %v1768 = vadd.f32 %v1765, 1.0
      %v1769 = vadd.f32 %v1766, 1.0
      %v1770 = vadd.f32 %v1767, 1.0
      %v1771 = vmul.f32 %v1768, 0.5
      %v1772 = vmul.f32 %v1769, 0.5
      %v1773 = vmul.f32 %v1770, 0.5
      %v1774 = vmul.f32 %v1737, %v1771
      %v1775 = vmul.f32 %v1742, %v1772
      %v1776 = vmul.f32 %v1747, %v1773
      %v1777 = vld [vmem:[%s1 + $0xf8] sm:$0xff]
      %v1778 = vld [vmem:[%s1 + $0x100] sm:$0xff]
      %v1779 = vld [vmem:[%s1 + $0x108] sm:$0xff]
      %v1780 = vld [vmem:[%s1 + $0x110] sm:$0xff]
      %v1781 = vld [vmem:[%s1 + $0x118] sm:$0xff]
      %v1782 = vld [vmem:[%s1 + $0x120] sm:$0xff]
      %v1783 = vld [vmem:[%s1 + $0x128] sm:$0xff]
      %v1784 = vld [vmem:[%s1 + $0x130] sm:$0xff]
      %v1785 = vld [vmem:[%s1 + $0x13f] sm:$0x1]
      %v1786 = vlaneseq
      %v1787 = vshrl.u32 %v1786, 7
      %v1788 = vsub.s32 0, %v1787
      %v1789 = vrot.slane %v1785, %v1788
      %vm1790 = vcmask 523264
      %v1792 = vsel %vm1790, %v1774, 0
      %v1795 = vsel %vm1790, %v1775, 0
      %v1798 = vsel %vm1790, %v1776, 0
      %1800 = vmatprep.subr.mxu0 0.0
      %1801 = vmatpush1.msra.mxu0 0.0
      %1802 = vmatprep.subr.mxu0 0.0
      %1803 = vmatpush1.msra.mxu0 0.0
      %1804 = vmatprep.subr.mxu0 0.0
      %1805 = vmatpush1.msra.mxu0 0.0
      %1806 = vmatprep.subr.mxu0 0.0
      %1807 = vmatpush1.msra.mxu0 0.0
      %1808 = vmatprep.subr.mxu0 0.0
      %1809 = vmatpush1.msra.mxu0 0.0
      %1810 = vmatprep.subr.mxu0 0.0
      %1811 = vmatpush1.msra.mxu0 0.0
      %1812 = vmatprep.subr.mxu0 0.0
      %1813 = vmatpush1.msra.mxu0 0.0
      %1814 = vmatprep.subr.mxu0 0.0
      %1815 = vmatpush1.msra.mxu0 0.0
      %1816 = vmatprep.subr.mxu0 0.0
      %1817 = vmatpush1.msra.mxu0 %v1784
      %1818 = vmatprep.subr.mxu0 0.0
      %1819 = vmatpush1.msra.mxu0 %v1783
      %1820 = vmatprep.subr.mxu0 0.0
      %1821 = vmatpush1.msra.mxu0 %v1782
      %1822 = vmatprep.subr.mxu0 0.0
      %1823 = vmatpush1.msra.mxu0 %v1781
      %1824 = vmatprep.subr.mxu0 0.0
      %1825 = vmatpush1.msra.mxu0 %v1780
      %1826 = vmatprep.subr.mxu0 0.0
      %1827 = vmatpush1.msra.mxu0 %v1779
      %1828 = vmatprep.subr.mxu0 0.0
      %1829 = vmatpush1.msra.mxu0 %v1778
      %1830 = vmatprep.subr.mxu0 0.0
      %1831 = vmatpush1.msra.mxu0 %v1777
      %1832 = vmatprep.subr.mxu0 0.0
      %1833 = vmatpush2.msra.mxu0 0.0
      %1834 = vmatprep.subr.mxu0 0.0
      %1835 = vmatpush2.msra.mxu0 0.0
      %1836 = vmatprep.subr.mxu0 0.0
      %1837 = vmatpush2.msra.mxu0 0.0
      %1838 = vmatprep.subr.mxu0 0.0
      %1839 = vmatpush2.msra.mxu0 0.0
      %1840 = vmatprep.subr.mxu0 0.0
      %1841 = vmatpush2.msra.mxu0 0.0
      %1842 = vmatprep.subr.mxu0 0.0
      %1843 = vmatpush2.msra.mxu0 0.0
      %1844 = vmatprep.subr.mxu0 0.0
      %1845 = vmatpush2.msra.mxu0 0.0
      %1846 = vmatprep.subr.mxu0 0.0
      %1847 = vmatpush2.msra.mxu0 0.0
      %1848 = vmatprep.subr.mxu0 0.0
      %1849 = vmatpush2.msra.mxu0 0.0
      %1850 = vmatprep.subr.mxu0 0.0
      %1851 = vmatpush2.msra.mxu0 0.0
      %1852 = vmatprep.subr.mxu0 0.0
      %1853 = vmatpush2.msra.mxu0 0.0
      %1854 = vmatprep.subr.mxu0 0.0
      %1855 = vmatpush2.msra.mxu0 0.0
      %1856 = vmatprep.subr.mxu0 0.0
      %1857 = vmatpush2.msra.mxu0 0.0
      %1858 = vmatprep.subr.mxu0 0.0
      %1859 = vmatpush2.msra.mxu0 0.0
      %1860 = vmatprep.subr.mxu0 0.0
      %1861 = vmatpush2.msra.mxu0 0.0
      %1862 = vmatprep.subr.mxu0 0.0
      %1863 = vmatpush2.msra.mxu0 0.0
      %1864 = vmatprep.mubr.f32.mxu0 0.0
      %1865 = vmatmul.mubr.f32.gmra.mxu0 %v1792
      %v1866 = vpop.f32.mrf.mxu0
      %v1867 = vadd.f32 %v1789, %v1866
      %v1868 = vpop.f32.mrf.mxu0
      %1869 = vmatprep.mubr.f32.mxu0 0.0
      %1870 = vmatmul.mubr.f32.gmra.mxu0 %v1795
      %v1871 = vpop.f32.mrf.mxu0
      %v1872 = vadd.f32 %v1789, %v1871
      %v1873 = vpop.f32.mrf.mxu0
      %1874 = vmatprep.mubr.f32.mxu0 0.0
      %1875 = vmatmul.mubr.f32.gmra.mxu0 %v1798
      %v1876 = vpop.f32.mrf.mxu0
      %v1877 = vadd.f32 %v1789, %v1876
      %v1878 = vpop.f32.mrf.mxu0
      %1879 = vdwg.mxu0
      %v1880 = vadd.f32 %v1594, %v1867
      %v1881 = vadd.f32 %v1595, %v1872
      %v1882 = vadd.f32 %v1596, %v1877
      %v1883 = vld [vmem:[%s1 + $0x1e2] sm:$0x1]
      %v1884 = vld [vmem:[%s1 + $0x1e3] sm:$0x1]
      %v1885 = vsel %vm289, %v1880, 0.0
      %1886 = vadd.xlane.f32.xlu0 %v1885
      %v1887 = vpop.xlane.xlu0 %1886
      %v1888 = vsel %vm289, %v1881, 0.0
      %1889 = vadd.xlane.f32.xlu0 %v1888
      %v1890 = vpop.xlane.xlu0 %1889
      %v1891 = vsel %vm289, %v1882, 0.0
      %1892 = vadd.xlane.f32.xlu0 %v1891
      %v1893 = vpop.xlane.xlu0 %1892
      %v1894 = vmul.f32 %v1887, %v299
      %v1895 = vmul.f32 %v1890, %v299
      %v1896 = vmul.f32 %v1893, %v299
      %v1897 = vsub.f32 %v1880, %v1894
      %v1898 = vsub.f32 %v1881, %v1895
      %v1899 = vsub.f32 %v1882, %v1896
      %v1900 = vmul.f32 %v1897, %v1897
      %v1901 = vmul.f32 %v1898, %v1898
      %v1902 = vmul.f32 %v1899, %v1899
      %v1903 = vsel %vm289, %v1900, 0.0
      %1904 = vadd.xlane.f32.xlu0 %v1903
      %v1905 = vpop.xlane.xlu0 %1904
      %v1906 = vsel %vm289, %v1901, 0.0
      %1907 = vadd.xlane.f32.xlu0 %v1906
      %v1908 = vpop.xlane.xlu0 %1907
      %v1909 = vsel %vm289, %v1902, 0.0
      %1910 = vadd.xlane.f32.xlu0 %v1909
      %v1911 = vpop.xlane.xlu0 %1910
      %v1912 = vmul.f32 %v1905, %v299
      %v1913 = vmul.f32 %v1908, %v299
      %v1914 = vmul.f32 %v1911, %v299
      %v1915 = vadd.f32 %v1912, 1e-06
      %v1916 = vadd.f32 %v1913, 1e-06
      %v1917 = vadd.f32 %v1914, 1e-06
      %v1918 = vrsqrt.pop %v1915
      %v1919 = vrsqrt.pop %v1916
      %v1920 = vrsqrt.pop %v1917
      %v1921 = vmul.f32 %v1897, %v1918
      %v1922 = vmul.f32 %v1898, %v1919
      %v1923 = vmul.f32 %v1899, %v1920
      %v1924 = vlaneseq
      %v1925 = vshrl.u32 %v1924, 7
      %v1926 = vsub.s32 0, %v1925
      %v1927 = vrot.slane %v1883, %v1926
      %v1928 = vmul.f32 %v1921, %v1927
      %v1929 = vmul.f32 %v1922, %v1927
      %v1930 = vmul.f32 %v1923, %v1927
      %v1931 = vlaneseq
      %v1932 = vshrl.u32 %v1931, 7
      %v1933 = vsub.s32 0, %v1932
      %v1934 = vrot.slane %v1884, %v1933
      %v1935 = vadd.f32 %v1928, %v1934
      %v1936 = vadd.f32 %v1929, %v1934
      %v1937 = vadd.f32 %v1930, %v1934
      %v1938 = vld [vmem:[%s1 + $0x140] sm:$0xff]
      %v1939 = vld [vmem:[%s1 + $0x148] sm:$0xff]
      %v1940 = vld [vmem:[%s1 + $0x150] sm:$0xff]
      %v1941 = vld [vmem:[%s1 + $0x158] sm:$0xff]
      %v1942 = vld [vmem:[%s1 + $0x1e0] sm:$0x1]
      %v1943 = vlaneseq
      %v1944 = vshrl.u32 %v1943, 7
      %v1945 = vsub.s32 0, %v1944
      %v1946 = vrot.slane %v1942, %v1945
      %v1948 = vsel %vm289, %v1935, 0
      %v1951 = vsel %vm289, %v1936, 0
      %v1954 = vsel %vm289, %v1937, 0
      %1956 = vmatprep.subr.mxu0 0.0
      %1957 = vmatpush1.msra.mxu0 0.0
      %1958 = vmatprep.subr.mxu0 0.0
      %1959 = vmatpush1.msra.mxu0 0.0
      %1960 = vmatprep.subr.mxu0 0.0
      %1961 = vmatpush1.msra.mxu0 0.0
      %1962 = vmatprep.subr.mxu0 0.0
      %1963 = vmatpush1.msra.mxu0 0.0
      %1964 = vmatprep.subr.mxu0 0.0
      %1965 = vmatpush1.msra.mxu0 0.0
      %1966 = vmatprep.subr.mxu0 0.0
      %1967 = vmatpush1.msra.mxu0 0.0
      %1968 = vmatprep.subr.mxu0 0.0
      %1969 = vmatpush1.msra.mxu0 0.0
      %1970 = vmatprep.subr.mxu0 0.0
      %1971 = vmatpush1.msra.mxu0 0.0
      %1972 = vmatprep.subr.mxu0 0.0
      %1973 = vmatpush1.msra.mxu0 0.0
      %1974 = vmatprep.subr.mxu0 0.0
      %1975 = vmatpush1.msra.mxu0 0.0
      %1976 = vmatprep.subr.mxu0 0.0
      %1977 = vmatpush1.msra.mxu0 0.0
      %1978 = vmatprep.subr.mxu0 0.0
      %1979 = vmatpush1.msra.mxu0 0.0
      %1980 = vmatprep.subr.mxu0 0.0
      %1981 = vmatpush1.msra.mxu0 %v1941
      %1982 = vmatprep.subr.mxu0 0.0
      %1983 = vmatpush1.msra.mxu0 %v1940
      %1984 = vmatprep.subr.mxu0 0.0
      %1985 = vmatpush1.msra.mxu0 %v1939
      %1986 = vmatprep.subr.mxu0 0.0
      %1987 = vmatpush1.msra.mxu0 %v1938
      %1988 = vmatprep.subr.mxu0 0.0
      %1989 = vmatpush2.msra.mxu0 0.0
      %1990 = vmatprep.subr.mxu0 0.0
      %1991 = vmatpush2.msra.mxu0 0.0
      %1992 = vmatprep.subr.mxu0 0.0
      %1993 = vmatpush2.msra.mxu0 0.0
      %1994 = vmatprep.subr.mxu0 0.0
      %1995 = vmatpush2.msra.mxu0 0.0
      %1996 = vmatprep.subr.mxu0 0.0
      %1997 = vmatpush2.msra.mxu0 0.0
      %1998 = vmatprep.subr.mxu0 0.0
      %1999 = vmatpush2.msra.mxu0 0.0
      %2000 = vmatprep.subr.mxu0 0.0
      %2001 = vmatpush2.msra.mxu0 0.0
      %2002 = vmatprep.subr.mxu0 0.0
      %2003 = vmatpush2.msra.mxu0 0.0
      %2004 = vmatprep.subr.mxu0 0.0
      %2005 = vmatpush2.msra.mxu0 0.0
      %2006 = vmatprep.subr.mxu0 0.0
      %2007 = vmatpush2.msra.mxu0 0.0
      %2008 = vmatprep.subr.mxu0 0.0
      %2009 = vmatpush2.msra.mxu0 0.0
      %2010 = vmatprep.subr.mxu0 0.0
      %2011 = vmatpush2.msra.mxu0 0.0
      %2012 = vmatprep.subr.mxu0 0.0
      %2013 = vmatpush2.msra.mxu0 0.0
      %2014 = vmatprep.subr.mxu0 0.0
      %2015 = vmatpush2.msra.mxu0 0.0
      %2016 = vmatprep.subr.mxu0 0.0
      %2017 = vmatpush2.msra.mxu0 0.0
      %2018 = vmatprep.subr.mxu0 0.0
      %2019 = vmatpush2.msra.mxu0 0.0
      %2020 = vmatprep.mubr.f32.mxu0 0.0
      %2021 = vmatmul.mubr.f32.gmra.mxu0 %v1948
      %v2022 = vpop.f32.mrf.mxu0
      %v2023 = vadd.f32 %v1946, %v2022
      %v2024 = vpop.f32.mrf.mxu0
      %2025 = vmatprep.mubr.f32.mxu0 0.0
      %2026 = vmatmul.mubr.f32.gmra.mxu0 %v1951
      %v2027 = vpop.f32.mrf.mxu0
      %v2028 = vadd.f32 %v1946, %v2027
      %v2029 = vpop.f32.mrf.mxu0
      %2030 = vmatprep.mubr.f32.mxu0 0.0
      %2031 = vmatmul.mubr.f32.gmra.mxu0 %v1954
      %v2032 = vpop.f32.mrf.mxu0
      %v2033 = vadd.f32 %v1946, %v2032
      %v2034 = vpop.f32.mrf.mxu0
      %2035 = vdwg.mxu0
      %2039 = vrot.lane.b32.xlu0 %v2023, 96
      %v2040 = vpop.permute.xlu0 %2039
      %2041 = vrot.lane.b32.xlu0 %v2028, 96
      %v2042 = vpop.permute.xlu0 %2041
      %2043 = vrot.lane.b32.xlu0 %v2033, 96
      %v2044 = vpop.permute.xlu0 %2043
      %v2045 = vsel %vm451, %v2023, 0
      %v2047 = vsel %vm451, %v2028, 0
      %v2049 = vsel %vm451, %v2033, 0
      %v2051 = vsel %vm451, %v2040, 0
      %v2053 = vsel %vm451, %v2042, 0
      %v2055 = vsel %vm451, %v2044, 0
      %2057 = vmatprep.subr.mxu0 0.0
      %2058 = vmatpush1.xpose.msra.mxu0 0.0
      %2059 = vmatprep.subr.mxu0 0.0
      %2060 = vmatpush1.xpose.msra.mxu0 0.0
      %2061 = vmatprep.subr.mxu0 0.0
      %2062 = vmatpush1.xpose.msra.mxu0 0.0
      %2063 = vmatprep.subr.mxu0 0.0
      %2064 = vmatpush1.xpose.msra.mxu0 0.0
      %2065 = vmatprep.subr.mxu0 0.0
      %2066 = vmatpush1.xpose.msra.mxu0 0.0
      %2067 = vmatprep.subr.mxu0 0.0
      %2068 = vmatpush1.xpose.msra.mxu0 0.0
      %2069 = vmatprep.subr.mxu0 0.0
      %2070 = vmatpush1.xpose.msra.mxu0 0.0
      %2071 = vmatprep.subr.mxu0 0.0
      %2072 = vmatpush1.xpose.msra.mxu0 0.0
      %2073 = vmatprep.subr.mxu0 0.0
      %2074 = vmatpush1.xpose.msra.mxu0 0.0
      %2075 = vmatprep.subr.mxu0 0.0
      %2076 = vmatpush1.xpose.msra.mxu0 0.0
      %2077 = vmatprep.subr.mxu0 0.0
      %2078 = vmatpush1.xpose.msra.mxu0 0.0
      %2079 = vmatprep.subr.mxu0 0.0
      %2080 = vmatpush1.xpose.msra.mxu0 0.0
      %2081 = vmatprep.subr.mxu0 0.0
      %2082 = vmatpush1.xpose.msra.mxu0 0.0
      %2083 = vmatprep.subr.mxu0 0.0
      %2084 = vmatpush1.xpose.msra.mxu0 %v2055
      %2085 = vmatprep.subr.mxu0 0.0
      %2086 = vmatpush1.xpose.msra.mxu0 %v2053
      %2087 = vmatprep.subr.mxu0 0.0
      %2088 = vmatpush1.xpose.msra.mxu0 %v2051
      %2089 = vmatprep.subr.mxu0 0.0
      %2090 = vmatpush2.xpose.msra.mxu0 0.0
      %2091 = vmatprep.subr.mxu0 0.0
      %2092 = vmatpush2.xpose.msra.mxu0 0.0
      %2093 = vmatprep.subr.mxu0 0.0
      %2094 = vmatpush2.xpose.msra.mxu0 0.0
      %2095 = vmatprep.subr.mxu0 0.0
      %2096 = vmatpush2.xpose.msra.mxu0 0.0
      %2097 = vmatprep.subr.mxu0 0.0
      %2098 = vmatpush2.xpose.msra.mxu0 0.0
      %2099 = vmatprep.subr.mxu0 0.0
      %2100 = vmatpush2.xpose.msra.mxu0 0.0
      %2101 = vmatprep.subr.mxu0 0.0
      %2102 = vmatpush2.xpose.msra.mxu0 0.0
      %2103 = vmatprep.subr.mxu0 0.0
      %2104 = vmatpush2.xpose.msra.mxu0 0.0
      %2105 = vmatprep.subr.mxu0 0.0
      %2106 = vmatpush2.xpose.msra.mxu0 0.0
      %2107 = vmatprep.subr.mxu0 0.0
      %2108 = vmatpush2.xpose.msra.mxu0 0.0
      %2109 = vmatprep.subr.mxu0 0.0
      %2110 = vmatpush2.xpose.msra.mxu0 0.0
      %2111 = vmatprep.subr.mxu0 0.0
      %2112 = vmatpush2.xpose.msra.mxu0 0.0
      %2113 = vmatprep.subr.mxu0 0.0
      %2114 = vmatpush2.xpose.msra.mxu0 0.0
      %2115 = vmatprep.subr.mxu0 0.0
      %2116 = vmatpush2.xpose.msra.mxu0 0.0
      %2117 = vmatprep.subr.mxu0 0.0
      %2118 = vmatpush2.xpose.msra.mxu0 0.0
      %2119 = vmatprep.subr.mxu0 0.0
      %2120 = vmatpush2.xpose.msra.mxu0 0.0
      %2121 = vmatprep.mubr.f32.mxu0 0.0
      %2122 = vmatmul.mubr.f32.gmra.mxu0 %v2045
      %v2123 = vpop.f32.mrf.mxu0
      %v2124 = vadd.f32 0.0, %v2123
      %v2125 = vpop.f32.mrf.mxu0
      %2126 = vmatprep.mubr.f32.mxu0 0.0
      %2127 = vmatmul.mubr.f32.gmra.mxu0 %v2047
      %v2128 = vpop.f32.mrf.mxu0
      %v2129 = vadd.f32 0.0, %v2128
      %v2130 = vpop.f32.mrf.mxu0
      %2131 = vmatprep.mubr.f32.mxu0 0.0
      %2132 = vmatmul.mubr.f32.gmra.mxu0 %v2049
      %v2133 = vpop.f32.mrf.mxu0
      %v2134 = vadd.f32 0.0, %v2133
      %v2135 = vpop.f32.mrf.mxu0
      %2136 = vdwg.mxu0
      %v2137 = vmul.f32 %v2124, 0.35355338
      %v2138 = vmul.f32 %v2129, 0.35355338
      %v2139 = vmul.f32 %v2134, 0.35355338
      %v2140 = vsel %vm286, %v2137, -1e+30
      %v2141 = vsel %vm286, %v2138, -1e+30
      %v2142 = vsel %vm286, %v2139, -1e+30
      %v2143 = vsel %vm550, %v2140, -inf
      %2144 = vmax.xlane.f32.xlu0 %v2143
      %v2145 = vpop.xlane.xlu0 %2144
      %v2146 = vsel %vm550, %v2141, -inf
      %2147 = vmax.xlane.f32.xlu0 %v2146
      %v2148 = vpop.xlane.xlu0 %2147
      %v2149 = vsel %vm550, %v2142, -inf
      %2150 = vmax.xlane.f32.xlu0 %v2149
      %v2151 = vpop.xlane.xlu0 %2150
      %v2152 = vsub.f32 %v2140, %v2145
      %v2153 = vsub.f32 %v2141, %v2148
      %v2154 = vsub.f32 %v2142, %v2151
      %v2155 = vmul.f32 %v2152, 1.442695
      %v2156 = vpow.pop %v2155
      %v2157 = vmul.f32 %v2153, 1.442695
      %v2158 = vpow.pop %v2157
      %v2159 = vmul.f32 %v2154, 1.442695
      %v2160 = vpow.pop %v2159
      %v2161 = vsel %vm550, %v2156, 0.0
      %2162 = vadd.xlane.f32.xlu0 %v2161
      %v2163 = vpop.xlane.xlu0 %2162
      %v2164 = vsel %vm550, %v2158, 0.0
      %2165 = vadd.xlane.f32.xlu0 %v2164
      %v2166 = vpop.xlane.xlu0 %2165
      %v2167 = vsel %vm550, %v2160, 0.0
      %2168 = vadd.xlane.f32.xlu0 %v2167
      %v2169 = vpop.xlane.xlu0 %2168
      %v2170 = vrcp.pop %v2163
      %v2171 = vrcp.pop %v2166
      %v2172 = vrcp.pop %v2169
      %v2173 = vmul.f32 %v2156, %v2170
      %v2174 = vmul.f32 %v2158, %v2171
      %v2175 = vmul.f32 %v2160, %v2172
      %2176 = vrot.lane.b32.xlu0 %v2023, 64
      %v2177 = vpop.permute.xlu0 %2176
      %2178 = vrot.lane.b32.xlu0 %v2028, 64
      %v2179 = vpop.permute.xlu0 %2178
      %2180 = vrot.lane.b32.xlu0 %v2033, 64
      %v2181 = vpop.permute.xlu0 %2180
      %v2186 = vsel %vm550, %v2173, 0
      %v2189 = vsel %vm550, %v2174, 0
      %v2192 = vsel %vm550, %v2175, 0
      %2194 = vmatprep.subr.mxu0 0.0
      %2195 = vmatpush1.msra.mxu0 0.0
      %2196 = vmatprep.subr.mxu0 0.0
      %2197 = vmatpush1.msra.mxu0 0.0
      %2198 = vmatprep.subr.mxu0 0.0
      %2199 = vmatpush1.msra.mxu0 0.0
      %2200 = vmatprep.subr.mxu0 0.0
      %2201 = vmatpush1.msra.mxu0 0.0
      %2202 = vmatprep.subr.mxu0 0.0
      %2203 = vmatpush1.msra.mxu0 0.0
      %2204 = vmatprep.subr.mxu0 0.0
      %2205 = vmatpush1.msra.mxu0 0.0
      %2206 = vmatprep.subr.mxu0 0.0
      %2207 = vmatpush1.msra.mxu0 0.0
      %2208 = vmatprep.subr.mxu0 0.0
      %2209 = vmatpush1.msra.mxu0 0.0
      %2210 = vmatprep.subr.mxu0 0.0
      %2211 = vmatpush1.msra.mxu0 0.0
      %2212 = vmatprep.subr.mxu0 0.0
      %2213 = vmatpush1.msra.mxu0 0.0
      %2214 = vmatprep.subr.mxu0 0.0
      %2215 = vmatpush1.msra.mxu0 0.0
      %2216 = vmatprep.subr.mxu0 0.0
      %2217 = vmatpush1.msra.mxu0 0.0
      %2218 = vmatprep.subr.mxu0 0.0
      %2219 = vmatpush1.msra.mxu0 0.0
      %2220 = vmatprep.subr.mxu0 0.0
      %2221 = vmatpush1.msra.mxu0 %v2181
      %2222 = vmatprep.subr.mxu0 0.0
      %2223 = vmatpush1.msra.mxu0 %v2179
      %2224 = vmatprep.subr.mxu0 0.0
      %2225 = vmatpush1.msra.mxu0 %v2177
      %2226 = vmatprep.subr.mxu0 0.0
      %2227 = vmatpush2.msra.mxu0 0.0
      %2228 = vmatprep.subr.mxu0 0.0
      %2229 = vmatpush2.msra.mxu0 0.0
      %2230 = vmatprep.subr.mxu0 0.0
      %2231 = vmatpush2.msra.mxu0 0.0
      %2232 = vmatprep.subr.mxu0 0.0
      %2233 = vmatpush2.msra.mxu0 0.0
      %2234 = vmatprep.subr.mxu0 0.0
      %2235 = vmatpush2.msra.mxu0 0.0
      %2236 = vmatprep.subr.mxu0 0.0
      %2237 = vmatpush2.msra.mxu0 0.0
      %2238 = vmatprep.subr.mxu0 0.0
      %2239 = vmatpush2.msra.mxu0 0.0
      %2240 = vmatprep.subr.mxu0 0.0
      %2241 = vmatpush2.msra.mxu0 0.0
      %2242 = vmatprep.subr.mxu0 0.0
      %2243 = vmatpush2.msra.mxu0 0.0
      %2244 = vmatprep.subr.mxu0 0.0
      %2245 = vmatpush2.msra.mxu0 0.0
      %2246 = vmatprep.subr.mxu0 0.0
      %2247 = vmatpush2.msra.mxu0 0.0
      %2248 = vmatprep.subr.mxu0 0.0
      %2249 = vmatpush2.msra.mxu0 0.0
      %2250 = vmatprep.subr.mxu0 0.0
      %2251 = vmatpush2.msra.mxu0 0.0
      %2252 = vmatprep.subr.mxu0 0.0
      %2253 = vmatpush2.msra.mxu0 0.0
      %2254 = vmatprep.subr.mxu0 0.0
      %2255 = vmatpush2.msra.mxu0 0.0
      %2256 = vmatprep.subr.mxu0 0.0
      %2257 = vmatpush2.msra.mxu0 0.0
      %2258 = vmatprep.mubr.f32.mxu0 0.0
      %2259 = vmatmul.mubr.f32.gmra.mxu0 %v2186
      %v2260 = vpop.f32.mrf.mxu0
      %v2261 = vadd.f32 0.0, %v2260
      %v2262 = vpop.f32.mrf.mxu0
      %2263 = vmatprep.mubr.f32.mxu0 0.0
      %2264 = vmatmul.mubr.f32.gmra.mxu0 %v2189
      %v2265 = vpop.f32.mrf.mxu0
      %v2266 = vadd.f32 0.0, %v2265
      %v2267 = vpop.f32.mrf.mxu0
      %2268 = vmatprep.mubr.f32.mxu0 0.0
      %2269 = vmatmul.mubr.f32.gmra.mxu0 %v2192
      %v2270 = vpop.f32.mrf.mxu0
      %v2271 = vadd.f32 0.0, %v2270
      %v2272 = vpop.f32.mrf.mxu0
      %2273 = vdwg.mxu0
      %2274 = vrot.lane.b32.xlu0 %v2023, 120
      %v2275 = vpop.permute.xlu0 %2274
      %2276 = vrot.lane.b32.xlu0 %v2028, 120
      %v2277 = vpop.permute.xlu0 %2276
      %2278 = vrot.lane.b32.xlu0 %v2033, 120
      %v2279 = vpop.permute.xlu0 %2278
      %2280 = vrot.lane.b32.xlu0 %v2023, 88
      %v2281 = vpop.permute.xlu0 %2280
      %2282 = vrot.lane.b32.xlu0 %v2028, 88
      %v2283 = vpop.permute.xlu0 %2282
      %2284 = vrot.lane.b32.xlu0 %v2033, 88
      %v2285 = vpop.permute.xlu0 %2284
      %v2286 = vsel %vm451, %v2275, 0
      %v2288 = vsel %vm451, %v2277, 0
      %v2290 = vsel %vm451, %v2279, 0
      %v2292 = vsel %vm451, %v2281, 0
      %v2294 = vsel %vm451, %v2283, 0
      %v2296 = vsel %vm451, %v2285, 0
      %2298 = vmatprep.subr.mxu0 0.0
      %2299 = vmatpush1.xpose.msra.mxu0 0.0
      %2300 = vmatprep.subr.mxu0 0.0
      %2301 = vmatpush1.xpose.msra.mxu0 0.0
      %2302 = vmatprep.subr.mxu0 0.0
      %2303 = vmatpush1.xpose.msra.mxu0 0.0
      %2304 = vmatprep.subr.mxu0 0.0
      %2305 = vmatpush1.xpose.msra.mxu0 0.0
      %2306 = vmatprep.subr.mxu0 0.0
      %2307 = vmatpush1.xpose.msra.mxu0 0.0
      %2308 = vmatprep.subr.mxu0 0.0
      %2309 = vmatpush1.xpose.msra.mxu0 0.0
      %2310 = vmatprep.subr.mxu0 0.0
      %2311 = vmatpush1.xpose.msra.mxu0 0.0
      %2312 = vmatprep.subr.mxu0 0.0
      %2313 = vmatpush1.xpose.msra.mxu0 0.0
      %2314 = vmatprep.subr.mxu0 0.0
      %2315 = vmatpush1.xpose.msra.mxu0 0.0
      %2316 = vmatprep.subr.mxu0 0.0
      %2317 = vmatpush1.xpose.msra.mxu0 0.0
      %2318 = vmatprep.subr.mxu0 0.0
      %2319 = vmatpush1.xpose.msra.mxu0 0.0
      %2320 = vmatprep.subr.mxu0 0.0
      %2321 = vmatpush1.xpose.msra.mxu0 0.0
      %2322 = vmatprep.subr.mxu0 0.0
      %2323 = vmatpush1.xpose.msra.mxu0 0.0
      %2324 = vmatprep.subr.mxu0 0.0
      %2325 = vmatpush1.xpose.msra.mxu0 %v2296
      %2326 = vmatprep.subr.mxu0 0.0
      %2327 = vmatpush1.xpose.msra.mxu0 %v2294
      %2328 = vmatprep.subr.mxu0 0.0
      %2329 = vmatpush1.xpose.msra.mxu0 %v2292
      %2330 = vmatprep.subr.mxu0 0.0
      %2331 = vmatpush2.xpose.msra.mxu0 0.0
      %2332 = vmatprep.subr.mxu0 0.0
      %2333 = vmatpush2.xpose.msra.mxu0 0.0
      %2334 = vmatprep.subr.mxu0 0.0
      %2335 = vmatpush2.xpose.msra.mxu0 0.0
      %2336 = vmatprep.subr.mxu0 0.0
      %2337 = vmatpush2.xpose.msra.mxu0 0.0
      %2338 = vmatprep.subr.mxu0 0.0
      %2339 = vmatpush2.xpose.msra.mxu0 0.0
      %2340 = vmatprep.subr.mxu0 0.0
      %2341 = vmatpush2.xpose.msra.mxu0 0.0
      %2342 = vmatprep.subr.mxu0 0.0
      %2343 = vmatpush2.xpose.msra.mxu0 0.0
      %2344 = vmatprep.subr.mxu0 0.0
      %2345 = vmatpush2.xpose.msra.mxu0 0.0
      %2346 = vmatprep.subr.mxu0 0.0
      %2347 = vmatpush2.xpose.msra.mxu0 0.0
      %2348 = vmatprep.subr.mxu0 0.0
      %2349 = vmatpush2.xpose.msra.mxu0 0.0
      %2350 = vmatprep.subr.mxu0 0.0
      %2351 = vmatpush2.xpose.msra.mxu0 0.0
      %2352 = vmatprep.subr.mxu0 0.0
      %2353 = vmatpush2.xpose.msra.mxu0 0.0
      %2354 = vmatprep.subr.mxu0 0.0
      %2355 = vmatpush2.xpose.msra.mxu0 0.0
      %2356 = vmatprep.subr.mxu0 0.0
      %2357 = vmatpush2.xpose.msra.mxu0 0.0
      %2358 = vmatprep.subr.mxu0 0.0
      %2359 = vmatpush2.xpose.msra.mxu0 0.0
      %2360 = vmatprep.subr.mxu0 0.0
      %2361 = vmatpush2.xpose.msra.mxu0 0.0
      %2362 = vmatprep.mubr.f32.mxu0 0.0
      %2363 = vmatmul.mubr.f32.gmra.mxu0 %v2286
      %v2364 = vpop.f32.mrf.mxu0
      %v2365 = vadd.f32 0.0, %v2364
      %v2366 = vpop.f32.mrf.mxu0
      %2367 = vmatprep.mubr.f32.mxu0 0.0
      %2368 = vmatmul.mubr.f32.gmra.mxu0 %v2288
      %v2369 = vpop.f32.mrf.mxu0
      %v2370 = vadd.f32 0.0, %v2369
      %v2371 = vpop.f32.mrf.mxu0
      %2372 = vmatprep.mubr.f32.mxu0 0.0
      %2373 = vmatmul.mubr.f32.gmra.mxu0 %v2290
      %v2374 = vpop.f32.mrf.mxu0
      %v2375 = vadd.f32 0.0, %v2374
      %v2376 = vpop.f32.mrf.mxu0
      %2377 = vdwg.mxu0
      %v2378 = vmul.f32 %v2365, 0.35355338
      %v2379 = vmul.f32 %v2370, 0.35355338
      %v2380 = vmul.f32 %v2375, 0.35355338
      %v2381 = vsel %vm286, %v2378, -1e+30
      %v2382 = vsel %vm286, %v2379, -1e+30
      %v2383 = vsel %vm286, %v2380, -1e+30
      %v2384 = vsel %vm550, %v2381, -inf
      %2385 = vmax.xlane.f32.xlu0 %v2384
      %v2386 = vpop.xlane.xlu0 %2385
      %v2387 = vsel %vm550, %v2382, -inf
      %2388 = vmax.xlane.f32.xlu0 %v2387
      %v2389 = vpop.xlane.xlu0 %2388
      %v2390 = vsel %vm550, %v2383, -inf
      %2391 = vmax.xlane.f32.xlu0 %v2390
      %v2392 = vpop.xlane.xlu0 %2391
      %v2393 = vsub.f32 %v2381, %v2386
      %v2394 = vsub.f32 %v2382, %v2389
      %v2395 = vsub.f32 %v2383, %v2392
      %v2396 = vmul.f32 %v2393, 1.442695
      %v2397 = vpow.pop %v2396
      %v2398 = vmul.f32 %v2394, 1.442695
      %v2399 = vpow.pop %v2398
      %v2400 = vmul.f32 %v2395, 1.442695
      %v2401 = vpow.pop %v2400
      %v2402 = vsel %vm550, %v2397, 0.0
      %2403 = vadd.xlane.f32.xlu0 %v2402
      %v2404 = vpop.xlane.xlu0 %2403
      %v2405 = vsel %vm550, %v2399, 0.0
      %2406 = vadd.xlane.f32.xlu0 %v2405
      %v2407 = vpop.xlane.xlu0 %2406
      %v2408 = vsel %vm550, %v2401, 0.0
      %2409 = vadd.xlane.f32.xlu0 %v2408
      %v2410 = vpop.xlane.xlu0 %2409
      %v2411 = vrcp.pop %v2404
      %v2412 = vrcp.pop %v2407
      %v2413 = vrcp.pop %v2410
      %v2414 = vmul.f32 %v2397, %v2411
      %v2415 = vmul.f32 %v2399, %v2412
      %v2416 = vmul.f32 %v2401, %v2413
      %2417 = vrot.lane.b32.xlu0 %v2023, 56
      %v2418 = vpop.permute.xlu0 %2417
      %2419 = vrot.lane.b32.xlu0 %v2028, 56
      %v2420 = vpop.permute.xlu0 %2419
      %2421 = vrot.lane.b32.xlu0 %v2033, 56
      %v2422 = vpop.permute.xlu0 %2421
      %v2427 = vsel %vm550, %v2414, 0
      %v2430 = vsel %vm550, %v2415, 0
      %v2433 = vsel %vm550, %v2416, 0
      %2435 = vmatprep.subr.mxu0 0.0
      %2436 = vmatpush1.msra.mxu0 0.0
      %2437 = vmatprep.subr.mxu0 0.0
      %2438 = vmatpush1.msra.mxu0 0.0
      %2439 = vmatprep.subr.mxu0 0.0
      %2440 = vmatpush1.msra.mxu0 0.0
      %2441 = vmatprep.subr.mxu0 0.0
      %2442 = vmatpush1.msra.mxu0 0.0
      %2443 = vmatprep.subr.mxu0 0.0
      %2444 = vmatpush1.msra.mxu0 0.0
      %2445 = vmatprep.subr.mxu0 0.0
      %2446 = vmatpush1.msra.mxu0 0.0
      %2447 = vmatprep.subr.mxu0 0.0
      %2448 = vmatpush1.msra.mxu0 0.0
      %2449 = vmatprep.subr.mxu0 0.0
      %2450 = vmatpush1.msra.mxu0 0.0
      %2451 = vmatprep.subr.mxu0 0.0
      %2452 = vmatpush1.msra.mxu0 0.0
      %2453 = vmatprep.subr.mxu0 0.0
      %2454 = vmatpush1.msra.mxu0 0.0
      %2455 = vmatprep.subr.mxu0 0.0
      %2456 = vmatpush1.msra.mxu0 0.0
      %2457 = vmatprep.subr.mxu0 0.0
      %2458 = vmatpush1.msra.mxu0 0.0
      %2459 = vmatprep.subr.mxu0 0.0
      %2460 = vmatpush1.msra.mxu0 0.0
      %2461 = vmatprep.subr.mxu0 0.0
      %2462 = vmatpush1.msra.mxu0 %v2422
      %2463 = vmatprep.subr.mxu0 0.0
      %2464 = vmatpush1.msra.mxu0 %v2420
      %2465 = vmatprep.subr.mxu0 0.0
      %2466 = vmatpush1.msra.mxu0 %v2418
      %2467 = vmatprep.subr.mxu0 0.0
      %2468 = vmatpush2.msra.mxu0 0.0
      %2469 = vmatprep.subr.mxu0 0.0
      %2470 = vmatpush2.msra.mxu0 0.0
      %2471 = vmatprep.subr.mxu0 0.0
      %2472 = vmatpush2.msra.mxu0 0.0
      %2473 = vmatprep.subr.mxu0 0.0
      %2474 = vmatpush2.msra.mxu0 0.0
      %2475 = vmatprep.subr.mxu0 0.0
      %2476 = vmatpush2.msra.mxu0 0.0
      %2477 = vmatprep.subr.mxu0 0.0
      %2478 = vmatpush2.msra.mxu0 0.0
      %2479 = vmatprep.subr.mxu0 0.0
      %2480 = vmatpush2.msra.mxu0 0.0
      %2481 = vmatprep.subr.mxu0 0.0
      %2482 = vmatpush2.msra.mxu0 0.0
      %2483 = vmatprep.subr.mxu0 0.0
      %2484 = vmatpush2.msra.mxu0 0.0
      %2485 = vmatprep.subr.mxu0 0.0
      %2486 = vmatpush2.msra.mxu0 0.0
      %2487 = vmatprep.subr.mxu0 0.0
      %2488 = vmatpush2.msra.mxu0 0.0
      %2489 = vmatprep.subr.mxu0 0.0
      %2490 = vmatpush2.msra.mxu0 0.0
      %2491 = vmatprep.subr.mxu0 0.0
      %2492 = vmatpush2.msra.mxu0 0.0
      %2493 = vmatprep.subr.mxu0 0.0
      %2494 = vmatpush2.msra.mxu0 0.0
      %2495 = vmatprep.subr.mxu0 0.0
      %2496 = vmatpush2.msra.mxu0 0.0
      %2497 = vmatprep.subr.mxu0 0.0
      %2498 = vmatpush2.msra.mxu0 0.0
      %2499 = vmatprep.mubr.f32.mxu0 0.0
      %2500 = vmatmul.mubr.f32.gmra.mxu0 %v2427
      %v2501 = vpop.f32.mrf.mxu0
      %v2502 = vadd.f32 0.0, %v2501
      %v2503 = vpop.f32.mrf.mxu0
      %2504 = vmatprep.mubr.f32.mxu0 0.0
      %2505 = vmatmul.mubr.f32.gmra.mxu0 %v2430
      %v2506 = vpop.f32.mrf.mxu0
      %v2507 = vadd.f32 0.0, %v2506
      %v2508 = vpop.f32.mrf.mxu0
      %2509 = vmatprep.mubr.f32.mxu0 0.0
      %2510 = vmatmul.mubr.f32.gmra.mxu0 %v2433
      %v2511 = vpop.f32.mrf.mxu0
      %v2512 = vadd.f32 0.0, %v2511
      %v2513 = vpop.f32.mrf.mxu0
      %2514 = vdwg.mxu0
      %2515 = vrot.lane.b32.xlu0 %v2023, 112
      %v2516 = vpop.permute.xlu0 %2515
      %2517 = vrot.lane.b32.xlu0 %v2028, 112
      %v2518 = vpop.permute.xlu0 %2517
      %2519 = vrot.lane.b32.xlu0 %v2033, 112
      %v2520 = vpop.permute.xlu0 %2519
      %2521 = vrot.lane.b32.xlu0 %v2023, 80
      %v2522 = vpop.permute.xlu0 %2521
      %2523 = vrot.lane.b32.xlu0 %v2028, 80
      %v2524 = vpop.permute.xlu0 %2523
      %2525 = vrot.lane.b32.xlu0 %v2033, 80
      %v2526 = vpop.permute.xlu0 %2525
      %v2527 = vsel %vm451, %v2516, 0
      %v2529 = vsel %vm451, %v2518, 0
      %v2531 = vsel %vm451, %v2520, 0
      %v2533 = vsel %vm451, %v2522, 0
      %v2535 = vsel %vm451, %v2524, 0
      %v2537 = vsel %vm451, %v2526, 0
      %2539 = vmatprep.subr.mxu0 0.0
      %2540 = vmatpush1.xpose.msra.mxu0 0.0
      %2541 = vmatprep.subr.mxu0 0.0
      %2542 = vmatpush1.xpose.msra.mxu0 0.0
      %2543 = vmatprep.subr.mxu0 0.0
      %2544 = vmatpush1.xpose.msra.mxu0 0.0
      %2545 = vmatprep.subr.mxu0 0.0
      %2546 = vmatpush1.xpose.msra.mxu0 0.0
      %2547 = vmatprep.subr.mxu0 0.0
      %2548 = vmatpush1.xpose.msra.mxu0 0.0
      %2549 = vmatprep.subr.mxu0 0.0
      %2550 = vmatpush1.xpose.msra.mxu0 0.0
      %2551 = vmatprep.subr.mxu0 0.0
      %2552 = vmatpush1.xpose.msra.mxu0 0.0
      %2553 = vmatprep.subr.mxu0 0.0
      %2554 = vmatpush1.xpose.msra.mxu0 0.0
      %2555 = vmatprep.subr.mxu0 0.0
      %2556 = vmatpush1.xpose.msra.mxu0 0.0
      %2557 = vmatprep.subr.mxu0 0.0
      %2558 = vmatpush1.xpose.msra.mxu0 0.0
      %2559 = vmatprep.subr.mxu0 0.0
      %2560 = vmatpush1.xpose.msra.mxu0 0.0
      %2561 = vmatprep.subr.mxu0 0.0
      %2562 = vmatpush1.xpose.msra.mxu0 0.0
      %2563 = vmatprep.subr.mxu0 0.0
      %2564 = vmatpush1.xpose.msra.mxu0 0.0
      %2565 = vmatprep.subr.mxu0 0.0
      %2566 = vmatpush1.xpose.msra.mxu0 %v2537
      %2567 = vmatprep.subr.mxu0 0.0
      %2568 = vmatpush1.xpose.msra.mxu0 %v2535
      %2569 = vmatprep.subr.mxu0 0.0
      %2570 = vmatpush1.xpose.msra.mxu0 %v2533
      %2571 = vmatprep.subr.mxu0 0.0
      %2572 = vmatpush2.xpose.msra.mxu0 0.0
      %2573 = vmatprep.subr.mxu0 0.0
      %2574 = vmatpush2.xpose.msra.mxu0 0.0
      %2575 = vmatprep.subr.mxu0 0.0
      %2576 = vmatpush2.xpose.msra.mxu0 0.0
      %2577 = vmatprep.subr.mxu0 0.0
      %2578 = vmatpush2.xpose.msra.mxu0 0.0
      %2579 = vmatprep.subr.mxu0 0.0
      %2580 = vmatpush2.xpose.msra.mxu0 0.0
      %2581 = vmatprep.subr.mxu0 0.0
      %2582 = vmatpush2.xpose.msra.mxu0 0.0
      %2583 = vmatprep.subr.mxu0 0.0
      %2584 = vmatpush2.xpose.msra.mxu0 0.0
      %2585 = vmatprep.subr.mxu0 0.0
      %2586 = vmatpush2.xpose.msra.mxu0 0.0
      %2587 = vmatprep.subr.mxu0 0.0
      %2588 = vmatpush2.xpose.msra.mxu0 0.0
      %2589 = vmatprep.subr.mxu0 0.0
      %2590 = vmatpush2.xpose.msra.mxu0 0.0
      %2591 = vmatprep.subr.mxu0 0.0
      %2592 = vmatpush2.xpose.msra.mxu0 0.0
      %2593 = vmatprep.subr.mxu0 0.0
      %2594 = vmatpush2.xpose.msra.mxu0 0.0
      %2595 = vmatprep.subr.mxu0 0.0
      %2596 = vmatpush2.xpose.msra.mxu0 0.0
      %2597 = vmatprep.subr.mxu0 0.0
      %2598 = vmatpush2.xpose.msra.mxu0 0.0
      %2599 = vmatprep.subr.mxu0 0.0
      %2600 = vmatpush2.xpose.msra.mxu0 0.0
      %2601 = vmatprep.subr.mxu0 0.0
      %2602 = vmatpush2.xpose.msra.mxu0 0.0
      %2603 = vmatprep.mubr.f32.mxu0 0.0
      %2604 = vmatmul.mubr.f32.gmra.mxu0 %v2527
      %v2605 = vpop.f32.mrf.mxu0
      %v2606 = vadd.f32 0.0, %v2605
      %v2607 = vpop.f32.mrf.mxu0
      %2608 = vmatprep.mubr.f32.mxu0 0.0
      %2609 = vmatmul.mubr.f32.gmra.mxu0 %v2529
      %v2610 = vpop.f32.mrf.mxu0
      %v2611 = vadd.f32 0.0, %v2610
      %v2612 = vpop.f32.mrf.mxu0
      %2613 = vmatprep.mubr.f32.mxu0 0.0
      %2614 = vmatmul.mubr.f32.gmra.mxu0 %v2531
      %v2615 = vpop.f32.mrf.mxu0
      %v2616 = vadd.f32 0.0, %v2615
      %v2617 = vpop.f32.mrf.mxu0
      %2618 = vdwg.mxu0
      %v2619 = vmul.f32 %v2606, 0.35355338
      %v2620 = vmul.f32 %v2611, 0.35355338
      %v2621 = vmul.f32 %v2616, 0.35355338
      %v2622 = vsel %vm286, %v2619, -1e+30
      %v2623 = vsel %vm286, %v2620, -1e+30
      %v2624 = vsel %vm286, %v2621, -1e+30
      %v2625 = vsel %vm550, %v2622, -inf
      %2626 = vmax.xlane.f32.xlu0 %v2625
      %v2627 = vpop.xlane.xlu0 %2626
      %v2628 = vsel %vm550, %v2623, -inf
      %2629 = vmax.xlane.f32.xlu0 %v2628
      %v2630 = vpop.xlane.xlu0 %2629
      %v2631 = vsel %vm550, %v2624, -inf
      %2632 = vmax.xlane.f32.xlu0 %v2631
      %v2633 = vpop.xlane.xlu0 %2632
      %v2634 = vsub.f32 %v2622, %v2627
      %v2635 = vsub.f32 %v2623, %v2630
      %v2636 = vsub.f32 %v2624, %v2633
      %v2637 = vmul.f32 %v2634, 1.442695
      %v2638 = vpow.pop %v2637
      %v2639 = vmul.f32 %v2635, 1.442695
      %v2640 = vpow.pop %v2639
      %v2641 = vmul.f32 %v2636, 1.442695
      %v2642 = vpow.pop %v2641
      %v2643 = vsel %vm550, %v2638, 0.0
      %2644 = vadd.xlane.f32.xlu0 %v2643
      %v2645 = vpop.xlane.xlu0 %2644
      %v2646 = vsel %vm550, %v2640, 0.0
      %2647 = vadd.xlane.f32.xlu0 %v2646
      %v2648 = vpop.xlane.xlu0 %2647
      %v2649 = vsel %vm550, %v2642, 0.0
      %2650 = vadd.xlane.f32.xlu0 %v2649
      %v2651 = vpop.xlane.xlu0 %2650
      %v2652 = vrcp.pop %v2645
      %v2653 = vrcp.pop %v2648
      %v2654 = vrcp.pop %v2651
      %v2655 = vmul.f32 %v2638, %v2652
      %v2656 = vmul.f32 %v2640, %v2653
      %v2657 = vmul.f32 %v2642, %v2654
      %2658 = vrot.lane.b32.xlu0 %v2023, 48
      %v2659 = vpop.permute.xlu0 %2658
      %2660 = vrot.lane.b32.xlu0 %v2028, 48
      %v2661 = vpop.permute.xlu0 %2660
      %2662 = vrot.lane.b32.xlu0 %v2033, 48
      %v2663 = vpop.permute.xlu0 %2662
      %v2668 = vsel %vm550, %v2655, 0
      %v2671 = vsel %vm550, %v2656, 0
      %v2674 = vsel %vm550, %v2657, 0
      %2676 = vmatprep.subr.mxu0 0.0
      %2677 = vmatpush1.msra.mxu0 0.0
      %2678 = vmatprep.subr.mxu0 0.0
      %2679 = vmatpush1.msra.mxu0 0.0
      %2680 = vmatprep.subr.mxu0 0.0
      %2681 = vmatpush1.msra.mxu0 0.0
      %2682 = vmatprep.subr.mxu0 0.0
      %2683 = vmatpush1.msra.mxu0 0.0
      %2684 = vmatprep.subr.mxu0 0.0
      %2685 = vmatpush1.msra.mxu0 0.0
      %2686 = vmatprep.subr.mxu0 0.0
      %2687 = vmatpush1.msra.mxu0 0.0
      %2688 = vmatprep.subr.mxu0 0.0
      %2689 = vmatpush1.msra.mxu0 0.0
      %2690 = vmatprep.subr.mxu0 0.0
      %2691 = vmatpush1.msra.mxu0 0.0
      %2692 = vmatprep.subr.mxu0 0.0
      %2693 = vmatpush1.msra.mxu0 0.0
      %2694 = vmatprep.subr.mxu0 0.0
      %2695 = vmatpush1.msra.mxu0 0.0
      %2696 = vmatprep.subr.mxu0 0.0
      %2697 = vmatpush1.msra.mxu0 0.0
      %2698 = vmatprep.subr.mxu0 0.0
      %2699 = vmatpush1.msra.mxu0 0.0
      %2700 = vmatprep.subr.mxu0 0.0
      %2701 = vmatpush1.msra.mxu0 0.0
      %2702 = vmatprep.subr.mxu0 0.0
      %2703 = vmatpush1.msra.mxu0 %v2663
      %2704 = vmatprep.subr.mxu0 0.0
      %2705 = vmatpush1.msra.mxu0 %v2661
      %2706 = vmatprep.subr.mxu0 0.0
      %2707 = vmatpush1.msra.mxu0 %v2659
      %2708 = vmatprep.subr.mxu0 0.0
      %2709 = vmatpush2.msra.mxu0 0.0
      %2710 = vmatprep.subr.mxu0 0.0
      %2711 = vmatpush2.msra.mxu0 0.0
      %2712 = vmatprep.subr.mxu0 0.0
      %2713 = vmatpush2.msra.mxu0 0.0
      %2714 = vmatprep.subr.mxu0 0.0
      %2715 = vmatpush2.msra.mxu0 0.0
      %2716 = vmatprep.subr.mxu0 0.0
      %2717 = vmatpush2.msra.mxu0 0.0
      %2718 = vmatprep.subr.mxu0 0.0
      %2719 = vmatpush2.msra.mxu0 0.0
      %2720 = vmatprep.subr.mxu0 0.0
      %2721 = vmatpush2.msra.mxu0 0.0
      %2722 = vmatprep.subr.mxu0 0.0
      %2723 = vmatpush2.msra.mxu0 0.0
      %2724 = vmatprep.subr.mxu0 0.0
      %2725 = vmatpush2.msra.mxu0 0.0
      %2726 = vmatprep.subr.mxu0 0.0
      %2727 = vmatpush2.msra.mxu0 0.0
      %2728 = vmatprep.subr.mxu0 0.0
      %2729 = vmatpush2.msra.mxu0 0.0
      %2730 = vmatprep.subr.mxu0 0.0
      %2731 = vmatpush2.msra.mxu0 0.0
      %2732 = vmatprep.subr.mxu0 0.0
      %2733 = vmatpush2.msra.mxu0 0.0
      %2734 = vmatprep.subr.mxu0 0.0
      %2735 = vmatpush2.msra.mxu0 0.0
      %2736 = vmatprep.subr.mxu0 0.0
      %2737 = vmatpush2.msra.mxu0 0.0
      %2738 = vmatprep.subr.mxu0 0.0
      %2739 = vmatpush2.msra.mxu0 0.0
      %2740 = vmatprep.mubr.f32.mxu0 0.0
      %2741 = vmatmul.mubr.f32.gmra.mxu0 %v2668
      %v2742 = vpop.f32.mrf.mxu0
      %v2743 = vadd.f32 0.0, %v2742
      %v2744 = vpop.f32.mrf.mxu0
      %2745 = vmatprep.mubr.f32.mxu0 0.0
      %2746 = vmatmul.mubr.f32.gmra.mxu0 %v2671
      %v2747 = vpop.f32.mrf.mxu0
      %v2748 = vadd.f32 0.0, %v2747
      %v2749 = vpop.f32.mrf.mxu0
      %2750 = vmatprep.mubr.f32.mxu0 0.0
      %2751 = vmatmul.mubr.f32.gmra.mxu0 %v2674
      %v2752 = vpop.f32.mrf.mxu0
      %v2753 = vadd.f32 0.0, %v2752
      %v2754 = vpop.f32.mrf.mxu0
      %2755 = vdwg.mxu0
      %2756 = vrot.lane.b32.xlu0 %v2023, 104
      %v2757 = vpop.permute.xlu0 %2756
      %2758 = vrot.lane.b32.xlu0 %v2028, 104
      %v2759 = vpop.permute.xlu0 %2758
      %2760 = vrot.lane.b32.xlu0 %v2033, 104
      %v2761 = vpop.permute.xlu0 %2760
      %2762 = vrot.lane.b32.xlu0 %v2023, 72
      %v2763 = vpop.permute.xlu0 %2762
      %2764 = vrot.lane.b32.xlu0 %v2028, 72
      %v2765 = vpop.permute.xlu0 %2764
      %2766 = vrot.lane.b32.xlu0 %v2033, 72
      %v2767 = vpop.permute.xlu0 %2766
      %v2768 = vsel %vm451, %v2757, 0
      %v2770 = vsel %vm451, %v2759, 0
      %v2772 = vsel %vm451, %v2761, 0
      %v2774 = vsel %vm451, %v2763, 0
      %v2776 = vsel %vm451, %v2765, 0
      %v2778 = vsel %vm451, %v2767, 0
      %2780 = vmatprep.subr.mxu0 0.0
      %2781 = vmatpush1.xpose.msra.mxu0 0.0
      %2782 = vmatprep.subr.mxu0 0.0
      %2783 = vmatpush1.xpose.msra.mxu0 0.0
      %2784 = vmatprep.subr.mxu0 0.0
      %2785 = vmatpush1.xpose.msra.mxu0 0.0
      %2786 = vmatprep.subr.mxu0 0.0
      %2787 = vmatpush1.xpose.msra.mxu0 0.0
      %2788 = vmatprep.subr.mxu0 0.0
      %2789 = vmatpush1.xpose.msra.mxu0 0.0
      %2790 = vmatprep.subr.mxu0 0.0
      %2791 = vmatpush1.xpose.msra.mxu0 0.0
      %2792 = vmatprep.subr.mxu0 0.0
      %2793 = vmatpush1.xpose.msra.mxu0 0.0
      %2794 = vmatprep.subr.mxu0 0.0
      %2795 = vmatpush1.xpose.msra.mxu0 0.0
      %2796 = vmatprep.subr.mxu0 0.0
      %2797 = vmatpush1.xpose.msra.mxu0 0.0
      %2798 = vmatprep.subr.mxu0 0.0
      %2799 = vmatpush1.xpose.msra.mxu0 0.0
      %2800 = vmatprep.subr.mxu0 0.0
      %2801 = vmatpush1.xpose.msra.mxu0 0.0
      %2802 = vmatprep.subr.mxu0 0.0
      %2803 = vmatpush1.xpose.msra.mxu0 0.0
      %2804 = vmatprep.subr.mxu0 0.0
      %2805 = vmatpush1.xpose.msra.mxu0 0.0
      %2806 = vmatprep.subr.mxu0 0.0
      %2807 = vmatpush1.xpose.msra.mxu0 %v2778
      %2808 = vmatprep.subr.mxu0 0.0
      %2809 = vmatpush1.xpose.msra.mxu0 %v2776
      %2810 = vmatprep.subr.mxu0 0.0
      %2811 = vmatpush1.xpose.msra.mxu0 %v2774
      %2812 = vmatprep.subr.mxu0 0.0
      %2813 = vmatpush2.xpose.msra.mxu0 0.0
      %2814 = vmatprep.subr.mxu0 0.0
      %2815 = vmatpush2.xpose.msra.mxu0 0.0
      %2816 = vmatprep.subr.mxu0 0.0
      %2817 = vmatpush2.xpose.msra.mxu0 0.0
      %2818 = vmatprep.subr.mxu0 0.0
      %2819 = vmatpush2.xpose.msra.mxu0 0.0
      %2820 = vmatprep.subr.mxu0 0.0
      %2821 = vmatpush2.xpose.msra.mxu0 0.0
      %2822 = vmatprep.subr.mxu0 0.0
      %2823 = vmatpush2.xpose.msra.mxu0 0.0
      %2824 = vmatprep.subr.mxu0 0.0
      %2825 = vmatpush2.xpose.msra.mxu0 0.0
      %2826 = vmatprep.subr.mxu0 0.0
      %2827 = vmatpush2.xpose.msra.mxu0 0.0
      %2828 = vmatprep.subr.mxu0 0.0
      %2829 = vmatpush2.xpose.msra.mxu0 0.0
      %2830 = vmatprep.subr.mxu0 0.0
      %2831 = vmatpush2.xpose.msra.mxu0 0.0
      %2832 = vmatprep.subr.mxu0 0.0
      %2833 = vmatpush2.xpose.msra.mxu0 0.0
      %2834 = vmatprep.subr.mxu0 0.0
      %2835 = vmatpush2.xpose.msra.mxu0 0.0
      %2836 = vmatprep.subr.mxu0 0.0
      %2837 = vmatpush2.xpose.msra.mxu0 0.0
      %2838 = vmatprep.subr.mxu0 0.0
      %2839 = vmatpush2.xpose.msra.mxu0 0.0
      %2840 = vmatprep.subr.mxu0 0.0
      %2841 = vmatpush2.xpose.msra.mxu0 0.0
      %2842 = vmatprep.subr.mxu0 0.0
      %2843 = vmatpush2.xpose.msra.mxu0 0.0
      %2844 = vmatprep.mubr.f32.mxu0 0.0
      %2845 = vmatmul.mubr.f32.gmra.mxu0 %v2768
      %v2846 = vpop.f32.mrf.mxu0
      %v2847 = vadd.f32 0.0, %v2846
      %v2848 = vpop.f32.mrf.mxu0
      %2849 = vmatprep.mubr.f32.mxu0 0.0
      %2850 = vmatmul.mubr.f32.gmra.mxu0 %v2770
      %v2851 = vpop.f32.mrf.mxu0
      %v2852 = vadd.f32 0.0, %v2851
      %v2853 = vpop.f32.mrf.mxu0
      %2854 = vmatprep.mubr.f32.mxu0 0.0
      %2855 = vmatmul.mubr.f32.gmra.mxu0 %v2772
      %v2856 = vpop.f32.mrf.mxu0
      %v2857 = vadd.f32 0.0, %v2856
      %v2858 = vpop.f32.mrf.mxu0
      %2859 = vdwg.mxu0
      %v2860 = vmul.f32 %v2847, 0.35355338
      %v2861 = vmul.f32 %v2852, 0.35355338
      %v2862 = vmul.f32 %v2857, 0.35355338
      %v2863 = vsel %vm286, %v2860, -1e+30
      %v2864 = vsel %vm286, %v2861, -1e+30
      %v2865 = vsel %vm286, %v2862, -1e+30
      %v2866 = vsel %vm550, %v2863, -inf
      %2867 = vmax.xlane.f32.xlu0 %v2866
      %v2868 = vpop.xlane.xlu0 %2867
      %v2869 = vsel %vm550, %v2864, -inf
      %2870 = vmax.xlane.f32.xlu0 %v2869
      %v2871 = vpop.xlane.xlu0 %2870
      %v2872 = vsel %vm550, %v2865, -inf
      %2873 = vmax.xlane.f32.xlu0 %v2872
      %v2874 = vpop.xlane.xlu0 %2873
      %v2875 = vsub.f32 %v2863, %v2868
      %v2876 = vsub.f32 %v2864, %v2871
      %v2877 = vsub.f32 %v2865, %v2874
      %v2878 = vmul.f32 %v2875, 1.442695
      %v2879 = vpow.pop %v2878
      %v2880 = vmul.f32 %v2876, 1.442695
      %v2881 = vpow.pop %v2880
      %v2882 = vmul.f32 %v2877, 1.442695
      %v2883 = vpow.pop %v2882
      %v2884 = vsel %vm550, %v2879, 0.0
      %2885 = vadd.xlane.f32.xlu0 %v2884
      %v2886 = vpop.xlane.xlu0 %2885
      %v2887 = vsel %vm550, %v2881, 0.0
      %2888 = vadd.xlane.f32.xlu0 %v2887
      %v2889 = vpop.xlane.xlu0 %2888
      %v2890 = vsel %vm550, %v2883, 0.0
      %2891 = vadd.xlane.f32.xlu0 %v2890
      %v2892 = vpop.xlane.xlu0 %2891
      %v2893 = vrcp.pop %v2886
      %v2894 = vrcp.pop %v2889
      %v2895 = vrcp.pop %v2892
      %v2896 = vmul.f32 %v2879, %v2893
      %v2897 = vmul.f32 %v2881, %v2894
      %v2898 = vmul.f32 %v2883, %v2895
      %2899 = vrot.lane.b32.xlu0 %v2023, 40
      %v2900 = vpop.permute.xlu0 %2899
      %2901 = vrot.lane.b32.xlu0 %v2028, 40
      %v2902 = vpop.permute.xlu0 %2901
      %2903 = vrot.lane.b32.xlu0 %v2033, 40
      %v2904 = vpop.permute.xlu0 %2903
      %v2909 = vsel %vm550, %v2896, 0
      %v2912 = vsel %vm550, %v2897, 0
      %v2915 = vsel %vm550, %v2898, 0
      %2917 = vmatprep.subr.mxu0 0.0
      %2918 = vmatpush1.msra.mxu0 0.0
      %2919 = vmatprep.subr.mxu0 0.0
      %2920 = vmatpush1.msra.mxu0 0.0
      %2921 = vmatprep.subr.mxu0 0.0
      %2922 = vmatpush1.msra.mxu0 0.0
      %2923 = vmatprep.subr.mxu0 0.0
      %2924 = vmatpush1.msra.mxu0 0.0
      %2925 = vmatprep.subr.mxu0 0.0
      %2926 = vmatpush1.msra.mxu0 0.0
      %2927 = vmatprep.subr.mxu0 0.0
      %2928 = vmatpush1.msra.mxu0 0.0
      %2929 = vmatprep.subr.mxu0 0.0
      %2930 = vmatpush1.msra.mxu0 0.0
      %2931 = vmatprep.subr.mxu0 0.0
      %2932 = vmatpush1.msra.mxu0 0.0
      %2933 = vmatprep.subr.mxu0 0.0
      %2934 = vmatpush1.msra.mxu0 0.0
      %2935 = vmatprep.subr.mxu0 0.0
      %2936 = vmatpush1.msra.mxu0 0.0
      %2937 = vmatprep.subr.mxu0 0.0
      %2938 = vmatpush1.msra.mxu0 0.0
      %2939 = vmatprep.subr.mxu0 0.0
      %2940 = vmatpush1.msra.mxu0 0.0
      %2941 = vmatprep.subr.mxu0 0.0
      %2942 = vmatpush1.msra.mxu0 0.0
      %2943 = vmatprep.subr.mxu0 0.0
      %2944 = vmatpush1.msra.mxu0 %v2904
      %2945 = vmatprep.subr.mxu0 0.0
      %2946 = vmatpush1.msra.mxu0 %v2902
      %2947 = vmatprep.subr.mxu0 0.0
      %2948 = vmatpush1.msra.mxu0 %v2900
      %2949 = vmatprep.subr.mxu0 0.0
      %2950 = vmatpush2.msra.mxu0 0.0
      %2951 = vmatprep.subr.mxu0 0.0
      %2952 = vmatpush2.msra.mxu0 0.0
      %2953 = vmatprep.subr.mxu0 0.0
      %2954 = vmatpush2.msra.mxu0 0.0
      %2955 = vmatprep.subr.mxu0 0.0
      %2956 = vmatpush2.msra.mxu0 0.0
      %2957 = vmatprep.subr.mxu0 0.0
      %2958 = vmatpush2.msra.mxu0 0.0
      %2959 = vmatprep.subr.mxu0 0.0
      %2960 = vmatpush2.msra.mxu0 0.0
      %2961 = vmatprep.subr.mxu0 0.0
      %2962 = vmatpush2.msra.mxu0 0.0
      %2963 = vmatprep.subr.mxu0 0.0
      %2964 = vmatpush2.msra.mxu0 0.0
      %2965 = vmatprep.subr.mxu0 0.0
      %2966 = vmatpush2.msra.mxu0 0.0
      %2967 = vmatprep.subr.mxu0 0.0
      %2968 = vmatpush2.msra.mxu0 0.0
      %2969 = vmatprep.subr.mxu0 0.0
      %2970 = vmatpush2.msra.mxu0 0.0
      %2971 = vmatprep.subr.mxu0 0.0
      %2972 = vmatpush2.msra.mxu0 0.0
      %2973 = vmatprep.subr.mxu0 0.0
      %2974 = vmatpush2.msra.mxu0 0.0
      %2975 = vmatprep.subr.mxu0 0.0
      %2976 = vmatpush2.msra.mxu0 0.0
      %2977 = vmatprep.subr.mxu0 0.0
      %2978 = vmatpush2.msra.mxu0 0.0
      %2979 = vmatprep.subr.mxu0 0.0
      %2980 = vmatpush2.msra.mxu0 0.0
      %2981 = vmatprep.mubr.f32.mxu0 0.0
      %2982 = vmatmul.mubr.f32.gmra.mxu0 %v2909
      %v2983 = vpop.f32.mrf.mxu0
      %v2984 = vadd.f32 0.0, %v2983
      %v2985 = vpop.f32.mrf.mxu0
      %2986 = vmatprep.mubr.f32.mxu0 0.0
      %2987 = vmatmul.mubr.f32.gmra.mxu0 %v2912
      %v2988 = vpop.f32.mrf.mxu0
      %v2989 = vadd.f32 0.0, %v2988
      %v2990 = vpop.f32.mrf.mxu0
      %2991 = vmatprep.mubr.f32.mxu0 0.0
      %2992 = vmatmul.mubr.f32.gmra.mxu0 %v2915
      %v2993 = vpop.f32.mrf.mxu0
      %v2994 = vadd.f32 0.0, %v2993
      %v2995 = vpop.f32.mrf.mxu0
      %2996 = vdwg.mxu0
      %2997 = vrot.lane.b32.xlu0 %v2414, 24
      %v2998 = vpop.permute.xlu0 %2997
      %2999 = vrot.lane.b32.xlu0 %v2415, 24
      %v3000 = vpop.permute.xlu0 %2999
      %3001 = vrot.lane.b32.xlu0 %v2416, 24
      %v3002 = vpop.permute.xlu0 %3001
      %3006 = vrot.lane.b32.xlu0 %v2655, 48
      %v3007 = vpop.permute.xlu0 %3006
      %3008 = vrot.lane.b32.xlu0 %v2656, 48
      %v3009 = vpop.permute.xlu0 %3008
      %3010 = vrot.lane.b32.xlu0 %v2657, 48
      %v3011 = vpop.permute.xlu0 %3010
      %3015 = vrot.lane.b32.xlu0 %v2896, 72
      %v3016 = vpop.permute.xlu0 %3015
      %3017 = vrot.lane.b32.xlu0 %v2897, 72
      %v3018 = vpop.permute.xlu0 %3017
      %3019 = vrot.lane.b32.xlu0 %v2898, 72
      %v3020 = vpop.permute.xlu0 %3019
      %v3024 = vsel %vm550, %v2173, %v2998
      %v3025 = vsel %vm550, %v2174, %v3000
      %v3026 = vsel %vm550, %v2175, %v3002
      %v3027 = vsel %vm1435, %v3024, %v3007
      %v3028 = vsel %vm1435, %v3025, %v3009
      %v3029 = vsel %vm1435, %v3026, %v3011
      %v3030 = vsel %vm1439, %v3027, %v3016
      %v3031 = vsel %vm1439, %v3028, %v3018
      %v3032 = vsel %vm1439, %v3029, %v3020
      %v3033 = vsel %vm1443, %v3030, 0.0
      %v3034 = vsel %vm1443, %v3031, 0.0
      %v3035 = vsel %vm1443, %v3032, 0.0
      %s3036 = scalar_lea.vmem %s181, 24
      %3037 = vst [vmem:[%s3036] sm:$0xff] %v3033
      %3038 = vst [vmem:[%s3036 + $0x8] sm:$0xff] %v3034
      %3039 = vst [vmem:[%s3036 + $0x10] sm:$0xff] %v3035
      %3043 = vrot.lane.b32.xlu0 %v2502, 8
      %v3044 = vpop.permute.xlu0 %3043
      %3045 = vrot.lane.b32.xlu0 %v2507, 8
      %v3046 = vpop.permute.xlu0 %3045
      %3047 = vrot.lane.b32.xlu0 %v2512, 8
      %v3048 = vpop.permute.xlu0 %3047
      %3055 = vrot.lane.b32.xlu0 %v2743, 16
      %v3056 = vpop.permute.xlu0 %3055
      %3057 = vrot.lane.b32.xlu0 %v2748, 16
      %v3058 = vpop.permute.xlu0 %3057
      %3059 = vrot.lane.b32.xlu0 %v2753, 16
      %v3060 = vpop.permute.xlu0 %3059
      %3067 = vrot.lane.b32.xlu0 %v2984, 24
      %v3068 = vpop.permute.xlu0 %3067
      %3069 = vrot.lane.b32.xlu0 %v2989, 24
      %v3070 = vpop.permute.xlu0 %3069
      %3071 = vrot.lane.b32.xlu0 %v2994, 24
      %v3072 = vpop.permute.xlu0 %3071
      %v3076 = vsel %vm451, %v2261, %v3044
      %v3077 = vsel %vm451, %v2266, %v3046
      %v3078 = vsel %vm451, %v2271, %v3048
      %v3079 = vsel %vm1489, %v3076, %v3056
      %v3080 = vsel %vm1489, %v3077, %v3058
      %v3081 = vsel %vm1489, %v3078, %v3060
      %v3082 = vsel %vm550, %v3079, %v3068
      %v3083 = vsel %vm550, %v3080, %v3070
      %v3084 = vsel %vm550, %v3081, %v3072
      %v3085 = vld [vmem:[%s1 + $0x160] sm:$0xff]
      %v3086 = vld [vmem:[%s1 + $0x168] sm:$0xff]
      %v3087 = vld [vmem:[%s1 + $0x170] sm:$0xff]
      %v3088 = vld [vmem:[%s1 + $0x178] sm:$0xff]
      %v3089 = vld [vmem:[%s1 + $0x1e1] sm:$0x1]
      %v3090 = vlaneseq
      %v3091 = vshrl.u32 %v3090, 7
      %v3092 = vsub.s32 0, %v3091
      %v3093 = vrot.slane %v3089, %v3092
      %v3095 = vsel %vm289, %v3082, 0
      %v3098 = vsel %vm289, %v3083, 0
      %v3101 = vsel %vm289, %v3084, 0
      %3103 = vmatprep.subr.mxu0 0.0
      %3104 = vmatpush1.msra.mxu0 0.0
      %3105 = vmatprep.subr.mxu0 0.0
      %3106 = vmatpush1.msra.mxu0 0.0
      %3107 = vmatprep.subr.mxu0 0.0
      %3108 = vmatpush1.msra.mxu0 0.0
      %3109 = vmatprep.subr.mxu0 0.0
      %3110 = vmatpush1.msra.mxu0 0.0
      %3111 = vmatprep.subr.mxu0 0.0
      %3112 = vmatpush1.msra.mxu0 0.0
      %3113 = vmatprep.subr.mxu0 0.0
      %3114 = vmatpush1.msra.mxu0 0.0
      %3115 = vmatprep.subr.mxu0 0.0
      %3116 = vmatpush1.msra.mxu0 0.0
      %3117 = vmatprep.subr.mxu0 0.0
      %3118 = vmatpush1.msra.mxu0 0.0
      %3119 = vmatprep.subr.mxu0 0.0
      %3120 = vmatpush1.msra.mxu0 0.0
      %3121 = vmatprep.subr.mxu0 0.0
      %3122 = vmatpush1.msra.mxu0 0.0
      %3123 = vmatprep.subr.mxu0 0.0
      %3124 = vmatpush1.msra.mxu0 0.0
      %3125 = vmatprep.subr.mxu0 0.0
      %3126 = vmatpush1.msra.mxu0 0.0
      %3127 = vmatprep.subr.mxu0 0.0
      %3128 = vmatpush1.msra.mxu0 %v3088
      %3129 = vmatprep.subr.mxu0 0.0
      %3130 = vmatpush1.msra.mxu0 %v3087
      %3131 = vmatprep.subr.mxu0 0.0
      %3132 = vmatpush1.msra.mxu0 %v3086
      %3133 = vmatprep.subr.mxu0 0.0
      %3134 = vmatpush1.msra.mxu0 %v3085
      %3135 = vmatprep.subr.mxu0 0.0
      %3136 = vmatpush2.msra.mxu0 0.0
      %3137 = vmatprep.subr.mxu0 0.0
      %3138 = vmatpush2.msra.mxu0 0.0
      %3139 = vmatprep.subr.mxu0 0.0
      %3140 = vmatpush2.msra.mxu0 0.0
      %3141 = vmatprep.subr.mxu0 0.0
      %3142 = vmatpush2.msra.mxu0 0.0
      %3143 = vmatprep.subr.mxu0 0.0
      %3144 = vmatpush2.msra.mxu0 0.0
      %3145 = vmatprep.subr.mxu0 0.0
      %3146 = vmatpush2.msra.mxu0 0.0
      %3147 = vmatprep.subr.mxu0 0.0
      %3148 = vmatpush2.msra.mxu0 0.0
      %3149 = vmatprep.subr.mxu0 0.0
      %3150 = vmatpush2.msra.mxu0 0.0
      %3151 = vmatprep.subr.mxu0 0.0
      %3152 = vmatpush2.msra.mxu0 0.0
      %3153 = vmatprep.subr.mxu0 0.0
      %3154 = vmatpush2.msra.mxu0 0.0
      %3155 = vmatprep.subr.mxu0 0.0
      %3156 = vmatpush2.msra.mxu0 0.0
      %3157 = vmatprep.subr.mxu0 0.0
      %3158 = vmatpush2.msra.mxu0 0.0
      %3159 = vmatprep.subr.mxu0 0.0
      %3160 = vmatpush2.msra.mxu0 0.0
      %3161 = vmatprep.subr.mxu0 0.0
      %3162 = vmatpush2.msra.mxu0 0.0
      %3163 = vmatprep.subr.mxu0 0.0
      %3164 = vmatpush2.msra.mxu0 0.0
      %3165 = vmatprep.subr.mxu0 0.0
      %3166 = vmatpush2.msra.mxu0 0.0
      %3167 = vmatprep.mubr.f32.mxu0 0.0
      %3168 = vmatmul.mubr.f32.gmra.mxu0 %v3095
      %v3169 = vpop.f32.mrf.mxu0
      %v3170 = vadd.f32 %v3093, %v3169
      %v3171 = vpop.f32.mrf.mxu0
      %3172 = vmatprep.mubr.f32.mxu0 0.0
      %3173 = vmatmul.mubr.f32.gmra.mxu0 %v3098
      %v3174 = vpop.f32.mrf.mxu0
      %v3175 = vadd.f32 %v3093, %v3174
      %v3176 = vpop.f32.mrf.mxu0
      %3177 = vmatprep.mubr.f32.mxu0 0.0
      %3178 = vmatmul.mubr.f32.gmra.mxu0 %v3101
      %v3179 = vpop.f32.mrf.mxu0
      %v3180 = vadd.f32 %v3093, %v3179
      %v3181 = vpop.f32.mrf.mxu0
      %3182 = vdwg.mxu0
      %v3183 = vadd.f32 %v1880, %v3170
      %v3184 = vadd.f32 %v1881, %v3175
      %v3185 = vadd.f32 %v1882, %v3180
      %v3186 = vld [vmem:[%s1 + $0x1e4] sm:$0x1]
      %v3187 = vld [vmem:[%s1 + $0x1e5] sm:$0x1]
      %v3188 = vsel %vm289, %v3183, 0.0
      %3189 = vadd.xlane.f32.xlu0 %v3188
      %v3190 = vpop.xlane.xlu0 %3189
      %v3191 = vsel %vm289, %v3184, 0.0
      %3192 = vadd.xlane.f32.xlu0 %v3191
      %v3193 = vpop.xlane.xlu0 %3192
      %v3194 = vsel %vm289, %v3185, 0.0
      %3195 = vadd.xlane.f32.xlu0 %v3194
      %v3196 = vpop.xlane.xlu0 %3195
      %v3197 = vmul.f32 %v3190, %v299
      %v3198 = vmul.f32 %v3193, %v299
      %v3199 = vmul.f32 %v3196, %v299
      %v3200 = vsub.f32 %v3183, %v3197
      %v3201 = vsub.f32 %v3184, %v3198
      %v3202 = vsub.f32 %v3185, %v3199
      %v3203 = vmul.f32 %v3200, %v3200
      %v3204 = vmul.f32 %v3201, %v3201
      %v3205 = vmul.f32 %v3202, %v3202
      %v3206 = vsel %vm289, %v3203, 0.0
      %3207 = vadd.xlane.f32.xlu0 %v3206
      %v3208 = vpop.xlane.xlu0 %3207
      %v3209 = vsel %vm289, %v3204, 0.0
      %3210 = vadd.xlane.f32.xlu0 %v3209
      %v3211 = vpop.xlane.xlu0 %3210
      %v3212 = vsel %vm289, %v3205, 0.0
      %3213 = vadd.xlane.f32.xlu0 %v3212
      %v3214 = vpop.xlane.xlu0 %3213
      %v3215 = vmul.f32 %v3208, %v299
      %v3216 = vmul.f32 %v3211, %v299
      %v3217 = vmul.f32 %v3214, %v299
      %v3218 = vadd.f32 %v3215, 1e-06
      %v3219 = vadd.f32 %v3216, 1e-06
      %v3220 = vadd.f32 %v3217, 1e-06
      %v3221 = vrsqrt.pop %v3218
      %v3222 = vrsqrt.pop %v3219
      %v3223 = vrsqrt.pop %v3220
      %v3224 = vmul.f32 %v3200, %v3221
      %v3225 = vmul.f32 %v3201, %v3222
      %v3226 = vmul.f32 %v3202, %v3223
      %v3227 = vlaneseq
      %v3228 = vshrl.u32 %v3227, 7
      %v3229 = vsub.s32 0, %v3228
      %v3230 = vrot.slane %v3186, %v3229
      %v3231 = vmul.f32 %v3224, %v3230
      %v3232 = vmul.f32 %v3225, %v3230
      %v3233 = vmul.f32 %v3226, %v3230
      %v3234 = vlaneseq
      %v3235 = vshrl.u32 %v3234, 7
      %v3236 = vsub.s32 0, %v3235
      %v3237 = vrot.slane %v3187, %v3236
      %v3238 = vadd.f32 %v3231, %v3237
      %v3239 = vadd.f32 %v3232, %v3237
      %v3240 = vadd.f32 %v3233, %v3237
      %v3241 = vld [vmem:[%s1 + $0x180] sm:$0xff]
      %v3242 = vld [vmem:[%s1 + $0x188] sm:$0xff]
      %v3243 = vld [vmem:[%s1 + $0x190] sm:$0xff]
      %v3244 = vld [vmem:[%s1 + $0x198] sm:$0xff]
      %v3245 = vld [vmem:[%s1 + $0x1e6] sm:$0x1]
      %v3246 = vlaneseq
      %v3247 = vshrl.u32 %v3246, 7
      %v3248 = vsub.s32 0, %v3247
      %v3249 = vrot.slane %v3245, %v3248
      %v3251 = vsel %vm289, %v3238, 0
      %v3254 = vsel %vm289, %v3239, 0
      %v3257 = vsel %vm289, %v3240, 0
      %3259 = vmatprep.subr.mxu0 0.0
      %3260 = vmatpush1.msra.mxu0 0.0
      %3261 = vmatprep.subr.mxu0 0.0
      %3262 = vmatpush1.msra.mxu0 0.0
      %3263 = vmatprep.subr.mxu0 0.0
      %3264 = vmatpush1.msra.mxu0 0.0
      %3265 = vmatprep.subr.mxu0 0.0
      %3266 = vmatpush1.msra.mxu0 0.0
      %3267 = vmatprep.subr.mxu0 0.0
      %3268 = vmatpush1.msra.mxu0 0.0
      %3269 = vmatprep.subr.mxu0 0.0
      %3270 = vmatpush1.msra.mxu0 0.0
      %3271 = vmatprep.subr.mxu0 0.0
      %3272 = vmatpush1.msra.mxu0 0.0
      %3273 = vmatprep.subr.mxu0 0.0
      %3274 = vmatpush1.msra.mxu0 0.0
      %3275 = vmatprep.subr.mxu0 0.0
      %3276 = vmatpush1.msra.mxu0 0.0
      %3277 = vmatprep.subr.mxu0 0.0
      %3278 = vmatpush1.msra.mxu0 0.0
      %3279 = vmatprep.subr.mxu0 0.0
      %3280 = vmatpush1.msra.mxu0 0.0
      %3281 = vmatprep.subr.mxu0 0.0
      %3282 = vmatpush1.msra.mxu0 0.0
      %3283 = vmatprep.subr.mxu0 0.0
      %3284 = vmatpush1.msra.mxu0 %v3244
      %3285 = vmatprep.subr.mxu0 0.0
      %3286 = vmatpush1.msra.mxu0 %v3243
      %3287 = vmatprep.subr.mxu0 0.0
      %3288 = vmatpush1.msra.mxu0 %v3242
      %3289 = vmatprep.subr.mxu0 0.0
      %3290 = vmatpush1.msra.mxu0 %v3241
      %3291 = vmatprep.subr.mxu0 0.0
      %3292 = vmatpush2.msra.mxu0 0.0
      %3293 = vmatprep.subr.mxu0 0.0
      %3294 = vmatpush2.msra.mxu0 0.0
      %3295 = vmatprep.subr.mxu0 0.0
      %3296 = vmatpush2.msra.mxu0 0.0
      %3297 = vmatprep.subr.mxu0 0.0
      %3298 = vmatpush2.msra.mxu0 0.0
      %3299 = vmatprep.subr.mxu0 0.0
      %3300 = vmatpush2.msra.mxu0 0.0
      %3301 = vmatprep.subr.mxu0 0.0
      %3302 = vmatpush2.msra.mxu0 0.0
      %3303 = vmatprep.subr.mxu0 0.0
      %3304 = vmatpush2.msra.mxu0 0.0
      %3305 = vmatprep.subr.mxu0 0.0
      %3306 = vmatpush2.msra.mxu0 0.0
      %3307 = vmatprep.subr.mxu0 0.0
      %3308 = vmatpush2.msra.mxu0 0.0
      %3309 = vmatprep.subr.mxu0 0.0
      %3310 = vmatpush2.msra.mxu0 0.0
      %3311 = vmatprep.subr.mxu0 0.0
      %3312 = vmatpush2.msra.mxu0 0.0
      %3313 = vmatprep.subr.mxu0 0.0
      %3314 = vmatpush2.msra.mxu0 0.0
      %3315 = vmatprep.subr.mxu0 0.0
      %3316 = vmatpush2.msra.mxu0 0.0
      %3317 = vmatprep.subr.mxu0 0.0
      %3318 = vmatpush2.msra.mxu0 0.0
      %3319 = vmatprep.subr.mxu0 0.0
      %3320 = vmatpush2.msra.mxu0 0.0
      %3321 = vmatprep.subr.mxu0 0.0
      %3322 = vmatpush2.msra.mxu0 0.0
      %3323 = vmatprep.mubr.f32.mxu0 0.0
      %3324 = vmatmul.mubr.f32.gmra.mxu0 %v3251
      %v3325 = vpop.f32.mrf.mxu0
      %v3326 = vadd.f32 %v3249, %v3325
      %v3327 = vpop.f32.mrf.mxu0
      %3328 = vmatprep.mubr.f32.mxu0 0.0
      %3329 = vmatmul.mubr.f32.gmra.mxu0 %v3254
      %v3330 = vpop.f32.mrf.mxu0
      %v3331 = vadd.f32 %v3249, %v3330
      %v3332 = vpop.f32.mrf.mxu0
      %3333 = vmatprep.mubr.f32.mxu0 0.0
      %3334 = vmatmul.mubr.f32.gmra.mxu0 %v3257
      %v3335 = vpop.f32.mrf.mxu0
      %v3336 = vadd.f32 %v3249, %v3335
      %v3337 = vpop.f32.mrf.mxu0
      %3338 = vdwg.mxu0
      %v3339 = vmul.f32 %v3326, %v3326
      %v3340 = vmul.f32 %v3331, %v3331
      %v3341 = vmul.f32 %v3336, %v3336
      %v3342 = vmul.f32 %v3326, %v3339
      %v3343 = vmul.f32 %v3331, %v3340
      %v3344 = vmul.f32 %v3336, %v3341
      %v3345 = vmul.f32 %v3342, 0.044715
      %v3346 = vmul.f32 %v3343, 0.044715
      %v3347 = vmul.f32 %v3344, 0.044715
      %v3348 = vadd.f32 %v3326, %v3345
      %v3349 = vadd.f32 %v3331, %v3346
      %v3350 = vadd.f32 %v3336, %v3347
      %v3351 = vmul.f32 %v3348, 0.7978846
      %v3352 = vmul.f32 %v3349, 0.7978846
      %v3353 = vmul.f32 %v3350, 0.7978846
      %v3354 = vtanh.pop %v3351
      %v3355 = vtanh.pop %v3352
      %v3356 = vtanh.pop %v3353
      %v3357 = vadd.f32 %v3354, 1.0
      %v3358 = vadd.f32 %v3355, 1.0
      %v3359 = vadd.f32 %v3356, 1.0
      %v3360 = vmul.f32 %v3357, 0.5
      %v3361 = vmul.f32 %v3358, 0.5
      %v3362 = vmul.f32 %v3359, 0.5
      %v3363 = vmul.f32 %v3326, %v3360
      %v3364 = vmul.f32 %v3331, %v3361
      %v3365 = vmul.f32 %v3336, %v3362
      %v3366 = vld [vmem:[%s1 + $0x1a0] sm:$0xff]
      %v3367 = vld [vmem:[%s1 + $0x1a8] sm:$0xff]
      %v3368 = vld [vmem:[%s1 + $0x1b0] sm:$0xff]
      %v3369 = vld [vmem:[%s1 + $0x1b8] sm:$0xff]
      %v3370 = vld [vmem:[%s1 + $0x1c0] sm:$0xff]
      %v3371 = vld [vmem:[%s1 + $0x1c8] sm:$0xff]
      %v3372 = vld [vmem:[%s1 + $0x1d0] sm:$0xff]
      %v3373 = vld [vmem:[%s1 + $0x1d8] sm:$0xff]
      %v3374 = vld [vmem:[%s1 + $0x1e7] sm:$0x1]
      %v3375 = vlaneseq
      %v3376 = vshrl.u32 %v3375, 7
      %v3377 = vsub.s32 0, %v3376
      %v3378 = vrot.slane %v3374, %v3377
      %v3380 = vsel %vm1790, %v3363, 0
      %v3383 = vsel %vm1790, %v3364, 0
      %v3386 = vsel %vm1790, %v3365, 0
      %3388 = vmatprep.subr.mxu0 0.0
      %3389 = vmatpush1.msra.mxu0 0.0
      %3390 = vmatprep.subr.mxu0 0.0
      %3391 = vmatpush1.msra.mxu0 0.0
      %3392 = vmatprep.subr.mxu0 0.0
      %3393 = vmatpush1.msra.mxu0 0.0
      %3394 = vmatprep.subr.mxu0 0.0
      %3395 = vmatpush1.msra.mxu0 0.0
      %3396 = vmatprep.subr.mxu0 0.0
      %3397 = vmatpush1.msra.mxu0 0.0
      %3398 = vmatprep.subr.mxu0 0.0
      %3399 = vmatpush1.msra.mxu0 0.0
      %3400 = vmatprep.subr.mxu0 0.0
      %3401 = vmatpush1.msra.mxu0 0.0
      %3402 = vmatprep.subr.mxu0 0.0
      %3403 = vmatpush1.msra.mxu0 0.0
      %3404 = vmatprep.subr.mxu0 0.0
      %3405 = vmatpush1.msra.mxu0 %v3373
      %3406 = vmatprep.subr.mxu0 0.0
      %3407 = vmatpush1.msra.mxu0 %v3372
      %3408 = vmatprep.subr.mxu0 0.0
      %3409 = vmatpush1.msra.mxu0 %v3371
      %3410 = vmatprep.subr.mxu0 0.0
      %3411 = vmatpush1.msra.mxu0 %v3370
      %3412 = vmatprep.subr.mxu0 0.0
      %3413 = vmatpush1.msra.mxu0 %v3369
      %3414 = vmatprep.subr.mxu0 0.0
      %3415 = vmatpush1.msra.mxu0 %v3368
      %3416 = vmatprep.subr.mxu0 0.0
      %3417 = vmatpush1.msra.mxu0 %v3367
      %3418 = vmatprep.subr.mxu0 0.0
      %3419 = vmatpush1.msra.mxu0 %v3366
      %3420 = vmatprep.subr.mxu0 0.0
      %3421 = vmatpush2.msra.mxu0 0.0
      %3422 = vmatprep.subr.mxu0 0.0
      %3423 = vmatpush2.msra.mxu0 0.0
      %3424 = vmatprep.subr.mxu0 0.0
      %3425 = vmatpush2.msra.mxu0 0.0
      %3426 = vmatprep.subr.mxu0 0.0
      %3427 = vmatpush2.msra.mxu0 0.0
      %3428 = vmatprep.subr.mxu0 0.0
      %3429 = vmatpush2.msra.mxu0 0.0
      %3430 = vmatprep.subr.mxu0 0.0
      %3431 = vmatpush2.msra.mxu0 0.0
      %3432 = vmatprep.subr.mxu0 0.0
      %3433 = vmatpush2.msra.mxu0 0.0
      %3434 = vmatprep.subr.mxu0 0.0
      %3435 = vmatpush2.msra.mxu0 0.0
      %3436 = vmatprep.subr.mxu0 0.0
      %3437 = vmatpush2.msra.mxu0 0.0
      %3438 = vmatprep.subr.mxu0 0.0
      %3439 = vmatpush2.msra.mxu0 0.0
      %3440 = vmatprep.subr.mxu0 0.0
      %3441 = vmatpush2.msra.mxu0 0.0
      %3442 = vmatprep.subr.mxu0 0.0
      %3443 = vmatpush2.msra.mxu0 0.0
      %3444 = vmatprep.subr.mxu0 0.0
      %3445 = vmatpush2.msra.mxu0 0.0
      %3446 = vmatprep.subr.mxu0 0.0
      %3447 = vmatpush2.msra.mxu0 0.0
      %3448 = vmatprep.subr.mxu0 0.0
      %3449 = vmatpush2.msra.mxu0 0.0
      %3450 = vmatprep.subr.mxu0 0.0
      %3451 = vmatpush2.msra.mxu0 0.0
      %3452 = vmatprep.mubr.f32.mxu0 0.0
      %3453 = vmatmul.mubr.f32.gmra.mxu0 %v3380
      %v3454 = vpop.f32.mrf.mxu0
      %v3455 = vadd.f32 %v3378, %v3454
      %v3456 = vpop.f32.mrf.mxu0
      %3457 = vmatprep.mubr.f32.mxu0 0.0
      %3458 = vmatmul.mubr.f32.gmra.mxu0 %v3383
      %v3459 = vpop.f32.mrf.mxu0
      %v3460 = vpop.f32.mrf.mxu0
      %3461 = vmatprep.mubr.f32.mxu0 0.0
      %3462 = vmatmul.mubr.f32.gmra.mxu0 %v3386
      %v3463 = vpop.f32.mrf.mxu0
      %v3464 = vpop.f32.mrf.mxu0
      %3465 = vdwg.mxu0
      %v3466 = vadd.f32 %v3183, %v3455
      %v3467 = vld [vmem:[%s1 + $0x1e8] sm:$0x1]
      %v3468 = vld [vmem:[%s1 + $0x1e9] sm:$0x1]
      %vm3469 = vcmask 253952
      %v3470 = vsel %vm3469, %v3466, 0.0
      %3471 = vadd.xlane.f32.xlu0 %v3470
      %v3472 = vpop.xlane.xlu0 %3471
      %v3473 = vmul.f32 %v3472, %v299
      %v3474 = vsub.f32 %v3466, %v3473
      %v3475 = vmul.f32 %v3474, %v3474
      %v3476 = vsel %vm3469, %v3475, 0.0
      %3477 = vadd.xlane.f32.xlu0 %v3476
      %v3478 = vpop.xlane.xlu0 %3477
      %v3479 = vmul.f32 %v3478, %v299
      %v3480 = vadd.f32 %v3479, 1e-06
      %v3481 = vrsqrt.pop %v3480
      %v3482 = vmul.f32 %v3474, %v3481
      %v3483 = vmul.f32 %v3482, %v3467
      %v3484 = vadd.f32 %v3483, %v3468
      %v3485 = vld [vmem:[%s1 + $0x1ea] sm:$0x1]
      %v3486 = vmul.f32 %v3484, %v3485
      %v3487 = vsel %vm3469, %v3486, 0.0
      %3488 = vadd.xlane.f32.xlu0 %v3487
      %v3489 = vpop.xlane.xlu0 %3488
      %v3490 = vld [vmem:[%s1 + $0x1eb] sm:$0x1]
      %v3491 = vadd.f32 %v3489, %v3490
      %3493 = vset.pattern.permute.xlu0 0
      %3494 = vperm.xlu0 %3493, %v3491
      %v3495 = vpop.permute.xlu0 %3494
      %3497 = vst [vmem:[%s176] sm:$0x1] %v3495
      %p3498 = scmp.lt.s32.totalorder %s15, 1
      %s3499 = scalar_select %p3498, %s15, 1
      %s3500 = scalar_lea.vmem %s2, %s3499
      %p3501 = scmp.lt.s32.totalorder %s15, 1
      %s3502 = scalar_select %p3501, %s15, 1
      %s3503 = smul.addr %s3502, 6
      %s3504 = smul.addr %s3503, 8
      %s3505 = scalar_lea.vmem %s3, %s3504
      // Predicated region
      $region29: #{vit_bbone_forward.1} parent=27 // pred_check
        %p3506 = pneg %p80
      $region30: #{vit_bbone_forward.1} parent=27 // pred_check_branch
        %3508 = sbr.rel (%p3506) target = $region32
      $region31: #{vit_bbone_forward.1} parent=27 // pred_region
        _
      $region32: #{vit_bbone_forward.1} parent=27 // pred_fallthru
        _
      // Predicated region
      $region33: #{vit_bbone_forward.1} parent=27 // pred_check
        %p3509 = pneg %p106
      $region34: #{vit_bbone_forward.1} parent=27 // pred_check_branch
        %3511 = sbr.rel (%p3509) target = $region36
      $region35: #{vit_bbone_forward.1} parent=27 // pred_region
        _
      $region36: #{vit_bbone_forward.1} parent=27 // pred_fallthru
        _
    $region28: #{vit_bbone_forward.1} parent=5 // pred_fallthru
      _
    %p3512 = scmp.le.s32.totalorder 2, %s10
    // Predicated region
    $region37: #{vit_bbone_forward.1} parent=5 // pred_check
      %p3513 = pneg %p3512
    $region38: #{vit_bbone_forward.1} parent=5 // pred_check_branch
      %3515 = sbr.rel (%p3513) target = $region40
    $region39: #{vit_bbone_forward.1} parent=5 // pred_region
      %s3516 = ssub.s32 %s10, 2
      // Predicated region
      $region41: #{vit_bbone_forward.1} parent=39 // pred_check
        %p3517 = pneg %p86
      $region42: #{vit_bbone_forward.1} parent=39 // pred_check_branch
        %3519 = sbr.rel (%p3517) target = $region44
      $region43: #{vit_bbone_forward.1} parent=39 // pred_region
        %p3520 = scmp.lt.s32.totalorder %s16, 1
        %s3521 = scalar_select %p3520, %s16, 1
        %s3522 = scalar_lea.vmem %s2, %s3521
      $region44: #{vit_bbone_forward.1} parent=39 // pred_fallthru
        _
      // Predicated region
      $region45: #{vit_bbone_forward.1} parent=39 // pred_check
        %p3523 = pneg %p112
      $region46: #{vit_bbone_forward.1} parent=39 // pred_check_branch
        %3525 = sbr.rel (%p3523) target = $region48
      $region47: #{vit_bbone_forward.1} parent=39 // pred_region
        %p3526 = scmp.lt.s32.totalorder %s16, 1
        %s3527 = scalar_select %p3526, %s16, 1
        %s3528 = smul.addr %s3527, 6
        %s3529 = smul.addr %s3528, 8
        %s3530 = scalar_lea.vmem %s3, %s3529
      $region48: #{vit_bbone_forward.1} parent=39 // pred_fallthru
        _
    $region40: #{vit_bbone_forward.1} parent=5 // pred_fallthru
      _
  $region6: #{vit_bbone_forward.1} parent=0 // loop_footer
    %s14 = sadd.s32 1, %s10
  $region7: #{vit_bbone_forward.1} parent=0 // loop_footer_branch
    %9 = sbr.rel target = $region3
  $region8: #{vit_bbone_forward.1} parent=0 // loop_exit
    _

</llo_original>
